<compile_context>
chip_gen: v7x
topology: tpu7x:2x2x1
jax: 0.10.0
libtpu: 0.0.40
codegen_flags: <defaults>
</compile_context>

<pallas_src>
import math

import jax
import jax.numpy as jnp
from jax.experimental import pallas as pl
from jax.experimental.pallas import tpu as pltpu


_VMEM = pl.BlockSpec(memory_space=pltpu.MemorySpace.VMEM)
_BN_EPS = 1e-5


# ------------------------------------------------------------------
# Pallas kernels (all lane-dense: outputs are (Cout, M), M on lanes)
# ------------------------------------------------------------------

def _conv_bn_relu_kernel(a_ref, w_ref, g_ref, b_ref, o_ref):
    """y = relu(BN(W @ A)) with batch-stat BN; A:(K,M) bf16, W:(Cout,K) bf16."""
    y = jnp.dot(w_ref[...], a_ref[...], preferred_element_type=jnp.float32)
    mean = jnp.mean(y, axis=1, keepdims=True)
    var = jnp.mean((y - mean) ** 2, axis=1, keepdims=True)
    y = (y - mean) * jax.lax.rsqrt(var + _BN_EPS) * g_ref[...] + b_ref[...]
    o_ref[...] = jnp.maximum(y, 0.0)


def _make_resblock_kernel(has_post_bn, quant):
    """Whole ResBlock in one kernel:
         h = relu(BN1(W1 @ A_relu_patches))          # conv3x3 (bias dead under BN1)
         y = W2 @ h [+ b2] + x                       # conv1x1 + residual
         [y = BN_post(y)]                            # trailing BatchNorm (b2 dead)
         [y = dequant(round(phi(y)))]                # full quantization chain
       `quant` is None or (levels, s_const, k_num)."""
    def kern(*refs):
        it = iter(refs)
        a_ref = next(it)                     # (9C, M) bf16, ReLU'd patches
        w1_ref = next(it)                    # (C, 9C) bf16
        g1_ref = next(it); b1_ref = next(it)  # inner BN  (C,1) f32
        w2_ref = next(it)                    # (C, C) f32
        b2_ref = None if has_post_bn else next(it)
        x_ref = next(it)                     # (C, M) f32 residual
        pg_ref = next(it) if has_post_bn else None
        pb_ref = next(it) if has_post_bn else None
        o_ref = next(it)

        # conv3x3 + BN + ReLU (stays in vregs/VMEM, never round-trips HBM)
        h = jnp.dot(w1_ref[...], a_ref[...], preferred_element_type=jnp.float32)
        m = jnp.mean(h, axis=1, keepdims=True)
        v = jnp.mean((h - m) ** 2, axis=1, keepdims=True)
        h = (h - m) * jax.lax.rsqrt(v + _BN_EPS) * g1_ref[...] + b1_ref[...]
        h = jnp.maximum(h, 0.0)

        # conv1x1 + residual (f32 dot: tiny, keeps quant chain f32-exact)
        y = jnp.dot(w2_ref[...], h, preferred_element_type=jnp.float32)
        if not has_post_bn:
            y = y + b2_ref[...]
        y = y + x_ref[...]

        if has_post_bn:
            m2 = jnp.mean(y, axis=1, keepdims=True)
            v2 = jnp.mean((y - m2) ** 2, axis=1, keepdims=True)
            y = (y - m2) * jax.lax.rsqrt(v2 + _BN_EPS) * pg_ref[...] + pb_ref[...]

        if quant is not None:
            levels, s_const, k_num = quant
            cur_max = jnp.max(y)
            cur_min = jnp.min(y)
            delta = (cur_max - cur_min) / levels
            delta = jnp.where(delta == 0.0, 1.0, delta)       # NaN guard (degenerate only)
            interval = jnp.floor((y - cur_min) / delta)       # torch float floor-div
            mi = (interval + 0.5) * delta + cur_min
            k = k_num / delta                                 # log(2/alpha - 1) / delta
            phi = jnp.tanh((y - mi) * k) * s_const            # phi_function
            rng = jnp.max(phi) - jnp.min(phi)                 # RoundWithGradient
            rng = jnp.where(rng == 0.0, 1.0, rng)             # NaN guard (degenerate only)
            r = jnp.round(phi / rng + 0.5) * 2.0 - 1.0        # round-half-even (== torch)
            y = ((r + 1.0) / 2.0 + interval) * delta + cur_min  # dequantize

        o_ref[...] = y
    return kern


def _make_convt_kernel(has_bn, relu, n_cols):
    """Stride-2 / k=4 / pad=1 ConvTranspose2d as 4 sub-pixel phase GEMMs
    (transposed/lane-dense), with BatchNorm(+ReLU) over all phases fused.
    A:(4,Kc,M) bf16, W:(4,Cout,Kc) bf16, out:(4,Cout,M) f32."""
    # TODO(synk): on v6e/v7x, consider one phase-concatenated GEMM
    #   (4Cout x 16Cin weight with structured zeros) to raise MXU occupancy.
    def kern(*refs):
        if has_bn:
            a_ref, w_ref, g_ref, b_ref, o_ref = refs
        else:
            a_ref, w_ref, o_ref = refs
        ys = [jnp.dot(w_ref[p], a_ref[p], preferred_element_type=jnp.float32)
              for p in range(4)]
        if has_bn:
            inv_n = 1.0 / (4.0 * n_cols)
            mean = sum(jnp.sum(y, axis=1, keepdims=True) for y in ys) * inv_n
            var = sum(jnp.sum((y - mean) ** 2, axis=1, keepdims=True)
                      for y in ys) * inv_n
            scale = g_ref[...] * jax.lax.rsqrt(var + _BN_EPS)
            shift = b_ref[...] - mean * scale
            ys = [y * scale + shift for y in ys]
            if relu:
                ys = [jnp.maximum(y, 0.0) for y in ys]
        for p in range(4):
            o_ref[p, :, :] = ys[p]
    return kern


# ------------------------------------------------------------------
# JAX glue: channel-first (C, N, H, W) im2col / sub-pixel patches.
# Cheap at toy shapes; XLA fuses pad/slice/concat/convert.
# TODO(synk): at scale, accumulate taps inside the kernels instead.
# ------------------------------------------------------------------

def _im2col_cf(x_cf, kh, kw, stride, padding, dtype=jnp.bfloat16):
    """x_cf: (Cin, N, H, W) -> (kh*kw*Cin, N*Ho*Wo) patch matrix (transposed)."""
    Cin, N, H, W = x_cf.shape
    xp = jnp.pad(x_cf.astype(dtype),
                 ((0, 0), (0, 0), (padding, padding), (padding, padding)))
    Hp, Wp = xp.shape[2], xp.shape[3]
    Ho = (Hp - kh) // stride + 1
    Wo = (Wp - kw) // stride + 1
    M = N * Ho * Wo
    rows = []
    for i in range(kh):
        for j in range(kw):
            rows.append(xp[:, :, i:i + stride * Ho:stride,
                           j:j + stride * Wo:stride].reshape(Cin, M))
    return jnp.concatenate(rows, axis=0), (Ho, Wo)


def conv2d_bn_relu(x_cf, w_oihw, gamma, beta, *, stride, padding):
    """Conv2d(bias=False) + BatchNorm + ReLU in ONE pallas_call (lane-dense)."""
    Cout, Cin, kh, kw = w_oihw.shape
    N = x_cf.shape[1]
    aT, (Ho, Wo) = _im2col_cf(x_cf, kh, kw, stride, padding)
    wT = jnp.transpose(w_oihw, (0, 2, 3, 1)).reshape(Cout, kh * kw * Cin)
    M = aT.shape[1]
    out = pl.pallas_call(
        _conv_bn_relu_kernel,
        in_specs=[_VMEM] * 4,
        out_specs=_VMEM,
        out_shape=jax.ShapeDtypeStruct((Cout, M), jnp.float32),
    )(aT, wT.astype(jnp.bfloat16),
      gamma.reshape(Cout, 1).astype(jnp.float32),
      beta.reshape(Cout, 1).astype(jnp.float32))
    return out.reshape(Cout, N, Ho, Wo)


def resblock_fused(x_cf, p, post_bn=None, quant=None):
    """ReLU->Conv3x3->BN->ReLU->Conv1x1 + residual (+trailing BN) (+quant chain)
    in ONE pallas_call."""
    C, N, H, W = x_cf.shape
    M = N * H * W
    # Pre-ReLU once on the un-expanded view (fused by XLA into the im2col glue).
    aT, _ = _im2col_cf(jnp.maximum(x_cf, 0.0), 3, 3, 1, 1)          # (9C, M) bf16
    w1T = jnp.transpose(p['w1'], (0, 2, 3, 1)).reshape(C, 9 * C)
    w2m = p['w2'].reshape(C, C)
    has_post = post_bn is not None

    args = [aT, w1T.astype(jnp.bfloat16),
            p['bn_g'].reshape(C, 1).astype(jnp.float32),
            p['bn_b'].reshape(C, 1).astype(jnp.float32),
            w2m.astype(jnp.float32)]
    if not has_post:
        args.append(p['b2'].reshape(C, 1).astype(jnp.float32))      # b2 dead under post-BN
    args.append(x_cf.reshape(C, M).astype(jnp.float32))             # residual
    if has_post:
        args += [post_bn[0].reshape(C, 1).astype(jnp.float32),
                 post_bn[1].reshape(C, 1).astype(jnp.float32)]

    out = pl.pallas_call(
        _make_resblock_kernel(has_post, quant),
        in_specs=[_VMEM] * len(args),
        out_specs=_VMEM,
        out_shape=jax.ShapeDtypeStruct((C, M), jnp.float32),
    )(*args)
    return out.reshape(C, N, H, W)


def _phase_taps_1d(p):
    """1-D taps of output phase p (0/1) for ConvTranspose k=4, s=2, pad=1:
    out[2u+p] accumulates x[u + d] * w[..., k_idx] for each (k_idx, d)."""
    taps = []
    for k_idx in range(4):
        num = p + 1 - k_idx
        if num % 2 == 0:
            taps.append((k_idx, num // 2))
    return taps


def conv_transpose2d_fused(x_list, w_iohw, *, gamma=None, beta=None, relu=False,
                           out_nchw=False):
    """ConvTranspose2d(k=4, s=2, p=1, bias=False) as 4 sub-pixel phase GEMMs on
    the un-dilated input, BN+ReLU fused.  `x_list` holds channel-first sources
    whose channels are logically concatenated (skip connection without an
    explicit jnp.concatenate round trip)."""
    N, H, W = x_list[0].shape[1:]
    Cout = w_iohw.shape[1]
    M = N * H * W
    xps = [jnp.pad(x.astype(jnp.bfloat16), ((0, 0), (0, 0), (1, 1), (1, 1)))
           for x in x_list]
    offs, o = [], 0
    for x in x_list:
        offs.append(o)
        o += x.shape[0]

    phase_patches, phase_weights = [], []
    for py in range(2):
        for px in range(2):
            rows, wcols = [], []
            for ky, dy in _phase_taps_1d(py):
                for kx, dx in _phase_taps_1d(px):
                    for xi, xp in enumerate(xps):
                        Ci = x_list[xi].shape[0]
                        rows.append(
                            xp[:, :, 1 + dy:1 + dy + H, 1 + dx:1 + dx + W]
                            .reshape(Ci, M))
                        wcols.append(w_iohw[offs[xi]:offs[xi] + Ci, :, ky, kx].T)
            phase_patches.append(jnp.concatenate(rows, axis=0))      # (4*Cin, M)
            phase_weights.append(jnp.concatenate(wcols, axis=1))     # (Cout, 4*Cin)

    a = jnp.stack(phase_patches, 0)                                  # (4, 4Cin, M) bf16
    wm = jnp.stack(phase_weights, 0).astype(jnp.bfloat16)            # (4, Cout, 4Cin)

    has_bn = gamma is not None
    args = [a, wm]
    if has_bn:
        args += [gamma.reshape(Cout, 1).astype(jnp.float32),
                 beta.reshape(Cout, 1).astype(jnp.float32)]
    y = pl.pallas_call(
        _make_convt_kernel(has_bn, relu, M),
        in_specs=[_VMEM] * len(args),
        out_specs=_VMEM,
        out_shape=jax.ShapeDtypeStruct((4, Cout, M), jnp.float32),
    )(*args)

    # y[py*2+px, c, n*H*W + u*W + v] -> out[*, *, 2u+py, 2v+px]
    y = y.reshape(2, 2, Cout, N, H, W)
    if out_nchw:   # fold phase-interleave + final NCHW transpose into one op
        return jnp.transpose(y, (3, 2, 4, 0, 5, 1)).reshape(N, Cout, 2 * H, 2 * W)
    return jnp.transpose(y, (2, 3, 4, 0, 5, 1)).reshape(Cout, N, 2 * H, 2 * W)


# ------------------------------------------------------------------
# Full forward pass (8 pallas_calls total)
# ------------------------------------------------------------------

def quantize_unet_forward(x_nchw, params, quan_bit, quan_alpha):
    # Channel-first internal layout (C, N, H, W): M maps to lanes everywhere.
    x = jnp.transpose(x_nchw, (1, 0, 2, 3)).astype(jnp.float32)

    # encoder1 / encoder2: Conv(k4 s2 p1, no bias) + BN + ReLU  (1 call each)
    x1 = conv2d_bn_relu(x, params['enc1_w'], params['enc1_bn_g'],
                        params['enc1_bn_b'], stride=2, padding=1)
    x2 = conv2d_bn_relu(x1, params['enc2_w'], params['enc2_bn_g'],
                        params['enc2_bn_b'], stride=2, padding=1)

    # encoder3: ResBlock+BN (1 call), ResBlock+BN+full quant chain (1 call)
    h = resblock_fused(x2, params['enc3_rb1'],
                       post_bn=(params['enc3_bn1_g'], params['enc3_bn1_b']))
    quant = (float(2 ** quan_bit - 1),
             1.0 / (1.0 - quan_alpha),
             math.log(2.0 / quan_alpha - 1.0))
    x3q = resblock_fused(h, params['enc3_rb2'],
                         post_bn=(params['enc3_bn2_g'], params['enc3_bn2_b']),
                         quant=quant)

    # decoder3: ResBlock+BN (1 call), ResBlock (1 call)
    h = resblock_fused(x3q, params['dec3_rb1'],
                       post_bn=(params['dec3_bn_g'], params['dec3_bn_b']))
    d3 = resblock_fused(h, params['dec3_rb2'])

    # decoder2: ConvT(4C->2C) + BN + ReLU, skip connection without concat (1 call)
    d2 = conv_transpose2d_fused([d3, x2], params['dec2_w'],
                                gamma=params['dec2_bn_g'],
                                beta=params['dec2_bn_b'], relu=True)
    # decoder1: ConvT(2C->3), output emitted directly in NCHW (1 call)
    d1 = conv_transpose2d_fused([d2], params['dec1_w'], out_nchw=True)

    # TODO(synk): self.code1 / self.code2 side-effect attributes (torch.randn
    # noise + sigmoid) and the freeze_encoder requires_grad toggles do not
    # affect the returned tensor d1 and are omitted.
    return d1


# ------------------------------------------------------------------
# Deterministic parameter initialization (shapes from __init__)
# ------------------------------------------------------------------

def init_params(key, conv_mindim):
    C = conv_mindim
    keys = iter(jax.random.split(key, 64))

    def nrm(shape, scale=0.1):
        return scale * jax.random.normal(next(keys), shape, jnp.float32)

    def rb(ch):
        return dict(w1=nrm((ch, ch, 3, 3)), b1=nrm((ch,)),
                    bn_g=1.0 + nrm((ch,)), bn_b=nrm((ch,)),
                    w2=nrm((ch, ch, 1, 1)), b2=nrm((ch,)))

    return dict(
        enc1_w=nrm((C, 3, 4, 4)),
        enc1_bn_g=1.0 + nrm((C,)), enc1_bn_b=nrm((C,)),
        enc2_w=nrm((2 * C, C, 4, 4)),
        enc2_bn_g=1.0 + nrm((2 * C,)), enc2_bn_b=nrm((2 * C,)),
        enc3_rb1=rb(2 * C),
        enc3_bn1_g=1.0 + nrm((2 * C,)), enc3_bn1_b=nrm((2 * C,)),
        enc3_rb2=rb(2 * C),
        enc3_bn2_g=1.0 + nrm((2 * C,)), enc3_bn2_b=nrm((2 * C,)),
        dec3_rb1=rb(2 * C),
        dec3_bn_g=1.0 + nrm((2 * C,)), dec3_bn_b=nrm((2 * C,)),
        dec3_rb2=rb(2 * C),
        dec2_w=nrm((4 * C, 2 * C, 4, 4)),      # ConvTranspose2d: (Cin, Cout, kh, kw)
        dec2_bn_g=1.0 + nrm((2 * C,)), dec2_bn_b=nrm((2 * C,)),
        dec1_w=nrm((2 * C, 3, 4, 4)),
    )


if __name__ == "__main__":
    key = jax.random.PRNGKey(0)
    k_param, k_x = jax.random.split(key)

    conv_mindim = 8
    quan_bit = 2
    quan_alpha = 0.5

    params = init_params(k_param, conv_mindim)
    x = jax.random.normal(k_x, (2, 3, 16, 16), jnp.float32)   # NCHW, like PyTorch

    fwd = jax.jit(lambda xi, p: quantize_unet_forward(xi, p, quan_bit, quan_alpha))
    out = jax.block_until_ready(fwd(x, params))

    assert out.shape == (2, 3, 16, 16), out.shape
    assert bool(jnp.all(jnp.isfinite(out)))
    print("KERNEL_OK")
</pallas_src>

<mosaic_0001>
module attributes {stable_mosaic.version = 11 : i64} {
  func.func @_conv_bn_relu_kernel(%arg0: memref<48x128xbf16, #tpu.memory_space<vmem>>, %arg1: memref<8x48xbf16, #tpu.memory_space<vmem>>, %arg2: memref<8x1xf32, #tpu.memory_space<vmem>>, %arg3: memref<8x1xf32, #tpu.memory_space<vmem>>, %arg4: memref<8x128xf32, #tpu.memory_space<vmem>>) attributes {dimension_semantics = [], scalar_prefetch = 0 : i64, scratch_operands = 0 : i64, tpu.core_type = #tpu.core_type<tc>} {
    %c0 = arith.constant 0 : index
    %c0_0 = arith.constant 0 : index
    %0 = vector.load %arg1[%c0, %c0_0] : memref<8x48xbf16, #tpu.memory_space<vmem>>, vector<8x48xbf16>
    %c0_1 = arith.constant 0 : index
    %c0_2 = arith.constant 0 : index
    %1 = vector.load %arg0[%c0_1, %c0_2] : memref<48x128xbf16, #tpu.memory_space<vmem>>, vector<48x128xbf16>
    %cst = arith.constant dense<0.000000e+00> : vector<8x128xf32>
    %2 = tpu.matmul %0, %1, %cst {dimension_numbers = #tpu.dot_dimension_numbers<[1], [0], [0], [1], [0, 0, 1, 1], [], []>} : vector<8x48xbf16>, vector<48x128xbf16>, vector<8x128xf32> -> vector<8x128xf32>
    %cst_3 = arith.constant dense<0.000000e+00> : vector<8xf32>
    %3 = vector.multi_reduction <add>, %2, %cst_3 [1] : vector<8x128xf32> to vector<8xf32>
    %4 = vector.shape_cast %3 : vector<8xf32> to vector<8x1xf32>
    %cst_4 = arith.constant 1.280000e+02 : f32
    %5 = vector.broadcast %cst_4 : f32 to vector<8x1xf32>
    %6 = arith.divf %4, %5 : vector<8x1xf32>
    %7 = vector.broadcast %6 : vector<8x1xf32> to vector<8x128xf32>
    %8 = arith.subf %2, %7 : vector<8x128xf32>
    %9 = arith.mulf %8, %8 : vector<8x128xf32>
    %cst_5 = arith.constant dense<0.000000e+00> : vector<8xf32>
    %10 = vector.multi_reduction <add>, %9, %cst_5 [1] : vector<8x128xf32> to vector<8xf32>
    %11 = vector.shape_cast %10 : vector<8xf32> to vector<8x1xf32>
    %cst_6 = arith.constant 1.280000e+02 : f32
    %12 = vector.broadcast %cst_6 : f32 to vector<8x1xf32>
    %13 = arith.divf %11, %12 : vector<8x1xf32>
    %14 = vector.broadcast %6 : vector<8x1xf32> to vector<8x128xf32>
    %15 = arith.subf %2, %14 : vector<8x128xf32>
    %cst_7 = arith.constant 9.99999974E-6 : f32
    %16 = vector.broadcast %cst_7 : f32 to vector<8x1xf32>
    %17 = arith.addf %13, %16 : vector<8x1xf32>
    %18 = math.rsqrt %17 : vector<8x1xf32>
    %19 = vector.broadcast %18 : vector<8x1xf32> to vector<8x128xf32>
    %20 = arith.mulf %15, %19 : vector<8x128xf32>
    %c0_8 = arith.constant 0 : index
    %c0_9 = arith.constant 0 : index
    %21 = vector.load %arg2[%c0_8, %c0_9] : memref<8x1xf32, #tpu.memory_space<vmem>>, vector<8x1xf32>
    %22 = vector.broadcast %21 : vector<8x1xf32> to vector<8x128xf32>
    %23 = arith.mulf %20, %22 : vector<8x128xf32>
    %c0_10 = arith.constant 0 : index
    %c0_11 = arith.constant 0 : index
    %24 = vector.load %arg3[%c0_10, %c0_11] : memref<8x1xf32, #tpu.memory_space<vmem>>, vector<8x1xf32>
    %25 = vector.broadcast %24 : vector<8x1xf32> to vector<8x128xf32>
    %26 = arith.addf %23, %25 : vector<8x128xf32>
    %cst_12 = arith.constant 0.000000e+00 : f32
    %27 = vector.broadcast %cst_12 : f32 to vector<8x128xf32>
    %28 = arith.maximumf %26, %27 : vector<8x128xf32>
    %c0_13 = arith.constant 0 : index
    %c0_14 = arith.constant 0 : index
    %29 = vector.load %arg4[%c0_13, %c0_14] : memref<8x128xf32, #tpu.memory_space<vmem>>, vector<8x128xf32>
    tpu.vector_store %arg4[%c0_13, %c0_14], %28 {strides = array<i32>} : memref<8x128xf32, #tpu.memory_space<vmem>>, vector<8x128xf32>,
    return
  }
}

module attributes {stable_mosaic.version = 11 : i64} {
  func.func @_conv_bn_relu_kernel(%arg0: memref<128x32xbf16, #tpu.memory_space<vmem>>, %arg1: memref<16x128xbf16, #tpu.memory_space<vmem>>, %arg2: memref<16x1xf32, #tpu.memory_space<vmem>>, %arg3: memref<16x1xf32, #tpu.memory_space<vmem>>, %arg4: memref<16x32xf32, #tpu.memory_space<vmem>>) attributes {dimension_semantics = [], scalar_prefetch = 0 : i64, scratch_operands = 0 : i64, tpu.core_type = #tpu.core_type<tc>} {
    %c0 = arith.constant 0 : index
    %c0_0 = arith.constant 0 : index
    %0 = vector.load %arg1[%c0, %c0_0] : memref<16x128xbf16, #tpu.memory_space<vmem>>, vector<16x128xbf16>
    %c0_1 = arith.constant 0 : index
    %c0_2 = arith.constant 0 : index
    %1 = vector.load %arg0[%c0_1, %c0_2] : memref<128x32xbf16, #tpu.memory_space<vmem>>, vector<128x32xbf16>
    %cst = arith.constant dense<0.000000e+00> : vector<16x32xf32>
    %2 = tpu.matmul %0, %1, %cst {dimension_numbers = #tpu.dot_dimension_numbers<[1], [0], [0], [1], [0, 0, 1, 1], [], []>} : vector<16x128xbf16>, vector<128x32xbf16>, vector<16x32xf32> -> vector<16x32xf32>
    %cst_3 = arith.constant dense<0.000000e+00> : vector<16xf32>
    %3 = vector.multi_reduction <add>, %2, %cst_3 [1] : vector<16x32xf32> to vector<16xf32>
    %4 = vector.shape_cast %3 : vector<16xf32> to vector<16x1xf32>
    %cst_4 = arith.constant 3.200000e+01 : f32
    %5 = vector.broadcast %cst_4 : f32 to vector<16x1xf32>
    %6 = arith.divf %4, %5 : vector<16x1xf32>
    %7 = vector.broadcast %6 : vector<16x1xf32> to vector<16x32xf32>
    %8 = arith.subf %2, %7 : vector<16x32xf32>
    %9 = arith.mulf %8, %8 : vector<16x32xf32>
    %cst_5 = arith.constant dense<0.000000e+00> : vector<16xf32>
    %10 = vector.multi_reduction <add>, %9, %cst_5 [1] : vector<16x32xf32> to vector<16xf32>
    %11 = vector.shape_cast %10 : vector<16xf32> to vector<16x1xf32>
    %cst_6 = arith.constant 3.200000e+01 : f32
    %12 = vector.broadcast %cst_6 : f32 to vector<16x1xf32>
    %13 = arith.divf %11, %12 : vector<16x1xf32>
    %14 = vector.broadcast %6 : vector<16x1xf32> to vector<16x32xf32>
    %15 = arith.subf %2, %14 : vector<16x32xf32>
    %cst_7 = arith.constant 9.99999974E-6 : f32
    %16 = vector.broadcast %cst_7 : f32 to vector<16x1xf32>
    %17 = arith.addf %13, %16 : vector<16x1xf32>
    %18 = math.rsqrt %17 : vector<16x1xf32>
    %19 = vector.broadcast %18 : vector<16x1xf32> to vector<16x32xf32>
    %20 = arith.mulf %15, %19 : vector<16x32xf32>
    %c0_8 = arith.constant 0 : index
    %c0_9 = arith.constant 0 : index
    %21 = vector.load %arg2[%c0_8, %c0_9] : memref<16x1xf32, #tpu.memory_space<vmem>>, vector<16x1xf32>
    %22 = vector.broadcast %21 : vector<16x1xf32> to vector<16x32xf32>
    %23 = arith.mulf %20, %22 : vector<16x32xf32>
    %c0_10 = arith.constant 0 : index
    %c0_11 = arith.constant 0 : index
    %24 = vector.load %arg3[%c0_10, %c0_11] : memref<16x1xf32, #tpu.memory_space<vmem>>, vector<16x1xf32>
    %25 = vector.broadcast %24 : vector<16x1xf32> to vector<16x32xf32>
    %26 = arith.addf %23, %25 : vector<16x32xf32>
    %cst_12 = arith.constant 0.000000e+00 : f32
    %27 = vector.broadcast %cst_12 : f32 to vector<16x32xf32>
    %28 = arith.maximumf %26, %27 : vector<16x32xf32>
    %c0_13 = arith.constant 0 : index
    %c0_14 = arith.constant 0 : index
    %29 = vector.load %arg4[%c0_13, %c0_14] : memref<16x32xf32, #tpu.memory_space<vmem>>, vector<16x32xf32>
    tpu.vector_store %arg4[%c0_13, %c0_14], %28 {strides = array<i32>} : memref<16x32xf32, #tpu.memory_space<vmem>>, vector<16x32xf32>,
    return
  }
}

module attributes {stable_mosaic.version = 11 : i64} {
  func.func @kern(%arg0: memref<144x32xbf16, #tpu.memory_space<vmem>>, %arg1: memref<16x144xbf16, #tpu.memory_space<vmem>>, %arg2: memref<16x1xf32, #tpu.memory_space<vmem>>, %arg3: memref<16x1xf32, #tpu.memory_space<vmem>>, %arg4: memref<16x16xf32, #tpu.memory_space<vmem>>, %arg5: memref<16x32xf32, #tpu.memory_space<vmem>>, %arg6: memref<16x1xf32, #tpu.memory_space<vmem>>, %arg7: memref<16x1xf32, #tpu.memory_space<vmem>>, %arg8: memref<16x32xf32, #tpu.memory_space<vmem>>) attributes {dimension_semantics = [], scalar_prefetch = 0 : i64, scratch_operands = 0 : i64, tpu.core_type = #tpu.core_type<tc>} {
    %c0 = arith.constant 0 : index
    %c0_0 = arith.constant 0 : index
    %0 = vector.load %arg1[%c0, %c0_0] : memref<16x144xbf16, #tpu.memory_space<vmem>>, vector<16x144xbf16>
    %c0_1 = arith.constant 0 : index
    %c0_2 = arith.constant 0 : index
    %1 = vector.load %arg0[%c0_1, %c0_2] : memref<144x32xbf16, #tpu.memory_space<vmem>>, vector<144x32xbf16>
    %cst = arith.constant dense<0.000000e+00> : vector<16x32xf32>
    %2 = tpu.matmul %0, %1, %cst {dimension_numbers = #tpu.dot_dimension_numbers<[1], [0], [0], [1], [0, 0, 1, 1], [], []>} : vector<16x144xbf16>, vector<144x32xbf16>, vector<16x32xf32> -> vector<16x32xf32>
    %cst_3 = arith.constant dense<0.000000e+00> : vector<16xf32>
    %3 = vector.multi_reduction <add>, %2, %cst_3 [1] : vector<16x32xf32> to vector<16xf32>
    %4 = vector.shape_cast %3 : vector<16xf32> to vector<16x1xf32>
    %cst_4 = arith.constant 3.200000e+01 : f32
    %5 = vector.broadcast %cst_4 : f32 to vector<16x1xf32>
    %6 = arith.divf %4, %5 : vector<16x1xf32>
    %7 = vector.broadcast %6 : vector<16x1xf32> to vector<16x32xf32>
    %8 = arith.subf %2, %7 : vector<16x32xf32>
    %9 = arith.mulf %8, %8 : vector<16x32xf32>
    %cst_5 = arith.constant dense<0.000000e+00> : vector<16xf32>
    %10 = vector.multi_reduction <add>, %9, %cst_5 [1] : vector<16x32xf32> to vector<16xf32>
    %11 = vector.shape_cast %10 : vector<16xf32> to vector<16x1xf32>
    %cst_6 = arith.constant 3.200000e+01 : f32
    %12 = vector.broadcast %cst_6 : f32 to vector<16x1xf32>
    %13 = arith.divf %11, %12 : vector<16x1xf32>
    %14 = vector.broadcast %6 : vector<16x1xf32> to vector<16x32xf32>
    %15 = arith.subf %2, %14 : vector<16x32xf32>
    %cst_7 = arith.constant 9.99999974E-6 : f32
    %16 = vector.broadcast %cst_7 : f32 to vector<16x1xf32>
    %17 = arith.addf %13, %16 : vector<16x1xf32>
    %18 = math.rsqrt %17 : vector<16x1xf32>
    %19 = vector.broadcast %18 : vector<16x1xf32> to vector<16x32xf32>
    %20 = arith.mulf %15, %19 : vector<16x32xf32>
    %c0_8 = arith.constant 0 : index
    %c0_9 = arith.constant 0 : index
    %21 = vector.load %arg2[%c0_8, %c0_9] : memref<16x1xf32, #tpu.memory_space<vmem>>, vector<16x1xf32>
    %22 = vector.broadcast %21 : vector<16x1xf32> to vector<16x32xf32>
    %23 = arith.mulf %20, %22 : vector<16x32xf32>
    %c0_10 = arith.constant 0 : index
    %c0_11 = arith.constant 0 : index
    %24 = vector.load %arg3[%c0_10, %c0_11] : memref<16x1xf32, #tpu.memory_space<vmem>>, vector<16x1xf32>
    %25 = vector.broadcast %24 : vector<16x1xf32> to vector<16x32xf32>
    %26 = arith.addf %23, %25 : vector<16x32xf32>
    %cst_12 = arith.constant 0.000000e+00 : f32
    %27 = vector.broadcast %cst_12 : f32 to vector<16x32xf32>
    %28 = arith.maximumf %26, %27 : vector<16x32xf32>
    %c0_13 = arith.constant 0 : index
    %c0_14 = arith.constant 0 : index
    %29 = vector.load %arg4[%c0_13, %c0_14] : memref<16x16xf32, #tpu.memory_space<vmem>>, vector<16x16xf32>
    %cst_15 = arith.constant dense<0.000000e+00> : vector<16x32xf32>
    %30 = tpu.matmul %29, %28, %cst_15 {dimension_numbers = #tpu.dot_dimension_numbers<[1], [0], [0], [1], [0, 0, 1, 1], [], []>} : vector<16x16xf32>, vector<16x32xf32>, vector<16x32xf32> -> vector<16x32xf32>
    %c0_16 = arith.constant 0 : index
    %c0_17 = arith.constant 0 : index
    %31 = vector.load %arg5[%c0_16, %c0_17] : memref<16x32xf32, #tpu.memory_space<vmem>>, vector<16x32xf32>
    %32 = arith.addf %30, %31 : vector<16x32xf32>
    %cst_18 = arith.constant dense<0.000000e+00> : vector<16xf32>
    %33 = vector.multi_reduction <add>, %32, %cst_18 [1] : vector<16x32xf32> to vector<16xf32>
    %34 = vector.shape_cast %33 : vector<16xf32> to vector<16x1xf32>
    %cst_19 = arith.constant 3.200000e+01 : f32
    %35 = vector.broadcast %cst_19 : f32 to vector<16x1xf32>
    %36 = arith.divf %34, %35 : vector<16x1xf32>
    %37 = vector.broadcast %36 : vector<16x1xf32> to vector<16x32xf32>
    %38 = arith.subf %32, %37 : vector<16x32xf32>
    %39 = arith.mulf %38, %38 : vector<16x32xf32>
    %cst_20 = arith.constant dense<0.000000e+00> : vector<16xf32>
    %40 = vector.multi_reduction <add>, %39, %cst_20 [1] : vector<16x32xf32> to vector<16xf32>
    %41 = vector.shape_cast %40 : vector<16xf32> to vector<16x1xf32>
    %cst_21 = arith.constant 3.200000e+01 : f32
    %42 = vector.broadcast %cst_21 : f32 to vector<16x1xf32>
    %43 = arith.divf %41, %42 : vector<16x1xf32>
    %44 = vector.broadcast %36 : vector<16x1xf32> to vector<16x32xf32>
    %45 = arith.subf %32, %44 : vector<16x32xf32>
    %cst_22 = arith.constant 9.99999974E-6 : f32
    %46 = vector.broadcast %cst_22 : f32 to vector<16x1xf32>
    %47 = arith.addf %43, %46 : vector<16x1xf32>
    %48 = math.rsqrt %47 : vector<16x1xf32>
    %49 = vector.broadcast %48 : vector<16x1xf32> to vector<16x32xf32>
    %50 = arith.mulf %45, %49 : vector<16x32xf32>
    %c0_23 = arith.constant 0 : index
    %c0_24 = arith.constant 0 : index
    %51 = vector.load %arg6[%c0_23, %c0_24] : memref<16x1xf32, #tpu.memory_space<vmem>>, vector<16x1xf32>
    %52 = vector.broadcast %51 : vector<16x1xf32> to vector<16x32xf32>
    %53 = arith.mulf %50, %52 : vector<16x32xf32>
    %c0_25 = arith.constant 0 : index
    %c0_26 = arith.constant 0 : index
    %54 = vector.load %arg7[%c0_25, %c0_26] : memref<16x1xf32, #tpu.memory_space<vmem>>, vector<16x1xf32>
    %55 = vector.broadcast %54 : vector<16x1xf32> to vector<16x32xf32>
    %56 = arith.addf %53, %55 : vector<16x32xf32>
    %57 = vector.shape_cast %56 : vector<16x32xf32> to vector<1x16x32xf32>
    %cst_27 = arith.constant dense<0xFF800000> : vector<1xf32>
    %58 = vector.multi_reduction <maximumf>, %57, %cst_27 [1, 2] : vector<1x16x32xf32> to vector<1xf32>
    %59 = vector.shape_cast %58 : vector<1xf32> to vector<1x1x1xf32>
    %60 = vector.extract %59[0, 0, 0] : f32 from vector<1x1x1xf32>
    %61 = vector.shape_cast %56 : vector<16x32xf32> to vector<1x16x32xf32>
    %cst_28 = arith.constant dense<0x7F800000> : vector<1xf32>
    %62 = vector.multi_reduction <minimumf>, %61, %cst_28 [1, 2] : vector<1x16x32xf32> to vector<1xf32>
    %63 = vector.shape_cast %62 : vector<1xf32> to vector<1x1x1xf32>
    %64 = vector.extract %63[0, 0, 0] : f32 from vector<1x1x1xf32>
    %65 = arith.subf %60, %64 : f32
    %cst_29 = arith.constant 3.000000e+00 : f32
    %66 = arith.divf %65, %cst_29 : f32
    %cst_30 = arith.constant 0.000000e+00 : f32
    %67 = arith.cmpf oeq, %66, %cst_30 : f32
    %cst_31 = arith.constant 1.000000e+00 : f32
    %68 = arith.select %67, %cst_31, %66 : f32
    %69 = vector.broadcast %64 : f32 to vector<16x32xf32>
    %70 = arith.subf %56, %69 : vector<16x32xf32>
    %71 = vector.broadcast %68 : f32 to vector<16x32xf32>
    %72 = arith.divf %70, %71 : vector<16x32xf32>
    %73 = math.floor %72 : vector<16x32xf32>
    %cst_32 = arith.constant 5.000000e-01 : f32
    %74 = vector.broadcast %cst_32 : f32 to vector<16x32xf32>
    %75 = arith.addf %73, %74 : vector<16x32xf32>
    %76 = vector.broadcast %68 : f32 to vector<16x32xf32>
    %77 = arith.mulf %75, %76 : vector<16x32xf32>
    %78 = vector.broadcast %64 : f32 to vector<16x32xf32>
    %79 = arith.addf %77, %78 : vector<16x32xf32>
    %cst_33 = arith.constant 1.09861231 : f32
    %80 = arith.divf %cst_33, %68 : f32
    %81 = arith.subf %56, %79 : vector<16x32xf32>
    %82 = vector.broadcast %80 : f32 to vector<16x32xf32>
    %83 = arith.mulf %81, %82 : vector<16x32xf32>
    %84 = math.tanh %83 : vector<16x32xf32>
    %cst_34 = arith.constant 2.000000e+00 : f32
    %85 = vector.broadcast %cst_34 : f32 to vector<16x32xf32>
    %86 = arith.mulf %84, %85 : vector<16x32xf32>
    %87 = vector.shape_cast %86 : vector<16x32xf32> to vector<1x16x32xf32>
    %cst_35 = arith.constant dense<0xFF800000> : vector<1xf32>
    %88 = vector.multi_reduction <maximumf>, %87, %cst_35 [1, 2] : vector<1x16x32xf32> to vector<1xf32>
    %89 = vector.shape_cast %88 : vector<1xf32> to vector<1x1x1xf32>
    %90 = vector.extract %89[0, 0, 0] : f32 from vector<1x1x1xf32>
    %91 = vector.shape_cast %86 : vector<16x32xf32> to vector<1x16x32xf32>
    %cst_36 = arith.constant dense<0x7F800000> : vector<1xf32>
    %92 = vector.multi_reduction <minimumf>, %91, %cst_36 [1, 2] : vector<1x16x32xf32> to vector<1xf32>
    %93 = vector.shape_cast %92 : vector<1xf32> to vector<1x1x1xf32>
    %94 = vector.extract %93[0, 0, 0] : f32 from vector<1x1x1xf32>
    %95 = arith.subf %90, %94 : f32
    %cst_37 = arith.constant 0.000000e+00 : f32
    %96 = arith.cmpf oeq, %95, %cst_37 : f32
    %cst_38 = arith.constant 1.000000e+00 : f32
    %97 = arith.select %96, %cst_38, %95 : f32
    %98 = vector.broadcast %97 : f32 to vector<16x32xf32>
    %99 = arith.divf %86, %98 : vector<16x32xf32>
    %cst_39 = arith.constant 5.000000e-01 : f32
    %100 = vector.broadcast %cst_39 : f32 to vector<16x32xf32>
    %101 = arith.addf %99, %100 : vector<16x32xf32>
    %102 = math.roundeven %101 : vector<16x32xf32>
    %cst_40 = arith.constant 2.000000e+00 : f32
    %103 = vector.broadcast %cst_40 : f32 to vector<16x32xf32>
    %104 = arith.mulf %102, %103 : vector<16x32xf32>
    %cst_41 = arith.constant 1.000000e+00 : f32
    %105 = vector.broadcast %cst_41 : f32 to vector<16x32xf32>
    %106 = arith.subf %104, %105 : vector<16x32xf32>
    %cst_42 = arith.constant 1.000000e+00 : f32
    %107 = vector.broadcast %cst_42 : f32 to vector<16x32xf32>
    %108 = arith.addf %106, %107 : vector<16x32xf32>
    %cst_43 = arith.constant 2.000000e+00 : f32
    %109 = vector.broadcast %cst_43 : f32 to vector<16x32xf32>
    %110 = arith.divf %108, %109 : vector<16x32xf32>
    %111 = arith.addf %110, %73 : vector<16x32xf32>
    %112 = vector.broadcast %68 : f32 to vector<16x32xf32>
    %113 = arith.mulf %111, %112 : vector<16x32xf32>
    %114 = vector.broadcast %64 : f32 to vector<16x32xf32>
    %115 = arith.addf %113, %114 : vector<16x32xf32>
    %c0_44 = arith.constant 0 : index
    %c0_45 = arith.constant 0 : index
    %116 = vector.load %arg8[%c0_44, %c0_45] : memref<16x32xf32, #tpu.memory_space<vmem>>, vector<16x32xf32>
    tpu.vector_store %arg8[%c0_44, %c0_45], %115 {strides = array<i32>} : memref<16x32xf32, #tpu.memory_space<vmem>>, vector<16x32xf32>,
    return
  }
}

module attributes {stable_mosaic.version = 11 : i64} {
  func.func @kern(%arg0: memref<144x32xbf16, #tpu.memory_space<vmem>>, %arg1: memref<16x144xbf16, #tpu.memory_space<vmem>>, %arg2: memref<16x1xf32, #tpu.memory_space<vmem>>, %arg3: memref<16x1xf32, #tpu.memory_space<vmem>>, %arg4: memref<16x16xf32, #tpu.memory_space<vmem>>, %arg5: memref<16x32xf32, #tpu.memory_space<vmem>>, %arg6: memref<16x1xf32, #tpu.memory_space<vmem>>, %arg7: memref<16x1xf32, #tpu.memory_space<vmem>>, %arg8: memref<16x32xf32, #tpu.memory_space<vmem>>) attributes {dimension_semantics = [], scalar_prefetch = 0 : i64, scratch_operands = 0 : i64, tpu.core_type = #tpu.core_type<tc>} {
    %c0 = arith.constant 0 : index
    %c0_0 = arith.constant 0 : index
    %0 = vector.load %arg1[%c0, %c0_0] : memref<16x144xbf16, #tpu.memory_space<vmem>>, vector<16x144xbf16>
    %c0_1 = arith.constant 0 : index
    %c0_2 = arith.constant 0 : index
    %1 = vector.load %arg0[%c0_1, %c0_2] : memref<144x32xbf16, #tpu.memory_space<vmem>>, vector<144x32xbf16>
    %cst = arith.constant dense<0.000000e+00> : vector<16x32xf32>
    %2 = tpu.matmul %0, %1, %cst {dimension_numbers = #tpu.dot_dimension_numbers<[1], [0], [0], [1], [0, 0, 1, 1], [], []>} : vector<16x144xbf16>, vector<144x32xbf16>, vector<16x32xf32> -> vector<16x32xf32>
    %cst_3 = arith.constant dense<0.000000e+00> : vector<16xf32>
    %3 = vector.multi_reduction <add>, %2, %cst_3 [1] : vector<16x32xf32> to vector<16xf32>
    %4 = vector.shape_cast %3 : vector<16xf32> to vector<16x1xf32>
    %cst_4 = arith.constant 3.200000e+01 : f32
    %5 = vector.broadcast %cst_4 : f32 to vector<16x1xf32>
    %6 = arith.divf %4, %5 : vector<16x1xf32>
    %7 = vector.broadcast %6 : vector<16x1xf32> to vector<16x32xf32>
    %8 = arith.subf %2, %7 : vector<16x32xf32>
    %9 = arith.mulf %8, %8 : vector<16x32xf32>
    %cst_5 = arith.constant dense<0.000000e+00> : vector<16xf32>
    %10 = vector.multi_reduction <add>, %9, %cst_5 [1] : vector<16x32xf32> to vector<16xf32>
    %11 = vector.shape_cast %10 : vector<16xf32> to vector<16x1xf32>
    %cst_6 = arith.constant 3.200000e+01 : f32
    %12 = vector.broadcast %cst_6 : f32 to vector<16x1xf32>
    %13 = arith.divf %11, %12 : vector<16x1xf32>
    %14 = vector.broadcast %6 : vector<16x1xf32> to vector<16x32xf32>
    %15 = arith.subf %2, %14 : vector<16x32xf32>
    %cst_7 = arith.constant 9.99999974E-6 : f32
    %16 = vector.broadcast %cst_7 : f32 to vector<16x1xf32>
    %17 = arith.addf %13, %16 : vector<16x1xf32>
    %18 = math.rsqrt %17 : vector<16x1xf32>
    %19 = vector.broadcast %18 : vector<16x1xf32> to vector<16x32xf32>
    %20 = arith.mulf %15, %19 : vector<16x32xf32>
    %c0_8 = arith.constant 0 : index
    %c0_9 = arith.constant 0 : index
    %21 = vector.load %arg2[%c0_8, %c0_9] : memref<16x1xf32, #tpu.memory_space<vmem>>, vector<16x1xf32>
    %22 = vector.broadcast %21 : vector<16x1xf32> to vector<16x32xf32>
    %23 = arith.mulf %20, %22 : vector<16x32xf32>
    %c0_10 = arith.constant 0 : index
    %c0_11 = arith.constant 0 : index
    %24 = vector.load %arg3[%c0_10, %c0_11] : memref<16x1xf32, #tpu.memory_space<vmem>>, vector<16x1xf32>
    %25 = vector.broadcast %24 : vector<16x1xf32> to vector<16x32xf32>
    %26 = arith.addf %23, %25 : vector<16x32xf32>
    %cst_12 = arith.constant 0.000000e+00 : f32
    %27 = vector.broadcast %cst_12 : f32 to vector<16x32xf32>
    %28 = arith.maximumf %26, %27 : vector<16x32xf32>
    %c0_13 = arith.constant 0 : index
    %c0_14 = arith.constant 0 : index
    %29 = vector.load %arg4[%c0_13, %c0_14] : memref<16x16xf32, #tpu.memory_space<vmem>>, vector<16x16xf32>
    %cst_15 = arith.constant dense<0.000000e+00> : vector<16x32xf32>
    %30 = tpu.matmul %29, %28, %cst_15 {dimension_numbers = #tpu.dot_dimension_numbers<[1], [0], [0], [1], [0, 0, 1, 1], [], []>} : vector<16x16xf32>, vector<16x32xf32>, vector<16x32xf32> -> vector<16x32xf32>
    %c0_16 = arith.constant 0 : index
    %c0_17 = arith.constant 0 : index
    %31 = vector.load %arg5[%c0_16, %c0_17] : memref<16x32xf32, #tpu.memory_space<vmem>>, vector<16x32xf32>
    %32 = arith.addf %30, %31 : vector<16x32xf32>
    %cst_18 = arith.constant dense<0.000000e+00> : vector<16xf32>
    %33 = vector.multi_reduction <add>, %32, %cst_18 [1] : vector<16x32xf32> to vector<16xf32>
    %34 = vector.shape_cast %33 : vector<16xf32> to vector<16x1xf32>
    %cst_19 = arith.constant 3.200000e+01 : f32
    %35 = vector.broadcast %cst_19 : f32 to vector<16x1xf32>
    %36 = arith.divf %34, %35 : vector<16x1xf32>
    %37 = vector.broadcast %36 : vector<16x1xf32> to vector<16x32xf32>
    %38 = arith.subf %32, %37 : vector<16x32xf32>
    %39 = arith.mulf %38, %38 : vector<16x32xf32>
    %cst_20 = arith.constant dense<0.000000e+00> : vector<16xf32>
    %40 = vector.multi_reduction <add>, %39, %cst_20 [1] : vector<16x32xf32> to vector<16xf32>
    %41 = vector.shape_cast %40 : vector<16xf32> to vector<16x1xf32>
    %cst_21 = arith.constant 3.200000e+01 : f32
    %42 = vector.broadcast %cst_21 : f32 to vector<16x1xf32>
    %43 = arith.divf %41, %42 : vector<16x1xf32>
    %44 = vector.broadcast %36 : vector<16x1xf32> to vector<16x32xf32>
    %45 = arith.subf %32, %44 : vector<16x32xf32>
    %cst_22 = arith.constant 9.99999974E-6 : f32
    %46 = vector.broadcast %cst_22 : f32 to vector<16x1xf32>
    %47 = arith.addf %43, %46 : vector<16x1xf32>
    %48 = math.rsqrt %47 : vector<16x1xf32>
    %49 = vector.broadcast %48 : vector<16x1xf32> to vector<16x32xf32>
    %50 = arith.mulf %45, %49 : vector<16x32xf32>
    %c0_23 = arith.constant 0 : index
    %c0_24 = arith.constant 0 : index
    %51 = vector.load %arg6[%c0_23, %c0_24] : memref<16x1xf32, #tpu.memory_space<vmem>>, vector<16x1xf32>
    %52 = vector.broadcast %51 : vector<16x1xf32> to vector<16x32xf32>
    %53 = arith.mulf %50, %52 : vector<16x32xf32>
    %c0_25 = arith.constant 0 : index
    %c0_26 = arith.constant 0 : index
    %54 = vector.load %arg7[%c0_25, %c0_26] : memref<16x1xf32, #tpu.memory_space<vmem>>, vector<16x1xf32>
    %55 = vector.broadcast %54 : vector<16x1xf32> to vector<16x32xf32>
    %56 = arith.addf %53, %55 : vector<16x32xf32>
    %c0_27 = arith.constant 0 : index
    %c0_28 = arith.constant 0 : index
    %57 = vector.load %arg8[%c0_27, %c0_28] : memref<16x32xf32, #tpu.memory_space<vmem>>, vector<16x32xf32>
    tpu.vector_store %arg8[%c0_27, %c0_28], %56 {strides = array<i32>} : memref<16x32xf32, #tpu.memory_space<vmem>>, vector<16x32xf32>,
    return
  }
}

module attributes {stable_mosaic.version = 11 : i64} {
  func.func @kern(%arg0: memref<144x32xbf16, #tpu.memory_space<vmem>>, %arg1: memref<16x144xbf16, #tpu.memory_space<vmem>>, %arg2: memref<16x1xf32, #tpu.memory_space<vmem>>, %arg3: memref<16x1xf32, #tpu.memory_space<vmem>>, %arg4: memref<16x16xf32, #tpu.memory_space<vmem>>, %arg5: memref<16x1xf32, #tpu.memory_space<vmem>>, %arg6: memref<16x32xf32, #tpu.memory_space<vmem>>, %arg7: memref<16x32xf32, #tpu.memory_space<vmem>>) attributes {dimension_semantics = [], scalar_prefetch = 0 : i64, scratch_operands = 0 : i64, tpu.core_type = #tpu.core_type<tc>} {
    %c0 = arith.constant 0 : index
    %c0_0 = arith.constant 0 : index
    %0 = vector.load %arg1[%c0, %c0_0] : memref<16x144xbf16, #tpu.memory_space<vmem>>, vector<16x144xbf16>
    %c0_1 = arith.constant 0 : index
    %c0_2 = arith.constant 0 : index
    %1 = vector.load %arg0[%c0_1, %c0_2] : memref<144x32xbf16, #tpu.memory_space<vmem>>, vector<144x32xbf16>
    %cst = arith.constant dense<0.000000e+00> : vector<16x32xf32>
    %2 = tpu.matmul %0, %1, %cst {dimension_numbers = #tpu.dot_dimension_numbers<[1], [0], [0], [1], [0, 0, 1, 1], [], []>} : vector<16x144xbf16>, vector<144x32xbf16>, vector<16x32xf32> -> vector<16x32xf32>
    %cst_3 = arith.constant dense<0.000000e+00> : vector<16xf32>
    %3 = vector.multi_reduction <add>, %2, %cst_3 [1] : vector<16x32xf32> to vector<16xf32>
    %4 = vector.shape_cast %3 : vector<16xf32> to vector<16x1xf32>
    %cst_4 = arith.constant 3.200000e+01 : f32
    %5 = vector.broadcast %cst_4 : f32 to vector<16x1xf32>
    %6 = arith.divf %4, %5 : vector<16x1xf32>
    %7 = vector.broadcast %6 : vector<16x1xf32> to vector<16x32xf32>
    %8 = arith.subf %2, %7 : vector<16x32xf32>
    %9 = arith.mulf %8, %8 : vector<16x32xf32>
    %cst_5 = arith.constant dense<0.000000e+00> : vector<16xf32>
    %10 = vector.multi_reduction <add>, %9, %cst_5 [1] : vector<16x32xf32> to vector<16xf32>
    %11 = vector.shape_cast %10 : vector<16xf32> to vector<16x1xf32>
    %cst_6 = arith.constant 3.200000e+01 : f32
    %12 = vector.broadcast %cst_6 : f32 to vector<16x1xf32>
    %13 = arith.divf %11, %12 : vector<16x1xf32>
    %14 = vector.broadcast %6 : vector<16x1xf32> to vector<16x32xf32>
    %15 = arith.subf %2, %14 : vector<16x32xf32>
    %cst_7 = arith.constant 9.99999974E-6 : f32
    %16 = vector.broadcast %cst_7 : f32 to vector<16x1xf32>
    %17 = arith.addf %13, %16 : vector<16x1xf32>
    %18 = math.rsqrt %17 : vector<16x1xf32>
    %19 = vector.broadcast %18 : vector<16x1xf32> to vector<16x32xf32>
    %20 = arith.mulf %15, %19 : vector<16x32xf32>
    %c0_8 = arith.constant 0 : index
    %c0_9 = arith.constant 0 : index
    %21 = vector.load %arg2[%c0_8, %c0_9] : memref<16x1xf32, #tpu.memory_space<vmem>>, vector<16x1xf32>
    %22 = vector.broadcast %21 : vector<16x1xf32> to vector<16x32xf32>
    %23 = arith.mulf %20, %22 : vector<16x32xf32>
    %c0_10 = arith.constant 0 : index
    %c0_11 = arith.constant 0 : index
    %24 = vector.load %arg3[%c0_10, %c0_11] : memref<16x1xf32, #tpu.memory_space<vmem>>, vector<16x1xf32>
    %25 = vector.broadcast %24 : vector<16x1xf32> to vector<16x32xf32>
    %26 = arith.addf %23, %25 : vector<16x32xf32>
    %cst_12 = arith.constant 0.000000e+00 : f32
    %27 = vector.broadcast %cst_12 : f32 to vector<16x32xf32>
    %28 = arith.maximumf %26, %27 : vector<16x32xf32>
    %c0_13 = arith.constant 0 : index
    %c0_14 = arith.constant 0 : index
    %29 = vector.load %arg4[%c0_13, %c0_14] : memref<16x16xf32, #tpu.memory_space<vmem>>, vector<16x16xf32>
    %cst_15 = arith.constant dense<0.000000e+00> : vector<16x32xf32>
    %30 = tpu.matmul %29, %28, %cst_15 {dimension_numbers = #tpu.dot_dimension_numbers<[1], [0], [0], [1], [0, 0, 1, 1], [], []>} : vector<16x16xf32>, vector<16x32xf32>, vector<16x32xf32> -> vector<16x32xf32>
    %c0_16 = arith.constant 0 : index
    %c0_17 = arith.constant 0 : index
    %31 = vector.load %arg5[%c0_16, %c0_17] : memref<16x1xf32, #tpu.memory_space<vmem>>, vector<16x1xf32>
    %32 = vector.broadcast %31 : vector<16x1xf32> to vector<16x32xf32>
    %33 = arith.addf %30, %32 : vector<16x32xf32>
    %c0_18 = arith.constant 0 : index
    %c0_19 = arith.constant 0 : index
    %34 = vector.load %arg6[%c0_18, %c0_19] : memref<16x32xf32, #tpu.memory_space<vmem>>, vector<16x32xf32>
    %35 = arith.addf %33, %34 : vector<16x32xf32>
    %c0_20 = arith.constant 0 : index
    %c0_21 = arith.constant 0 : index
    %36 = vector.load %arg7[%c0_20, %c0_21] : memref<16x32xf32, #tpu.memory_space<vmem>>, vector<16x32xf32>
    tpu.vector_store %arg7[%c0_20, %c0_21], %35 {strides = array<i32>} : memref<16x32xf32, #tpu.memory_space<vmem>>, vector<16x32xf32>,
    return
  }
}

module attributes {stable_mosaic.version = 11 : i64} {
  func.func @kern(%arg0: memref<4x128x32xbf16, #tpu.memory_space<vmem>>, %arg1: memref<4x16x128xbf16, #tpu.memory_space<vmem>>, %arg2: memref<16x1xf32, #tpu.memory_space<vmem>>, %arg3: memref<16x1xf32, #tpu.memory_space<vmem>>, %arg4: memref<4x16x32xf32, #tpu.memory_space<vmem>>) attributes {dimension_semantics = [], scalar_prefetch = 0 : i64, scratch_operands = 0 : i64, tpu.core_type = #tpu.core_type<tc>} {
    %c0 = arith.constant 0 : index
    %c0_0 = arith.constant 0 : index
    %c0_1 = arith.constant 0 : index
    %0 = vector.load %arg1[%c0, %c0_0, %c0_1] : memref<4x16x128xbf16, #tpu.memory_space<vmem>>, vector<1x16x128xbf16>
    %1 = vector.shape_cast %0 : vector<1x16x128xbf16> to vector<16x128xbf16>
    %c0_2 = arith.constant 0 : index
    %c0_3 = arith.constant 0 : index
    %c0_4 = arith.constant 0 : index
    %2 = vector.load %arg0[%c0_2, %c0_3, %c0_4] : memref<4x128x32xbf16, #tpu.memory_space<vmem>>, vector<1x128x32xbf16>
    %3 = vector.shape_cast %2 : vector<1x128x32xbf16> to vector<128x32xbf16>
    %cst = arith.constant dense<0.000000e+00> : vector<16x32xf32>
    %4 = tpu.matmul %1, %3, %cst {dimension_numbers = #tpu.dot_dimension_numbers<[1], [0], [0], [1], [0, 0, 1, 1], [], []>} : vector<16x128xbf16>, vector<128x32xbf16>, vector<16x32xf32> -> vector<16x32xf32>
    %c1 = arith.constant 1 : index
    %c0_5 = arith.constant 0 : index
    %c0_6 = arith.constant 0 : index
    %5 = vector.load %arg1[%c1, %c0_5, %c0_6] : memref<4x16x128xbf16, #tpu.memory_space<vmem>>, vector<1x16x128xbf16>
    %6 = vector.shape_cast %5 : vector<1x16x128xbf16> to vector<16x128xbf16>
    %c1_7 = arith.constant 1 : index
    %c0_8 = arith.constant 0 : index
    %c0_9 = arith.constant 0 : index
    %7 = vector.load %arg0[%c1_7, %c0_8, %c0_9] : memref<4x128x32xbf16, #tpu.memory_space<vmem>>, vector<1x128x32xbf16>
    %8 = vector.shape_cast %7 : vector<1x128x32xbf16> to vector<128x32xbf16>
    %cst_10 = arith.constant dense<0.000000e+00> : vector<16x32xf32>
    %9 = tpu.matmul %6, %8, %cst_10 {dimension_numbers = #tpu.dot_dimension_numbers<[1], [0], [0], [1], [0, 0, 1, 1], [], []>} : vector<16x128xbf16>, vector<128x32xbf16>, vector<16x32xf32> -> vector<16x32xf32>
    %c2 = arith.constant 2 : index
    %c0_11 = arith.constant 0 : index
    %c0_12 = arith.constant 0 : index
    %10 = vector.load %arg1[%c2, %c0_11, %c0_12] : memref<4x16x128xbf16, #tpu.memory_space<vmem>>, vector<1x16x128xbf16>
    %11 = vector.shape_cast %10 : vector<1x16x128xbf16> to vector<16x128xbf16>
    %c2_13 = arith.constant 2 : index
    %c0_14 = arith.constant 0 : index
    %c0_15 = arith.constant 0 : index
    %12 = vector.load %arg0[%c2_13, %c0_14, %c0_15] : memref<4x128x32xbf16, #tpu.memory_space<vmem>>, vector<1x128x32xbf16>
    %13 = vector.shape_cast %12 : vector<1x128x32xbf16> to vector<128x32xbf16>
    %cst_16 = arith.constant dense<0.000000e+00> : vector<16x32xf32>
    %14 = tpu.matmul %11, %13, %cst_16 {dimension_numbers = #tpu.dot_dimension_numbers<[1], [0], [0], [1], [0, 0, 1, 1], [], []>} : vector<16x128xbf16>, vector<128x32xbf16>, vector<16x32xf32> -> vector<16x32xf32>
    %c3 = arith.constant 3 : index
    %c0_17 = arith.constant 0 : index
    %c0_18 = arith.constant 0 : index
    %15 = vector.load %arg1[%c3, %c0_17, %c0_18] : memref<4x16x128xbf16, #tpu.memory_space<vmem>>, vector<1x16x128xbf16>
    %16 = vector.shape_cast %15 : vector<1x16x128xbf16> to vector<16x128xbf16>
    %c3_19 = arith.constant 3 : index
    %c0_20 = arith.constant 0 : index
    %c0_21 = arith.constant 0 : index
    %17 = vector.load %arg0[%c3_19, %c0_20, %c0_21] : memref<4x128x32xbf16, #tpu.memory_space<vmem>>, vector<1x128x32xbf16>
    %18 = vector.shape_cast %17 : vector<1x128x32xbf16> to vector<128x32xbf16>
    %cst_22 = arith.constant dense<0.000000e+00> : vector<16x32xf32>
    %19 = tpu.matmul %16, %18, %cst_22 {dimension_numbers = #tpu.dot_dimension_numbers<[1], [0], [0], [1], [0, 0, 1, 1], [], []>} : vector<16x128xbf16>, vector<128x32xbf16>, vector<16x32xf32> -> vector<16x32xf32>
    %cst_23 = arith.constant dense<0.000000e+00> : vector<16xf32>
    %20 = vector.multi_reduction <add>, %4, %cst_23 [1] : vector<16x32xf32> to vector<16xf32>
    %21 = vector.shape_cast %20 : vector<16xf32> to vector<16x1xf32>
    %cst_24 = arith.constant 0.000000e+00 : f32
    %22 = vector.broadcast %cst_24 : f32 to vector<16x1xf32>
    %23 = arith.addf %22, %21 : vector<16x1xf32>
    %cst_25 = arith.constant dense<0.000000e+00> : vector<16xf32>
    %24 = vector.multi_reduction <add>, %9, %cst_25 [1] : vector<16x32xf32> to vector<16xf32>
    %25 = vector.shape_cast %24 : vector<16xf32> to vector<16x1xf32>
    %26 = arith.addf %23, %25 : vector<16x1xf32>
    %cst_26 = arith.constant dense<0.000000e+00> : vector<16xf32>
    %27 = vector.multi_reduction <add>, %14, %cst_26 [1] : vector<16x32xf32> to vector<16xf32>
    %28 = vector.shape_cast %27 : vector<16xf32> to vector<16x1xf32>
    %29 = arith.addf %26, %28 : vector<16x1xf32>
    %cst_27 = arith.constant dense<0.000000e+00> : vector<16xf32>
    %30 = vector.multi_reduction <add>, %19, %cst_27 [1] : vector<16x32xf32> to vector<16xf32>
    %31 = vector.shape_cast %30 : vector<16xf32> to vector<16x1xf32>
    %32 = arith.addf %29, %31 : vector<16x1xf32>
    %cst_28 = arith.constant 7.812500e-03 : f32
    %33 = vector.broadcast %cst_28 : f32 to vector<16x1xf32>
    %34 = arith.mulf %32, %33 : vector<16x1xf32>
    %35 = vector.broadcast %34 : vector<16x1xf32> to vector<16x32xf32>
    %36 = arith.subf %4, %35 : vector<16x32xf32>
    %37 = arith.mulf %36, %36 : vector<16x32xf32>
    %cst_29 = arith.constant dense<0.000000e+00> : vector<16xf32>
    %38 = vector.multi_reduction <add>, %37, %cst_29 [1] : vector<16x32xf32> to vector<16xf32>
    %39 = vector.shape_cast %38 : vector<16xf32> to vector<16x1xf32>
    %cst_30 = arith.constant 0.000000e+00 : f32
    %40 = vector.broadcast %cst_30 : f32 to vector<16x1xf32>
    %41 = arith.addf %40, %39 : vector<16x1xf32>
    %42 = vector.broadcast %34 : vector<16x1xf32> to vector<16x32xf32>
    %43 = arith.subf %9, %42 : vector<16x32xf32>
    %44 = arith.mulf %43, %43 : vector<16x32xf32>
    %cst_31 = arith.constant dense<0.000000e+00> : vector<16xf32>
    %45 = vector.multi_reduction <add>, %44, %cst_31 [1] : vector<16x32xf32> to vector<16xf32>
    %46 = vector.shape_cast %45 : vector<16xf32> to vector<16x1xf32>
    %47 = arith.addf %41, %46 : vector<16x1xf32>
    %48 = vector.broadcast %34 : vector<16x1xf32> to vector<16x32xf32>
    %49 = arith.subf %14, %48 : vector<16x32xf32>
    %50 = arith.mulf %49, %49 : vector<16x32xf32>
    %cst_32 = arith.constant dense<0.000000e+00> : vector<16xf32>
    %51 = vector.multi_reduction <add>, %50, %cst_32 [1] : vector<16x32xf32> to vector<16xf32>
    %52 = vector.shape_cast %51 : vector<16xf32> to vector<16x1xf32>
    %53 = arith.addf %47, %52 : vector<16x1xf32>
    %54 = vector.broadcast %34 : vector<16x1xf32> to vector<16x32xf32>
    %55 = arith.subf %19, %54 : vector<16x32xf32>
    %56 = arith.mulf %55, %55 : vector<16x32xf32>
    %cst_33 = arith.constant dense<0.000000e+00> : vector<16xf32>
    %57 = vector.multi_reduction <add>, %56, %cst_33 [1] : vector<16x32xf32> to vector<16xf32>
    %58 = vector.shape_cast %57 : vector<16xf32> to vector<16x1xf32>
    %59 = arith.addf %53, %58 : vector<16x1xf32>
    %cst_34 = arith.constant 7.812500e-03 : f32
    %60 = vector.broadcast %cst_34 : f32 to vector<16x1xf32>
    %61 = arith.mulf %59, %60 : vector<16x1xf32>
    %c0_35 = arith.constant 0 : index
    %c0_36 = arith.constant 0 : index
    %62 = vector.load %arg2[%c0_35, %c0_36] : memref<16x1xf32, #tpu.memory_space<vmem>>, vector<16x1xf32>
    %cst_37 = arith.constant 9.99999974E-6 : f32
    %63 = vector.broadcast %cst_37 : f32 to vector<16x1xf32>
    %64 = arith.addf %61, %63 : vector<16x1xf32>
    %65 = math.rsqrt %64 : vector<16x1xf32>
    %66 = arith.mulf %62, %65 : vector<16x1xf32>
    %c0_38 = arith.constant 0 : index
    %c0_39 = arith.constant 0 : index
    %67 = vector.load %arg3[%c0_38, %c0_39] : memref<16x1xf32, #tpu.memory_space<vmem>>, vector<16x1xf32>
    %68 = arith.mulf %34, %66 : vector<16x1xf32>
    %69 = arith.subf %67, %68 : vector<16x1xf32>
    %70 = vector.broadcast %66 : vector<16x1xf32> to vector<16x32xf32>
    %71 = arith.mulf %4, %70 : vector<16x32xf32>
    %72 = vector.broadcast %69 : vector<16x1xf32> to vector<16x32xf32>
    %73 = arith.addf %71, %72 : vector<16x32xf32>
    %74 = vector.broadcast %66 : vector<16x1xf32> to vector<16x32xf32>
    %75 = arith.mulf %9, %74 : vector<16x32xf32>
    %76 = vector.broadcast %69 : vector<16x1xf32> to vector<16x32xf32>
    %77 = arith.addf %75, %76 : vector<16x32xf32>
    %78 = vector.broadcast %66 : vector<16x1xf32> to vector<16x32xf32>
    %79 = arith.mulf %14, %78 : vector<16x32xf32>
    %80 = vector.broadcast %69 : vector<16x1xf32> to vector<16x32xf32>
    %81 = arith.addf %79, %80 : vector<16x32xf32>
    %82 = vector.broadcast %66 : vector<16x1xf32> to vector<16x32xf32>
    %83 = arith.mulf %19, %82 : vector<16x32xf32>
    %84 = vector.broadcast %69 : vector<16x1xf32> to vector<16x32xf32>
    %85 = arith.addf %83, %84 : vector<16x32xf32>
    %cst_40 = arith.constant 0.000000e+00 : f32
    %86 = vector.broadcast %cst_40 : f32 to vector<16x32xf32>
    %87 = arith.maximumf %73, %86 : vector<16x32xf32>
    %cst_41 = arith.constant 0.000000e+00 : f32
    %88 = vector.broadcast %cst_41 : f32 to vector<16x32xf32>
    %89 = arith.maximumf %77, %88 : vector<16x32xf32>
    %cst_42 = arith.constant 0.000000e+00 : f32
    %90 = vector.broadcast %cst_42 : f32 to vector<16x32xf32>
    %91 = arith.maximumf %81, %90 : vector<16x32xf32>
    %cst_43 = arith.constant 0.000000e+00 : f32
    %92 = vector.broadcast %cst_43 : f32 to vector<16x32xf32>
    %93 = arith.maximumf %85, %92 : vector<16x32xf32>
    %c0_44 = arith.constant 0 : index
    %c0_45 = arith.constant 0 : index
    %c0_46 = arith.constant 0 : index
    %94 = vector.load %arg4[%c0_44, %c0_45, %c0_46] : memref<4x16x32xf32, #tpu.memory_space<vmem>>, vector<1x16x32xf32>
    %95 = vector.shape_cast %94 : vector<1x16x32xf32> to vector<16x32xf32>
    %96 = vector.shape_cast %87 : vector<16x32xf32> to vector<1x16x32xf32>
    tpu.vector_store %arg4[%c0_44, %c0_45, %c0_46], %96 {strides = array<i32>} : memref<4x16x32xf32, #tpu.memory_space<vmem>>, vector<1x16x32xf32>,
    %c1_47 = arith.constant 1 : index
    %c0_48 = arith.constant 0 : index
    %c0_49 = arith.constant 0 : index
    %97 = vector.load %arg4[%c1_47, %c0_48, %c0_49] : memref<4x16x32xf32, #tpu.memory_space<vmem>>, vector<1x16x32xf32>
    %98 = vector.shape_cast %97 : vector<1x16x32xf32> to vector<16x32xf32>
    %99 = vector.shape_cast %89 : vector<16x32xf32> to vector<1x16x32xf32>
    tpu.vector_store %arg4[%c1_47, %c0_48, %c0_49], %99 {strides = array<i32>} : memref<4x16x32xf32, #tpu.memory_space<vmem>>, vector<1x16x32xf32>,
    %c2_50 = arith.constant 2 : index
    %c0_51 = arith.constant 0 : index
    %c0_52 = arith.constant 0 : index
    %100 = vector.load %arg4[%c2_50, %c0_51, %c0_52] : memref<4x16x32xf32, #tpu.memory_space<vmem>>, vector<1x16x32xf32>
    %101 = vector.shape_cast %100 : vector<1x16x32xf32> to vector<16x32xf32>
    %102 = vector.shape_cast %91 : vector<16x32xf32> to vector<1x16x32xf32>
    tpu.vector_store %arg4[%c2_50, %c0_51, %c0_52], %102 {strides = array<i32>} : memref<4x16x32xf32, #tpu.memory_space<vmem>>, vector<1x16x32xf32>,
    %c3_53 = arith.constant 3 : index
    %c0_54 = arith.constant 0 : index
    %c0_55 = arith.constant 0 : index
    %103 = vector.load %arg4[%c3_53, %c0_54, %c0_55] : memref<4x16x32xf32, #tpu.memory_space<vmem>>, vector<1x16x32xf32>
    %104 = vector.shape_cast %103 : vector<1x16x32xf32> to vector<16x32xf32>
    %105 = vector.shape_cast %93 : vector<16x32xf32> to vector<1x16x32xf32>
    tpu.vector_store %arg4[%c3_53, %c0_54, %c0_55], %105 {strides = array<i32>} : memref<4x16x32xf32, #tpu.memory_space<vmem>>, vector<1x16x32xf32>,
    return
  }
}

module attributes {stable_mosaic.version = 11 : i64} {
  func.func @kern(%arg0: memref<4x64x128xbf16, #tpu.memory_space<vmem>>, %arg1: memref<4x3x64xbf16, #tpu.memory_space<vmem>>, %arg2: memref<4x3x128xf32, #tpu.memory_space<vmem>>) attributes {dimension_semantics = [], scalar_prefetch = 0 : i64, scratch_operands = 0 : i64, tpu.core_type = #tpu.core_type<tc>} {
    %c0 = arith.constant 0 : index
    %c0_0 = arith.constant 0 : index
    %c0_1 = arith.constant 0 : index
    %0 = vector.load %arg1[%c0, %c0_0, %c0_1] : memref<4x3x64xbf16, #tpu.memory_space<vmem>>, vector<1x3x64xbf16>
    %1 = vector.shape_cast %0 : vector<1x3x64xbf16> to vector<3x64xbf16>
    %c0_2 = arith.constant 0 : index
    %c0_3 = arith.constant 0 : index
    %c0_4 = arith.constant 0 : index
    %2 = vector.load %arg0[%c0_2, %c0_3, %c0_4] : memref<4x64x128xbf16, #tpu.memory_space<vmem>>, vector<1x64x128xbf16>
    %3 = vector.shape_cast %2 : vector<1x64x128xbf16> to vector<64x128xbf16>
    %cst = arith.constant dense<0.000000e+00> : vector<3x128xf32>
    %4 = tpu.matmul %1, %3, %cst {dimension_numbers = #tpu.dot_dimension_numbers<[1], [0], [0], [1], [0, 0, 1, 1], [], []>} : vector<3x64xbf16>, vector<64x128xbf16>, vector<3x128xf32> -> vector<3x128xf32>
    %c1 = arith.constant 1 : index
    %c0_5 = arith.constant 0 : index
    %c0_6 = arith.constant 0 : index
    %5 = vector.load %arg1[%c1, %c0_5, %c0_6] : memref<4x3x64xbf16, #tpu.memory_space<vmem>>, vector<1x3x64xbf16>
    %6 = vector.shape_cast %5 : vector<1x3x64xbf16> to vector<3x64xbf16>
    %c1_7 = arith.constant 1 : index
    %c0_8 = arith.constant 0 : index
    %c0_9 = arith.constant 0 : index
    %7 = vector.load %arg0[%c1_7, %c0_8, %c0_9] : memref<4x64x128xbf16, #tpu.memory_space<vmem>>, vector<1x64x128xbf16>
    %8 = vector.shape_cast %7 : vector<1x64x128xbf16> to vector<64x128xbf16>
    %cst_10 = arith.constant dense<0.000000e+00> : vector<3x128xf32>
    %9 = tpu.matmul %6, %8, %cst_10 {dimension_numbers = #tpu.dot_dimension_numbers<[1], [0], [0], [1], [0, 0, 1, 1], [], []>} : vector<3x64xbf16>, vector<64x128xbf16>, vector<3x128xf32> -> vector<3x128xf32>
    %c2 = arith.constant 2 : index
    %c0_11 = arith.constant 0 : index
    %c0_12 = arith.constant 0 : index
    %10 = vector.load %arg1[%c2, %c0_11, %c0_12] : memref<4x3x64xbf16, #tpu.memory_space<vmem>>, vector<1x3x64xbf16>
    %11 = vector.shape_cast %10 : vector<1x3x64xbf16> to vector<3x64xbf16>
    %c2_13 = arith.constant 2 : index
    %c0_14 = arith.constant 0 : index
    %c0_15 = arith.constant 0 : index
    %12 = vector.load %arg0[%c2_13, %c0_14, %c0_15] : memref<4x64x128xbf16, #tpu.memory_space<vmem>>, vector<1x64x128xbf16>
    %13 = vector.shape_cast %12 : vector<1x64x128xbf16> to vector<64x128xbf16>
    %cst_16 = arith.constant dense<0.000000e+00> : vector<3x128xf32>
    %14 = tpu.matmul %11, %13, %cst_16 {dimension_numbers = #tpu.dot_dimension_numbers<[1], [0], [0], [1], [0, 0, 1, 1], [], []>} : vector<3x64xbf16>, vector<64x128xbf16>, vector<3x128xf32> -> vector<3x128xf32>
    %c3 = arith.constant 3 : index
    %c0_17 = arith.constant 0 : index
    %c0_18 = arith.constant 0 : index
    %15 = vector.load %arg1[%c3, %c0_17, %c0_18] : memref<4x3x64xbf16, #tpu.memory_space<vmem>>, vector<1x3x64xbf16>
    %16 = vector.shape_cast %15 : vector<1x3x64xbf16> to vector<3x64xbf16>
    %c3_19 = arith.constant 3 : index
    %c0_20 = arith.constant 0 : index
    %c0_21 = arith.constant 0 : index
    %17 = vector.load %arg0[%c3_19, %c0_20, %c0_21] : memref<4x64x128xbf16, #tpu.memory_space<vmem>>, vector<1x64x128xbf16>
    %18 = vector.shape_cast %17 : vector<1x64x128xbf16> to vector<64x128xbf16>
    %cst_22 = arith.constant dense<0.000000e+00> : vector<3x128xf32>
    %19 = tpu.matmul %16, %18, %cst_22 {dimension_numbers = #tpu.dot_dimension_numbers<[1], [0], [0], [1], [0, 0, 1, 1], [], []>} : vector<3x64xbf16>, vector<64x128xbf16>, vector<3x128xf32> -> vector<3x128xf32>
    %c0_23 = arith.constant 0 : index
    %c0_24 = arith.constant 0 : index
    %c0_25 = arith.constant 0 : index
    %20 = vector.load %arg2[%c0_23, %c0_24, %c0_25] : memref<4x3x128xf32, #tpu.memory_space<vmem>>, vector<1x3x128xf32>
    %21 = vector.shape_cast %20 : vector<1x3x128xf32> to vector<3x128xf32>
    %22 = vector.shape_cast %4 : vector<3x128xf32> to vector<1x3x128xf32>
    tpu.vector_store %arg2[%c0_23, %c0_24, %c0_25], %22 {strides = array<i32>} : memref<4x3x128xf32, #tpu.memory_space<vmem>>, vector<1x3x128xf32>,
    %c1_26 = arith.constant 1 : index
    %c0_27 = arith.constant 0 : index
    %c0_28 = arith.constant 0 : index
    %23 = vector.load %arg2[%c1_26, %c0_27, %c0_28] : memref<4x3x128xf32, #tpu.memory_space<vmem>>, vector<1x3x128xf32>
    %24 = vector.shape_cast %23 : vector<1x3x128xf32> to vector<3x128xf32>
    %25 = vector.shape_cast %9 : vector<3x128xf32> to vector<1x3x128xf32>
    tpu.vector_store %arg2[%c1_26, %c0_27, %c0_28], %25 {strides = array<i32>} : memref<4x3x128xf32, #tpu.memory_space<vmem>>, vector<1x3x128xf32>,
    %c2_29 = arith.constant 2 : index
    %c0_30 = arith.constant 0 : index
    %c0_31 = arith.constant 0 : index
    %26 = vector.load %arg2[%c2_29, %c0_30, %c0_31] : memref<4x3x128xf32, #tpu.memory_space<vmem>>, vector<1x3x128xf32>
    %27 = vector.shape_cast %26 : vector<1x3x128xf32> to vector<3x128xf32>
    %28 = vector.shape_cast %14 : vector<3x128xf32> to vector<1x3x128xf32>
    tpu.vector_store %arg2[%c2_29, %c0_30, %c0_31], %28 {strides = array<i32>} : memref<4x3x128xf32, #tpu.memory_space<vmem>>, vector<1x3x128xf32>,
    %c3_32 = arith.constant 3 : index
    %c0_33 = arith.constant 0 : index
    %c0_34 = arith.constant 0 : index
    %29 = vector.load %arg2[%c3_32, %c0_33, %c0_34] : memref<4x3x128xf32, #tpu.memory_space<vmem>>, vector<1x3x128xf32>
    %30 = vector.shape_cast %29 : vector<1x3x128xf32> to vector<3x128xf32>
    %31 = vector.shape_cast %19 : vector<3x128xf32> to vector<1x3x128xf32>
    tpu.vector_store %arg2[%c3_32, %c0_33, %c0_34], %31 {strides = array<i32>} : memref<4x3x128xf32, #tpu.memory_space<vmem>>, vector<1x3x128xf32>,
    return
  }
}

</mosaic_0001>

<llo_original>
// kernel: _lambda_.8
$region0: #{_lambda_.8}
  #allocation0 [shape = 'u32[]', space=smem, size = 0x4, offset = 0x4, fixed_abs, tag = 'smem constant byte address 0x4 - core index']
  #allocation1 [shape = 'u32[144,128]{1,0:T(1,128)}', space=vmem, size = 0x12000, scoped, tag = 'internal scratch']
  %s0 = inlined_call_operand.vmem [shape: bf16[48,128], index: 0, kind: input, shape index: {}]
  %s1 = inlined_call_operand.vmem [shape: bf16[8,48], index: 1, kind: input, shape index: {}]
  %s2 = inlined_call_operand.vmem [shape: f32[8,1], index: 2, kind: input, shape index: {}]
  %s3 = inlined_call_operand.vmem [shape: f32[8,1], index: 3, kind: input, shape index: {}]
  %s4 = inlined_call_operand.vmem [shape: f32[8,128], index: 4, kind: output, shape index: {}]
  %s5 = sld [smem:[#allocation0]]
  $region26: #{_lambda_.8} parent=0
    _
  %s7 = ssub.s32 1, %s5
  %s8 = scalar_select 0, %s7, %s5
  // Predicated region
  $region2: #{_lambda_.8} parent=0 // pred_check
    _
  $region3: #{_lambda_.8} parent=0 // pred_check_branch
    %10 = sbr.rel (0) target = $region5
  $region4: #{_lambda_.8} parent=0 // pred_region
    _
  $region5: #{_lambda_.8} parent=0 // pred_fallthru
    _
  // Predicated region
  $region6: #{_lambda_.8} parent=0 // pred_check
    _
  $region7: #{_lambda_.8} parent=0 // pred_check_branch
    %12 = sbr.rel (0) target = $region9
  $region8: #{_lambda_.8} parent=0 // pred_region
    _
  $region9: #{_lambda_.8} parent=0 // pred_fallthru
    _
  // Predicated region
  $region10: #{_lambda_.8} parent=0 // pred_check
    _
  $region11: #{_lambda_.8} parent=0 // pred_check_branch
    %14 = sbr.rel (0) target = $region13
  $region12: #{_lambda_.8} parent=0 // pred_region
    _
  $region13: #{_lambda_.8} parent=0 // pred_fallthru
    _
  // Predicated region
  $region14: #{_lambda_.8} parent=0 // pred_check
    _
  $region15: #{_lambda_.8} parent=0 // pred_check_branch
    %16 = sbr.rel (0) target = $region17
  $region16: #{_lambda_.8} parent=0 // pred_region
    _
  $region17: #{_lambda_.8} parent=0 // pred_fallthru
    _
  %v18 = vld [vmem:[%s1] sm:$0xf]
  %v19 = vld [vmem:[%s0] sm:$0xf]
  %v20 = vld [vmem:[%s0 + $0x4] sm:$0xf]
  %v21 = vld [vmem:[%s0 + $0x8] sm:$0xf]
  %v22 = vld [vmem:[%s0 + $0xc] sm:$0xf]
  %v23 = vld [vmem:[%s0 + $0x10] sm:$0xf]
  %v24 = vld [vmem:[%s0 + $0x14] sm:$0xf]
  %v31 = vunpack.c.l.b16 %v19
  %v32 = vunpack.c.l.b16 %v20
  %v33 = vunpack.c.l.b16 %v21
  %v34 = vunpack.c.l.b16 %v22
  %v35 = vunpack.c.l.b16 %v23
  %v36 = vunpack.c.l.b16 %v24
  %v37 = vpack.c.b16 %v32, %v31
  %v38 = vpack.c.b16 %v34, %v33
  %v39 = vpack.c.b16 %v36, %v35
  %vm43 = vcmask 392192
  %v45 = vsel %vm43, %v18, 0
  %47 = vmatprep.subr.bf16.mxu0 0
  %48 = vmatpush1.bf16.msra.mxu0 %v37
  %49 = vmatprep.subr.bf16.mxu0 0
  %50 = vmatpush1.bf16.msra.mxu0 %v38
  %51 = vmatprep.subr.bf16.mxu0 0
  %52 = vmatpush1.bf16.msra.mxu0 %v39
  %53 = vmatprep.subr.bf16.mxu0 0
  %54 = vmatpush1.bf16.msra.mxu0 0
  %55 = vmatprep.subr.bf16.mxu0 0
  %56 = vmatpush1.bf16.msra.mxu0 0
  %57 = vmatprep.subr.bf16.mxu0 0
  %58 = vmatpush1.bf16.msra.mxu0 0
  %59 = vmatprep.subr.bf16.mxu0 0
  %60 = vmatpush1.bf16.msra.mxu0 0
  %61 = vmatprep.subr.bf16.mxu0 0
  %62 = vmatpush1.bf16.msra.mxu0 0
  %63 = vmatprep.subr.bf16.mxu0 0
  %64 = vmatpush1.bf16.msra.mxu0 0
  %65 = vmatprep.subr.bf16.mxu0 0
  %66 = vmatpush1.bf16.msra.mxu0 0
  %67 = vmatprep.subr.bf16.mxu0 0
  %68 = vmatpush1.bf16.msra.mxu0 0
  %69 = vmatprep.subr.bf16.mxu0 0
  %70 = vmatpush1.bf16.msra.mxu0 0
  %71 = vmatprep.subr.bf16.mxu0 0
  %72 = vmatpush1.bf16.msra.mxu0 0
  %73 = vmatprep.subr.bf16.mxu0 0
  %74 = vmatpush1.bf16.msra.mxu0 0
  %75 = vmatprep.subr.bf16.mxu0 0
  %76 = vmatpush1.bf16.msra.mxu0 0
  %77 = vmatprep.subr.bf16.mxu0 0
  %78 = vmatpush1.bf16.msra.mxu0 0
  %79 = vmatprep.mubr.bf16.mxu0 0
  %80 = vmatmul.mubr.bf16.gmra.mrb[0].mxu0 %v45
  %v81 = vpop.f32.mrb[0].mxu0
  %v82 = vadd.f32 0.0, %v81
  %v83 = vpop.f32.mrb[0].mxu0
  %v84 = vpop.f32.mrb[0].mxu0
  %v85 = vpop.f32.mrb[0].mxu0
  %86 = vdwg.mxu0
  %87 = vadd.xlane.f32.xlu0 %v82
  %v88 = vpop.xlane.xlu0 %87
  %v89 = vrcp.pop 128.0
  %v90 = vmul.f32 %v88, %v89
  %v91 = vsub.f32 %v82, %v90
  %v92 = vmul.f32 %v91, %v91
  %93 = vadd.xlane.f32.xlu0 %v92
  %v94 = vpop.xlane.xlu0 %93
  %v95 = vmul.f32 %v94, %v89
  %v96 = vadd.f32 %v95, 1e-05
  %v97 = vrsqrt.pop %v96
  %v98 = vmul.f32 %v91, %v97
  %v99 = vld [vmem:[%s2] sm:$0xff]
  %101 = vset.pattern.permute.xlu0 0
  %102 = vperm.xlu0 %101, %v99
  %v103 = vpop.permute.xlu0 %102
  %v105 = vmul.f32 %v98, %v103
  %v106 = vld [vmem:[%s3] sm:$0xff]
  %108 = vset.pattern.permute.xlu0 0
  %109 = vperm.xlu0 %108, %v106
  %v110 = vpop.permute.xlu0 %109
  %v112 = vadd.f32 %v105, %v110
  %v113 = vmax.f32 %v112, 0.0
  %114 = vst [vmem:[%s4] sm:$0xff] %v113
  // Predicated region
  $region18: #{_lambda_.8} parent=0 // pred_check
    _
  $region19: #{_lambda_.8} parent=0 // pred_check_branch
    %116 = sbr.rel (0) target = $region21
  $region20: #{_lambda_.8} parent=0 // pred_region
    _
  $region21: #{_lambda_.8} parent=0 // pred_fallthru
    _
  // Predicated region
  $region22: #{_lambda_.8} parent=0 // pred_check
    _
  $region23: #{_lambda_.8} parent=0 // pred_check_branch
    %118 = sbr.rel (0) target = $region25
  $region24: #{_lambda_.8} parent=0 // pred_region
    _
  $region25: #{_lambda_.8} parent=0 // pred_fallthru
    _

// kernel: _lambda_.9
$region0: #{_lambda_.9}
  #allocation0 [shape = 'u32[]', space=smem, size = 0x4, offset = 0x4, fixed_abs, tag = 'smem constant byte address 0x4 - core index']
  #allocation1 [shape = 'u32[144,128]{1,0:T(1,128)}', space=vmem, size = 0x12000, scoped, tag = 'internal scratch']
  %s0 = inlined_call_operand.vmem [shape: bf16[128,32], index: 0, kind: input, shape index: {}]
  %s1 = inlined_call_operand.vmem [shape: bf16[16,128], index: 1, kind: input, shape index: {}]
  %s2 = inlined_call_operand.vmem [shape: f32[16,1], index: 2, kind: input, shape index: {}]
  %s3 = inlined_call_operand.vmem [shape: f32[16,1], index: 3, kind: input, shape index: {}]
  %s4 = inlined_call_operand.vmem [shape: f32[16,32], index: 4, kind: output, shape index: {}]
  %s5 = sld [smem:[#allocation0]]
  $region26: #{_lambda_.9} parent=0
    _
  %s7 = ssub.s32 1, %s5
  %s8 = scalar_select 0, %s7, %s5
  // Predicated region
  $region2: #{_lambda_.9} parent=0 // pred_check
    _
  $region3: #{_lambda_.9} parent=0 // pred_check_branch
    %10 = sbr.rel (0) target = $region5
  $region4: #{_lambda_.9} parent=0 // pred_region
    _
  $region5: #{_lambda_.9} parent=0 // pred_fallthru
    _
  // Predicated region
  $region6: #{_lambda_.9} parent=0 // pred_check
    _
  $region7: #{_lambda_.9} parent=0 // pred_check_branch
    %12 = sbr.rel (0) target = $region9
  $region8: #{_lambda_.9} parent=0 // pred_region
    _
  $region9: #{_lambda_.9} parent=0 // pred_fallthru
    _
  // Predicated region
  $region10: #{_lambda_.9} parent=0 // pred_check
    _
  $region11: #{_lambda_.9} parent=0 // pred_check_branch
    %14 = sbr.rel (0) target = $region13
  $region12: #{_lambda_.9} parent=0 // pred_region
    _
  $region13: #{_lambda_.9} parent=0 // pred_fallthru
    _
  // Predicated region
  $region14: #{_lambda_.9} parent=0 // pred_check
    _
  $region15: #{_lambda_.9} parent=0 // pred_check_branch
    %16 = sbr.rel (0) target = $region17
  $region16: #{_lambda_.9} parent=0 // pred_region
    _
  $region17: #{_lambda_.9} parent=0 // pred_fallthru
    _
  %v18 = vld [vmem:[%s1] sm:$0xf]
  %v19 = vld [vmem:[%s1 + $0x4] sm:$0xf]
  %v20 = vld [vmem:[%s0] sm:$0xf]
  %v21 = vld [vmem:[%s0 + $0x4] sm:$0xf]
  %v22 = vld [vmem:[%s0 + $0x8] sm:$0xf]
  %v23 = vld [vmem:[%s0 + $0xc] sm:$0xf]
  %v24 = vld [vmem:[%s0 + $0x10] sm:$0xf]
  %v25 = vld [vmem:[%s0 + $0x14] sm:$0xf]
  %v26 = vld [vmem:[%s0 + $0x18] sm:$0xf]
  %v27 = vld [vmem:[%s0 + $0x1c] sm:$0xf]
  %v28 = vld [vmem:[%s0 + $0x20] sm:$0xf]
  %v29 = vld [vmem:[%s0 + $0x24] sm:$0xf]
  %v30 = vld [vmem:[%s0 + $0x28] sm:$0xf]
  %v31 = vld [vmem:[%s0 + $0x2c] sm:$0xf]
  %v32 = vld [vmem:[%s0 + $0x30] sm:$0xf]
  %v33 = vld [vmem:[%s0 + $0x34] sm:$0xf]
  %v34 = vld [vmem:[%s0 + $0x38] sm:$0xf]
  %v35 = vld [vmem:[%s0 + $0x3c] sm:$0xf]
  %v38 = vunpack.c.l.b16 %v18
  %v39 = vunpack.c.l.b16 %v19
  %v40 = vpack.c.b16 %v39, %v38
  %v58 = vunpack.c.l.b16 %v20
  %v59 = vunpack.c.l.b16 %v21
  %v60 = vunpack.c.l.b16 %v22
  %v61 = vunpack.c.l.b16 %v23
  %v62 = vunpack.c.l.b16 %v24
  %v63 = vunpack.c.l.b16 %v25
  %v64 = vunpack.c.l.b16 %v26
  %v65 = vunpack.c.l.b16 %v27
  %v66 = vunpack.c.l.b16 %v28
  %v67 = vunpack.c.l.b16 %v29
  %v68 = vunpack.c.l.b16 %v30
  %v69 = vunpack.c.l.b16 %v31
  %v70 = vunpack.c.l.b16 %v32
  %v71 = vunpack.c.l.b16 %v33
  %v72 = vunpack.c.l.b16 %v34
  %v73 = vunpack.c.l.b16 %v35
  %v74 = vpack.c.b16 %v59, %v58
  %v75 = vpack.c.b16 %v61, %v60
  %v76 = vpack.c.b16 %v63, %v62
  %v77 = vpack.c.b16 %v65, %v64
  %v78 = vpack.c.b16 %v67, %v66
  %v79 = vpack.c.b16 %v69, %v68
  %v80 = vpack.c.b16 %v71, %v70
  %v81 = vpack.c.b16 %v73, %v72
  %90 = vmatprep.subr.bf16.mxu0 0
  %91 = vmatpush1.bf16.msra.mxu0 %v74
  %92 = vmatprep.subr.bf16.mxu0 0
  %93 = vmatpush1.bf16.msra.mxu0 %v75
  %94 = vmatprep.subr.bf16.mxu0 0
  %95 = vmatpush1.bf16.msra.mxu0 %v76
  %96 = vmatprep.subr.bf16.mxu0 0
  %97 = vmatpush1.bf16.msra.mxu0 %v77
  %98 = vmatprep.subr.bf16.mxu0 0
  %99 = vmatpush1.bf16.msra.mxu0 %v78
  %100 = vmatprep.subr.bf16.mxu0 0
  %101 = vmatpush1.bf16.msra.mxu0 %v79
  %102 = vmatprep.subr.bf16.mxu0 0
  %103 = vmatpush1.bf16.msra.mxu0 %v80
  %104 = vmatprep.subr.bf16.mxu0 0
  %105 = vmatpush1.bf16.msra.mxu0 %v81
  %106 = vmatprep.subr.bf16.mxu0 0
  %107 = vmatpush1.bf16.msra.mxu0 0
  %108 = vmatprep.subr.bf16.mxu0 0
  %109 = vmatpush1.bf16.msra.mxu0 0
  %110 = vmatprep.subr.bf16.mxu0 0
  %111 = vmatpush1.bf16.msra.mxu0 0
  %112 = vmatprep.subr.bf16.mxu0 0
  %113 = vmatpush1.bf16.msra.mxu0 0
  %114 = vmatprep.subr.bf16.mxu0 0
  %115 = vmatpush1.bf16.msra.mxu0 0
  %116 = vmatprep.subr.bf16.mxu0 0
  %117 = vmatpush1.bf16.msra.mxu0 0
  %118 = vmatprep.subr.bf16.mxu0 0
  %119 = vmatpush1.bf16.msra.mxu0 0
  %120 = vmatprep.subr.bf16.mxu0 0
  %121 = vmatpush1.bf16.msra.mxu0 0
  %122 = vmatprep.mubr.bf16.mxu0 0
  %123 = vmatmul.mubr.bf16.gmra.mrb[0].mxu0 %v40
  %v124 = vpop.f32.mrb[0].mxu0
  %v125 = vadd.f32 0.0, %v124
  %v126 = vpop.f32.mrb[0].mxu0
  %v127 = vpop.f32.mrb[0].mxu0
  %v128 = vadd.f32 0.0, %v127
  %v129 = vpop.f32.mrb[0].mxu0
  %130 = vdwg.mxu0
  %vm131 = vcmask 261120
  %v132 = vsel %vm131, %v125, 0.0
  %133 = vadd.xlane.f32.xlu0 %v132
  %v134 = vpop.xlane.xlu0 %133
  %v135 = vsel %vm131, %v128, 0.0
  %136 = vadd.xlane.f32.xlu0 %v135
  %v137 = vpop.xlane.xlu0 %136
  %v138 = vrcp.pop 32.0
  %v139 = vmul.f32 %v134, %v138
  %v140 = vmul.f32 %v137, %v138
  %v141 = vsub.f32 %v125, %v139
  %v142 = vsub.f32 %v128, %v140
  %v143 = vmul.f32 %v141, %v141
  %v144 = vmul.f32 %v142, %v142
  %v145 = vsel %vm131, %v143, 0.0
  %146 = vadd.xlane.f32.xlu0 %v145
  %v147 = vpop.xlane.xlu0 %146
  %v148 = vsel %vm131, %v144, 0.0
  %149 = vadd.xlane.f32.xlu0 %v148
  %v150 = vpop.xlane.xlu0 %149
  %v151 = vmul.f32 %v147, %v138
  %v152 = vmul.f32 %v150, %v138
  %v153 = vadd.f32 %v151, 1e-05
  %v154 = vadd.f32 %v152, 1e-05
  %v155 = vrsqrt.pop %v153
  %v156 = vrsqrt.pop %v154
  %v157 = vmul.f32 %v141, %v155
  %v158 = vmul.f32 %v142, %v156
  %v159 = vld [vmem:[%s2] sm:$0xff]
  %v160 = vld [vmem:[%s2 + $0x8] sm:$0xff]
  %162 = vset.pattern.permute.xlu0 0
  %163 = vperm.xlu0 %162, %v159
  %v164 = vpop.permute.xlu0 %163
  %167 = vset.pattern.permute.xlu0 0
  %168 = vperm.xlu0 %167, %v160
  %v169 = vpop.permute.xlu0 %168
  %v171 = vmul.f32 %v157, %v164
  %v172 = vmul.f32 %v158, %v169
  %v173 = vld [vmem:[%s3] sm:$0xff]
  %v174 = vld [vmem:[%s3 + $0x8] sm:$0xff]
  %176 = vset.pattern.permute.xlu0 0
  %177 = vperm.xlu0 %176, %v173
  %v178 = vpop.permute.xlu0 %177
  %181 = vset.pattern.permute.xlu0 0
  %182 = vperm.xlu0 %181, %v174
  %v183 = vpop.permute.xlu0 %182
  %v185 = vadd.f32 %v171, %v178
  %v186 = vadd.f32 %v172, %v183
  %v187 = vmax.f32 %v185, 0.0
  %v188 = vmax.f32 %v186, 0.0
  %189 = vst.msk [vmem:[%s4] sm:$0xff] %vm131, %v187
  %190 = vst.msk [vmem:[%s4 + $0x8] sm:$0xff] %vm131, %v188
  // Predicated region
  $region18: #{_lambda_.9} parent=0 // pred_check
    _
  $region19: #{_lambda_.9} parent=0 // pred_check_branch
    %192 = sbr.rel (0) target = $region21
  $region20: #{_lambda_.9} parent=0 // pred_region
    _
  $region21: #{_lambda_.9} parent=0 // pred_fallthru
    _
  // Predicated region
  $region22: #{_lambda_.9} parent=0 // pred_check
    _
  $region23: #{_lambda_.9} parent=0 // pred_check_branch
    %194 = sbr.rel (0) target = $region25
  $region24: #{_lambda_.9} parent=0 // pred_region
    _
  $region25: #{_lambda_.9} parent=0 // pred_fallthru
    _

// kernel: _lambda_.10
$region0: #{_lambda_.10}
  #allocation0 [shape = 'u32[]', space=smem, size = 0x4, offset = 0x4, fixed_abs, tag = 'smem constant byte address 0x4 - core index']
  #allocation1 [shape = 'u32[144,128]{1,0:T(1,128)}', space=vmem, size = 0x12000, scoped, tag = 'internal scratch']
  %s0 = inlined_call_operand.vmem [shape: bf16[144,32], index: 0, kind: input, shape index: {}]
  %s1 = inlined_call_operand.vmem [shape: bf16[16,144], index: 1, kind: input, shape index: {}]
  %s2 = inlined_call_operand.vmem [shape: f32[16,1], index: 2, kind: input, shape index: {}]
  %s3 = inlined_call_operand.vmem [shape: f32[16,1], index: 3, kind: input, shape index: {}]
  %s4 = inlined_call_operand.vmem [shape: f32[16,16], index: 4, kind: input, shape index: {}]
  %s5 = inlined_call_operand.vmem [shape: f32[16,32], index: 5, kind: input, shape index: {}]
  %s6 = inlined_call_operand.vmem [shape: f32[16,1], index: 6, kind: input, shape index: {}]
  %s7 = inlined_call_operand.vmem [shape: f32[16,1], index: 7, kind: input, shape index: {}]
  %s8 = inlined_call_operand.vmem [shape: f32[16,32], index: 8, kind: output, shape index: {}]
  %s9 = sld [smem:[#allocation0]]
  $region42: #{_lambda_.10} parent=0
    _
  %s11 = ssub.s32 1, %s9
  %s12 = scalar_select 0, %s11, %s9
  // Predicated region
  $region2: #{_lambda_.10} parent=0 // pred_check
    _
  $region3: #{_lambda_.10} parent=0 // pred_check_branch
    %14 = sbr.rel (0) target = $region5
  $region4: #{_lambda_.10} parent=0 // pred_region
    _
  $region5: #{_lambda_.10} parent=0 // pred_fallthru
    _
  // Predicated region
  $region6: #{_lambda_.10} parent=0 // pred_check
    _
  $region7: #{_lambda_.10} parent=0 // pred_check_branch
    %16 = sbr.rel (0) target = $region9
  $region8: #{_lambda_.10} parent=0 // pred_region
    _
  $region9: #{_lambda_.10} parent=0 // pred_fallthru
    _
  // Predicated region
  $region10: #{_lambda_.10} parent=0 // pred_check
    _
  $region11: #{_lambda_.10} parent=0 // pred_check_branch
    %18 = sbr.rel (0) target = $region13
  $region12: #{_lambda_.10} parent=0 // pred_region
    _
  $region13: #{_lambda_.10} parent=0 // pred_fallthru
    _
  // Predicated region
  $region14: #{_lambda_.10} parent=0 // pred_check
    _
  $region15: #{_lambda_.10} parent=0 // pred_check_branch
    %20 = sbr.rel (0) target = $region17
  $region16: #{_lambda_.10} parent=0 // pred_region
    _
  $region17: #{_lambda_.10} parent=0 // pred_fallthru
    _
  // Predicated region
  $region18: #{_lambda_.10} parent=0 // pred_check
    _
  $region19: #{_lambda_.10} parent=0 // pred_check_branch
    %22 = sbr.rel (0) target = $region21
  $region20: #{_lambda_.10} parent=0 // pred_region
    _
  $region21: #{_lambda_.10} parent=0 // pred_fallthru
    _
  // Predicated region
  $region22: #{_lambda_.10} parent=0 // pred_check
    _
  $region23: #{_lambda_.10} parent=0 // pred_check_branch
    %24 = sbr.rel (0) target = $region25
  $region24: #{_lambda_.10} parent=0 // pred_region
    _
  $region25: #{_lambda_.10} parent=0 // pred_fallthru
    _
  // Predicated region
  $region26: #{_lambda_.10} parent=0 // pred_check
    _
  $region27: #{_lambda_.10} parent=0 // pred_check_branch
    %26 = sbr.rel (0) target = $region29
  $region28: #{_lambda_.10} parent=0 // pred_region
    _
  $region29: #{_lambda_.10} parent=0 // pred_fallthru
    _
  // Predicated region
  $region30: #{_lambda_.10} parent=0 // pred_check
    _
  $region31: #{_lambda_.10} parent=0 // pred_check_branch
    %28 = sbr.rel (0) target = $region33
  $region32: #{_lambda_.10} parent=0 // pred_region
    _
  $region33: #{_lambda_.10} parent=0 // pred_fallthru
    _
  %v30 = vld [vmem:[%s1] sm:$0xff]
  %v31 = vld [vmem:[%s1 + $0x8] sm:$0xff]
  %v32 = vld [vmem:[%s0] sm:$0xf]
  %v33 = vld [vmem:[%s0 + $0x4] sm:$0xf]
  %v34 = vld [vmem:[%s0 + $0x8] sm:$0xf]
  %v35 = vld [vmem:[%s0 + $0xc] sm:$0xf]
  %v36 = vld [vmem:[%s0 + $0x10] sm:$0xf]
  %v37 = vld [vmem:[%s0 + $0x14] sm:$0xf]
  %v38 = vld [vmem:[%s0 + $0x18] sm:$0xf]
  %v39 = vld [vmem:[%s0 + $0x1c] sm:$0xf]
  %v40 = vld [vmem:[%s0 + $0x20] sm:$0xf]
  %v41 = vld [vmem:[%s0 + $0x24] sm:$0xf]
  %v42 = vld [vmem:[%s0 + $0x28] sm:$0xf]
  %v43 = vld [vmem:[%s0 + $0x2c] sm:$0xf]
  %v44 = vld [vmem:[%s0 + $0x30] sm:$0xf]
  %v45 = vld [vmem:[%s0 + $0x34] sm:$0xf]
  %v46 = vld [vmem:[%s0 + $0x38] sm:$0xf]
  %v47 = vld [vmem:[%s0 + $0x3c] sm:$0xf]
  %v48 = vld [vmem:[%s0 + $0x40] sm:$0xf]
  %v49 = vld [vmem:[%s0 + $0x44] sm:$0xf]
  %v52 = vunpack.c.l.b16 %v30
  %v53 = vunpack.c.h.b16 %v30
  %v54 = vunpack.c.l.b16 %v31
  %v55 = vunpack.c.h.b16 %v31
  %v56 = vpack.c.b16 %v54, %v52
  %v57 = vpack.c.b16 %v55, %v53
  %v77 = vunpack.c.l.b16 %v32
  %v78 = vunpack.c.l.b16 %v33
  %v79 = vunpack.c.l.b16 %v34
  %v80 = vunpack.c.l.b16 %v35
  %v81 = vunpack.c.l.b16 %v36
  %v82 = vunpack.c.l.b16 %v37
  %v83 = vunpack.c.l.b16 %v38
  %v84 = vunpack.c.l.b16 %v39
  %v85 = vunpack.c.l.b16 %v40
  %v86 = vunpack.c.l.b16 %v41
  %v87 = vunpack.c.l.b16 %v42
  %v88 = vunpack.c.l.b16 %v43
  %v89 = vunpack.c.l.b16 %v44
  %v90 = vunpack.c.l.b16 %v45
  %v91 = vunpack.c.l.b16 %v46
  %v92 = vunpack.c.l.b16 %v47
  %v93 = vunpack.c.l.b16 %v48
  %v94 = vunpack.c.l.b16 %v49
  %v95 = vpack.c.b16 %v78, %v77
  %v96 = vpack.c.b16 %v80, %v79
  %v97 = vpack.c.b16 %v82, %v81
  %v98 = vpack.c.b16 %v84, %v83
  %v99 = vpack.c.b16 %v86, %v85
  %v100 = vpack.c.b16 %v88, %v87
  %v101 = vpack.c.b16 %v90, %v89
  %v102 = vpack.c.b16 %v92, %v91
  %v103 = vpack.c.b16 %v94, %v93
  %vm113 = vcmask 130048
  %v115 = vsel %vm113, %v57, 0
  %117 = vmatprep.subr.bf16.mxu0 0
  %118 = vmatpush1.bf16.msra.mxu0 %v95
  %119 = vmatprep.subr.bf16.mxu0 0
  %120 = vmatpush1.bf16.msra.mxu0 %v96
  %121 = vmatprep.subr.bf16.mxu0 0
  %122 = vmatpush1.bf16.msra.mxu0 %v97
  %123 = vmatprep.subr.bf16.mxu0 0
  %124 = vmatpush1.bf16.msra.mxu0 %v98
  %125 = vmatprep.subr.bf16.mxu0 0
  %126 = vmatpush1.bf16.msra.mxu0 %v99
  %127 = vmatprep.subr.bf16.mxu0 0
  %128 = vmatpush1.bf16.msra.mxu0 %v100
  %129 = vmatprep.subr.bf16.mxu0 0
  %130 = vmatpush1.bf16.msra.mxu0 %v101
  %131 = vmatprep.subr.bf16.mxu0 0
  %132 = vmatpush1.bf16.msra.mxu0 %v102
  %133 = vmatprep.subr.bf16.mxu0 0
  %134 = vmatpush1.bf16.msra.mxu0 %v103
  %135 = vmatprep.subr.bf16.mxu0 0
  %136 = vmatpush1.bf16.msra.mxu0 0
  %137 = vmatprep.subr.bf16.mxu0 0
  %138 = vmatpush1.bf16.msra.mxu0 0
  %139 = vmatprep.subr.bf16.mxu0 0
  %140 = vmatpush1.bf16.msra.mxu0 0
  %141 = vmatprep.subr.bf16.mxu0 0
  %142 = vmatpush1.bf16.msra.mxu0 0
  %143 = vmatprep.subr.bf16.mxu0 0
  %144 = vmatpush1.bf16.msra.mxu0 0
  %145 = vmatprep.subr.bf16.mxu0 0
  %146 = vmatpush1.bf16.msra.mxu0 0
  %147 = vmatprep.subr.bf16.mxu0 0
  %148 = vmatpush1.bf16.msra.mxu0 0
  %149 = vmatprep.mubr.bf16.mxu0 %v115
  %150 = vmatmul.mubr.bf16.gmra.mrb[0].mxu0 %v56
  %v151 = vpop.f32.mrb[0].mxu0
  %v152 = vadd.f32 0.0, %v151
  %v153 = vpop.f32.mrb[0].mxu0
  %v154 = vpop.f32.mrb[0].mxu0
  %v155 = vadd.f32 0.0, %v154
  %v156 = vpop.f32.mrb[0].mxu0
  %157 = vdwg.mxu0
  %vm158 = vcmask 261120
  %v159 = vsel %vm158, %v152, 0.0
  %160 = vadd.xlane.f32.xlu0 %v159
  %v161 = vpop.xlane.xlu0 %160
  %v162 = vsel %vm158, %v155, 0.0
  %163 = vadd.xlane.f32.xlu0 %v162
  %v164 = vpop.xlane.xlu0 %163
  %v165 = vrcp.pop 32.0
  %v166 = vmul.f32 %v161, %v165
  %v167 = vmul.f32 %v164, %v165
  %v168 = vsub.f32 %v152, %v166
  %v169 = vsub.f32 %v155, %v167
  %v170 = vmul.f32 %v168, %v168
  %v171 = vmul.f32 %v169, %v169
  %v172 = vsel %vm158, %v170, 0.0
  %173 = vadd.xlane.f32.xlu0 %v172
  %v174 = vpop.xlane.xlu0 %173
  %v175 = vsel %vm158, %v171, 0.0
  %176 = vadd.xlane.f32.xlu0 %v175
  %v177 = vpop.xlane.xlu0 %176
  %v178 = vmul.f32 %v174, %v165
  %v179 = vmul.f32 %v177, %v165
  %v180 = vadd.f32 %v178, 1e-05
  %v181 = vadd.f32 %v179, 1e-05
  %v182 = vrsqrt.pop %v180
  %v183 = vrsqrt.pop %v181
  %v184 = vmul.f32 %v168, %v182
  %v185 = vmul.f32 %v169, %v183
  %v186 = vld [vmem:[%s2] sm:$0xff]
  %v187 = vld [vmem:[%s2 + $0x8] sm:$0xff]
  %189 = vset.pattern.permute.xlu0 0
  %190 = vperm.xlu0 %189, %v186
  %v191 = vpop.permute.xlu0 %190
  %194 = vset.pattern.permute.xlu0 0
  %195 = vperm.xlu0 %194, %v187
  %v196 = vpop.permute.xlu0 %195
  %v198 = vmul.f32 %v184, %v191
  %v199 = vmul.f32 %v185, %v196
  %v200 = vld [vmem:[%s3] sm:$0xff]
  %v201 = vld [vmem:[%s3 + $0x8] sm:$0xff]
  %203 = vset.pattern.permute.xlu0 0
  %204 = vperm.xlu0 %203, %v200
  %v205 = vpop.permute.xlu0 %204
  %208 = vset.pattern.permute.xlu0 0
  %209 = vperm.xlu0 %208, %v201
  %v210 = vpop.permute.xlu0 %209
  %v212 = vadd.f32 %v198, %v205
  %v213 = vadd.f32 %v199, %v210
  %v214 = vmax.f32 %v212, 0.0
  %v215 = vmax.f32 %v213, 0.0
  %v216 = vld [vmem:[%s4] sm:$0xff]
  %v217 = vld [vmem:[%s4 + $0x8] sm:$0xff]
  %v218 = vld [vmem:[%s5] sm:$0xff]
  %v219 = vld [vmem:[%s5 + $0x8] sm:$0xff]
  %v221 = vsel %vm113, %v216, 0
  %v224 = vsel %vm113, %v217, 0
  %226 = vmatprep.subr.mxu0 0.0
  %227 = vmatpush1.msra.mxu0 %v214
  %228 = vmatprep.subr.mxu0 0.0
  %229 = vmatpush1.msra.mxu0 %v215
  %230 = vmatprep.subr.mxu0 0.0
  %231 = vmatpush1.msra.mxu0 0.0
  %232 = vmatprep.subr.mxu0 0.0
  %233 = vmatpush1.msra.mxu0 0.0
  %234 = vmatprep.subr.mxu0 0.0
  %235 = vmatpush1.msra.mxu0 0.0
  %236 = vmatprep.subr.mxu0 0.0
  %237 = vmatpush1.msra.mxu0 0.0
  %238 = vmatprep.subr.mxu0 0.0
  %239 = vmatpush1.msra.mxu0 0.0
  %240 = vmatprep.subr.mxu0 0.0
  %241 = vmatpush1.msra.mxu0 0.0
  %242 = vmatprep.subr.mxu0 0.0
  %243 = vmatpush1.msra.mxu0 0.0
  %244 = vmatprep.subr.mxu0 0.0
  %245 = vmatpush1.msra.mxu0 0.0
  %246 = vmatprep.subr.mxu0 0.0
  %247 = vmatpush1.msra.mxu0 0.0
  %248 = vmatprep.subr.mxu0 0.0
  %249 = vmatpush1.msra.mxu0 0.0
  %250 = vmatprep.subr.mxu0 0.0
  %251 = vmatpush1.msra.mxu0 0.0
  %252 = vmatprep.subr.mxu0 0.0
  %253 = vmatpush1.msra.mxu0 0.0
  %254 = vmatprep.subr.mxu0 0.0
  %255 = vmatpush1.msra.mxu0 0.0
  %256 = vmatprep.subr.mxu0 0.0
  %257 = vmatpush1.msra.mxu0 0.0
  %258 = vmatprep.subr.mxu0 0.0
  %259 = vmatpush1.msra.mxu0 0.0
  %260 = vmatprep.subr.mxu0 0.0
  %261 = vmatpush1.msra.mxu0 0.0
  %262 = vmatprep.subr.mxu0 0.0
  %263 = vmatpush1.msra.mxu0 0.0
  %264 = vmatprep.subr.mxu0 0.0
  %265 = vmatpush1.msra.mxu0 0.0
  %266 = vmatprep.subr.mxu0 0.0
  %267 = vmatpush1.msra.mxu0 0.0
  %268 = vmatprep.subr.mxu0 0.0
  %269 = vmatpush1.msra.mxu0 0.0
  %270 = vmatprep.subr.mxu0 0.0
  %271 = vmatpush1.msra.mxu0 0.0
  %272 = vmatprep.subr.mxu0 0.0
  %273 = vmatpush1.msra.mxu0 0.0
  %274 = vmatprep.subr.mxu0 0.0
  %275 = vmatpush1.msra.mxu0 0.0
  %276 = vmatprep.subr.mxu0 0.0
  %277 = vmatpush1.msra.mxu0 0.0
  %278 = vmatprep.subr.mxu0 0.0
  %279 = vmatpush1.msra.mxu0 0.0
  %280 = vmatprep.subr.mxu0 0.0
  %281 = vmatpush1.msra.mxu0 0.0
  %282 = vmatprep.subr.mxu0 0.0
  %283 = vmatpush1.msra.mxu0 0.0
  %284 = vmatprep.subr.mxu0 0.0
  %285 = vmatpush1.msra.mxu0 0.0
  %286 = vmatprep.subr.mxu0 0.0
  %287 = vmatpush1.msra.mxu0 0.0
  %288 = vmatprep.subr.mxu0 0.0
  %289 = vmatpush1.msra.mxu0 0.0
  %290 = vmatprep.mubr.f32.mxu0 0.0
  %291 = vmatmul.mubr.f32.gmra.mrb[0].mxu0 %v221
  %v292 = vpop.f32.mrb[0].mxu0
  %v293 = vadd.f32 %v218, %v292
  %v294 = vpop.f32.mrb[0].mxu0
  %295 = vmatprep.mubr.f32.mxu0 0.0
  %296 = vmatmul.mubr.f32.gmra.mrb[0].mxu0 %v224
  %v297 = vpop.f32.mrb[0].mxu0
  %v298 = vadd.f32 %v219, %v297
  %v299 = vpop.f32.mrb[0].mxu0
  %300 = vdwg.mxu0
  %v301 = vsel %vm158, %v293, 0.0
  %302 = vadd.xlane.f32.xlu0 %v301
  %v303 = vpop.xlane.xlu0 %302
  %v304 = vsel %vm158, %v298, 0.0
  %305 = vadd.xlane.f32.xlu0 %v304
  %v306 = vpop.xlane.xlu0 %305
  %v307 = vmul.f32 %v303, %v165
  %v308 = vmul.f32 %v306, %v165
  %v309 = vsub.f32 %v293, %v307
  %v310 = vsub.f32 %v298, %v308
  %v311 = vmul.f32 %v309, %v309
  %v312 = vmul.f32 %v310, %v310
  %v313 = vsel %vm158, %v311, 0.0
  %314 = vadd.xlane.f32.xlu0 %v313
  %v315 = vpop.xlane.xlu0 %314
  %v316 = vsel %vm158, %v312, 0.0
  %317 = vadd.xlane.f32.xlu0 %v316
  %v318 = vpop.xlane.xlu0 %317
  %v319 = vmul.f32 %v315, %v165
  %v320 = vmul.f32 %v318, %v165
  %v321 = vadd.f32 %v319, 1e-05
  %v322 = vadd.f32 %v320, 1e-05
  %v323 = vrsqrt.pop %v321
  %v324 = vrsqrt.pop %v322
  %v325 = vmul.f32 %v309, %v323
  %v326 = vmul.f32 %v310, %v324
  %v327 = vld [vmem:[%s6] sm:$0xff]
  %v328 = vld [vmem:[%s6 + $0x8] sm:$0xff]
  %330 = vset.pattern.permute.xlu0 0
  %331 = vperm.xlu0 %330, %v327
  %v332 = vpop.permute.xlu0 %331
  %335 = vset.pattern.permute.xlu0 0
  %336 = vperm.xlu0 %335, %v328
  %v337 = vpop.permute.xlu0 %336
  %v339 = vmul.f32 %v325, %v332
  %v340 = vmul.f32 %v326, %v337
  %v341 = vld [vmem:[%s7] sm:$0xff]
  %v342 = vld [vmem:[%s7 + $0x8] sm:$0xff]
  %344 = vset.pattern.permute.xlu0 0
  %345 = vperm.xlu0 %344, %v341
  %v346 = vpop.permute.xlu0 %345
  %349 = vset.pattern.permute.xlu0 0
  %350 = vperm.xlu0 %349, %v342
  %v351 = vpop.permute.xlu0 %350
  %v353 = vadd.f32 %v339, %v346
  %v354 = vadd.f32 %v340, %v351
  %355 = vst.msk [vmem:[%s8] sm:$0xff] %vm158, %v353
  %356 = vst.msk [vmem:[%s8 + $0x8] sm:$0xff] %vm158, %v354
  // Predicated region
  $region34: #{_lambda_.10} parent=0 // pred_check
    _
  $region35: #{_lambda_.10} parent=0 // pred_check_branch
    %358 = sbr.rel (0) target = $region37
  $region36: #{_lambda_.10} parent=0 // pred_region
    _
  $region37: #{_lambda_.10} parent=0 // pred_fallthru
    _
  // Predicated region
  $region38: #{_lambda_.10} parent=0 // pred_check
    _
  $region39: #{_lambda_.10} parent=0 // pred_check_branch
    %360 = sbr.rel (0) target = $region41
  $region40: #{_lambda_.10} parent=0 // pred_region
    _
  $region41: #{_lambda_.10} parent=0 // pred_fallthru
    _

// kernel: _lambda_.13
$region0: #{_lambda_.13}
  #allocation0 [shape = 'u32[]', space=smem, size = 0x4, offset = 0x4, fixed_abs, tag = 'smem constant byte address 0x4 - core index']
  #allocation1 [shape = 'u32[144,128]{1,0:T(1,128)}', space=vmem, size = 0x12000, scoped, tag = 'internal scratch']
  %s0 = inlined_call_operand.vmem [shape: bf16[144,32], index: 0, kind: input, shape index: {}]
  %s1 = inlined_call_operand.vmem [shape: bf16[16,144], index: 1, kind: input, shape index: {}]
  %s2 = inlined_call_operand.vmem [shape: f32[16,1], index: 2, kind: input, shape index: {}]
  %s3 = inlined_call_operand.vmem [shape: f32[16,1], index: 3, kind: input, shape index: {}]
  %s4 = inlined_call_operand.vmem [shape: f32[16,16], index: 4, kind: input, shape index: {}]
  %s5 = inlined_call_operand.vmem [shape: f32[16,1], index: 5, kind: input, shape index: {}]
  %s6 = inlined_call_operand.vmem [shape: f32[16,32], index: 6, kind: input, shape index: {}]
  %s7 = inlined_call_operand.vmem [shape: f32[16,32], index: 7, kind: output, shape index: {}]
  %s8 = sld [smem:[#allocation0]]
  $region38: #{_lambda_.13} parent=0
    _
  %s10 = ssub.s32 1, %s8
  %s11 = scalar_select 0, %s10, %s8
  // Predicated region
  $region2: #{_lambda_.13} parent=0 // pred_check
    _
  $region3: #{_lambda_.13} parent=0 // pred_check_branch
    %13 = sbr.rel (0) target = $region5
  $region4: #{_lambda_.13} parent=0 // pred_region
    _
  $region5: #{_lambda_.13} parent=0 // pred_fallthru
    _
  // Predicated region
  $region6: #{_lambda_.13} parent=0 // pred_check
    _
  $region7: #{_lambda_.13} parent=0 // pred_check_branch
    %15 = sbr.rel (0) target = $region9
  $region8: #{_lambda_.13} parent=0 // pred_region
    _
  $region9: #{_lambda_.13} parent=0 // pred_fallthru
    _
  // Predicated region
  $region10: #{_lambda_.13} parent=0 // pred_check
    _
  $region11: #{_lambda_.13} parent=0 // pred_check_branch
    %17 = sbr.rel (0) target = $region13
  $region12: #{_lambda_.13} parent=0 // pred_region
    _
  $region13: #{_lambda_.13} parent=0 // pred_fallthru
    _
  // Predicated region
  $region14: #{_lambda_.13} parent=0 // pred_check
    _
  $region15: #{_lambda_.13} parent=0 // pred_check_branch
    %19 = sbr.rel (0) target = $region17
  $region16: #{_lambda_.13} parent=0 // pred_region
    _
  $region17: #{_lambda_.13} parent=0 // pred_fallthru
    _
  // Predicated region
  $region18: #{_lambda_.13} parent=0 // pred_check
    _
  $region19: #{_lambda_.13} parent=0 // pred_check_branch
    %21 = sbr.rel (0) target = $region21
  $region20: #{_lambda_.13} parent=0 // pred_region
    _
  $region21: #{_lambda_.13} parent=0 // pred_fallthru
    _
  // Predicated region
  $region22: #{_lambda_.13} parent=0 // pred_check
    _
  $region23: #{_lambda_.13} parent=0 // pred_check_branch
    %23 = sbr.rel (0) target = $region25
  $region24: #{_lambda_.13} parent=0 // pred_region
    _
  $region25: #{_lambda_.13} parent=0 // pred_fallthru
    _
  // Predicated region
  $region26: #{_lambda_.13} parent=0 // pred_check
    _
  $region27: #{_lambda_.13} parent=0 // pred_check_branch
    %25 = sbr.rel (0) target = $region29
  $region28: #{_lambda_.13} parent=0 // pred_region
    _
  $region29: #{_lambda_.13} parent=0 // pred_fallthru
    _
  %v27 = vld [vmem:[%s1] sm:$0xff]
  %v28 = vld [vmem:[%s1 + $0x8] sm:$0xff]
  %v29 = vld [vmem:[%s0] sm:$0xf]
  %v30 = vld [vmem:[%s0 + $0x4] sm:$0xf]
  %v31 = vld [vmem:[%s0 + $0x8] sm:$0xf]
  %v32 = vld [vmem:[%s0 + $0xc] sm:$0xf]
  %v33 = vld [vmem:[%s0 + $0x10] sm:$0xf]
  %v34 = vld [vmem:[%s0 + $0x14] sm:$0xf]
  %v35 = vld [vmem:[%s0 + $0x18] sm:$0xf]
  %v36 = vld [vmem:[%s0 + $0x1c] sm:$0xf]
  %v37 = vld [vmem:[%s0 + $0x20] sm:$0xf]
  %v38 = vld [vmem:[%s0 + $0x24] sm:$0xf]
  %v39 = vld [vmem:[%s0 + $0x28] sm:$0xf]
  %v40 = vld [vmem:[%s0 + $0x2c] sm:$0xf]
  %v41 = vld [vmem:[%s0 + $0x30] sm:$0xf]
  %v42 = vld [vmem:[%s0 + $0x34] sm:$0xf]
  %v43 = vld [vmem:[%s0 + $0x38] sm:$0xf]
  %v44 = vld [vmem:[%s0 + $0x3c] sm:$0xf]
  %v45 = vld [vmem:[%s0 + $0x40] sm:$0xf]
  %v46 = vld [vmem:[%s0 + $0x44] sm:$0xf]
  %v49 = vunpack.c.l.b16 %v27
  %v50 = vunpack.c.h.b16 %v27
  %v51 = vunpack.c.l.b16 %v28
  %v52 = vunpack.c.h.b16 %v28
  %v53 = vpack.c.b16 %v51, %v49
  %v54 = vpack.c.b16 %v52, %v50
  %v74 = vunpack.c.l.b16 %v29
  %v75 = vunpack.c.l.b16 %v30
  %v76 = vunpack.c.l.b16 %v31
  %v77 = vunpack.c.l.b16 %v32
  %v78 = vunpack.c.l.b16 %v33
  %v79 = vunpack.c.l.b16 %v34
  %v80 = vunpack.c.l.b16 %v35
  %v81 = vunpack.c.l.b16 %v36
  %v82 = vunpack.c.l.b16 %v37
  %v83 = vunpack.c.l.b16 %v38
  %v84 = vunpack.c.l.b16 %v39
  %v85 = vunpack.c.l.b16 %v40
  %v86 = vunpack.c.l.b16 %v41
  %v87 = vunpack.c.l.b16 %v42
  %v88 = vunpack.c.l.b16 %v43
  %v89 = vunpack.c.l.b16 %v44
  %v90 = vunpack.c.l.b16 %v45
  %v91 = vunpack.c.l.b16 %v46
  %v92 = vpack.c.b16 %v75, %v74
  %v93 = vpack.c.b16 %v77, %v76
  %v94 = vpack.c.b16 %v79, %v78
  %v95 = vpack.c.b16 %v81, %v80
  %v96 = vpack.c.b16 %v83, %v82
  %v97 = vpack.c.b16 %v85, %v84
  %v98 = vpack.c.b16 %v87, %v86
  %v99 = vpack.c.b16 %v89, %v88
  %v100 = vpack.c.b16 %v91, %v90
  %vm110 = vcmask 130048
  %v112 = vsel %vm110, %v54, 0
  %114 = vmatprep.subr.bf16.mxu0 0
  %115 = vmatpush1.bf16.msra.mxu0 %v92
  %116 = vmatprep.subr.bf16.mxu0 0
  %117 = vmatpush1.bf16.msra.mxu0 %v93
  %118 = vmatprep.subr.bf16.mxu0 0
  %119 = vmatpush1.bf16.msra.mxu0 %v94
  %120 = vmatprep.subr.bf16.mxu0 0
  %121 = vmatpush1.bf16.msra.mxu0 %v95
  %122 = vmatprep.subr.bf16.mxu0 0
  %123 = vmatpush1.bf16.msra.mxu0 %v96
  %124 = vmatprep.subr.bf16.mxu0 0
  %125 = vmatpush1.bf16.msra.mxu0 %v97
  %126 = vmatprep.subr.bf16.mxu0 0
  %127 = vmatpush1.bf16.msra.mxu0 %v98
  %128 = vmatprep.subr.bf16.mxu0 0
  %129 = vmatpush1.bf16.msra.mxu0 %v99
  %130 = vmatprep.subr.bf16.mxu0 0
  %131 = vmatpush1.bf16.msra.mxu0 %v100
  %132 = vmatprep.subr.bf16.mxu0 0
  %133 = vmatpush1.bf16.msra.mxu0 0
  %134 = vmatprep.subr.bf16.mxu0 0
  %135 = vmatpush1.bf16.msra.mxu0 0
  %136 = vmatprep.subr.bf16.mxu0 0
  %137 = vmatpush1.bf16.msra.mxu0 0
  %138 = vmatprep.subr.bf16.mxu0 0
  %139 = vmatpush1.bf16.msra.mxu0 0
  %140 = vmatprep.subr.bf16.mxu0 0
  %141 = vmatpush1.bf16.msra.mxu0 0
  %142 = vmatprep.subr.bf16.mxu0 0
  %143 = vmatpush1.bf16.msra.mxu0 0
  %144 = vmatprep.subr.bf16.mxu0 0
  %145 = vmatpush1.bf16.msra.mxu0 0
  %146 = vmatprep.mubr.bf16.mxu0 %v112
  %147 = vmatmul.mubr.bf16.gmra.mrb[0].mxu0 %v53
  %v148 = vpop.f32.mrb[0].mxu0
  %v149 = vadd.f32 0.0, %v148
  %v150 = vpop.f32.mrb[0].mxu0
  %v151 = vpop.f32.mrb[0].mxu0
  %v152 = vadd.f32 0.0, %v151
  %v153 = vpop.f32.mrb[0].mxu0
  %154 = vdwg.mxu0
  %vm155 = vcmask 261120
  %v156 = vsel %vm155, %v149, 0.0
  %157 = vadd.xlane.f32.xlu0 %v156
  %v158 = vpop.xlane.xlu0 %157
  %v159 = vsel %vm155, %v152, 0.0
  %160 = vadd.xlane.f32.xlu0 %v159
  %v161 = vpop.xlane.xlu0 %160
  %v162 = vrcp.pop 32.0
  %v163 = vmul.f32 %v158, %v162
  %v164 = vmul.f32 %v161, %v162
  %v165 = vsub.f32 %v149, %v163
  %v166 = vsub.f32 %v152, %v164
  %v167 = vmul.f32 %v165, %v165
  %v168 = vmul.f32 %v166, %v166
  %v169 = vsel %vm155, %v167, 0.0
  %170 = vadd.xlane.f32.xlu0 %v169
  %v171 = vpop.xlane.xlu0 %170
  %v172 = vsel %vm155, %v168, 0.0
  %173 = vadd.xlane.f32.xlu0 %v172
  %v174 = vpop.xlane.xlu0 %173
  %v175 = vmul.f32 %v171, %v162
  %v176 = vmul.f32 %v174, %v162
  %v177 = vadd.f32 %v175, 1e-05
  %v178 = vadd.f32 %v176, 1e-05
  %v179 = vrsqrt.pop %v177
  %v180 = vrsqrt.pop %v178
  %v181 = vmul.f32 %v165, %v179
  %v182 = vmul.f32 %v166, %v180
  %v183 = vld [vmem:[%s2] sm:$0xff]
  %v184 = vld [vmem:[%s2 + $0x8] sm:$0xff]
  %186 = vset.pattern.permute.xlu0 0
  %187 = vperm.xlu0 %186, %v183
  %v188 = vpop.permute.xlu0 %187
  %191 = vset.pattern.permute.xlu0 0
  %192 = vperm.xlu0 %191, %v184
  %v193 = vpop.permute.xlu0 %192
  %v195 = vmul.f32 %v181, %v188
  %v196 = vmul.f32 %v182, %v193
  %v197 = vld [vmem:[%s3] sm:$0xff]
  %v198 = vld [vmem:[%s3 + $0x8] sm:$0xff]
  %200 = vset.pattern.permute.xlu0 0
  %201 = vperm.xlu0 %200, %v197
  %v202 = vpop.permute.xlu0 %201
  %205 = vset.pattern.permute.xlu0 0
  %206 = vperm.xlu0 %205, %v198
  %v207 = vpop.permute.xlu0 %206
  %v209 = vadd.f32 %v195, %v202
  %v210 = vadd.f32 %v196, %v207
  %v211 = vmax.f32 %v209, 0.0
  %v212 = vmax.f32 %v210, 0.0
  %v213 = vld [vmem:[%s4] sm:$0xff]
  %v214 = vld [vmem:[%s4 + $0x8] sm:$0xff]
  %v215 = vld [vmem:[%s5] sm:$0xff]
  %v216 = vld [vmem:[%s5 + $0x8] sm:$0xff]
  %218 = vset.pattern.permute.xlu0 0
  %219 = vperm.xlu0 %218, %v215
  %v220 = vpop.permute.xlu0 %219
  %223 = vset.pattern.permute.xlu0 0
  %224 = vperm.xlu0 %223, %v216
  %v225 = vpop.permute.xlu0 %224
  %v228 = vsel %vm110, %v213, 0
  %v231 = vsel %vm110, %v214, 0
  %233 = vmatprep.subr.mxu0 0.0
  %234 = vmatpush1.msra.mxu0 %v211
  %235 = vmatprep.subr.mxu0 0.0
  %236 = vmatpush1.msra.mxu0 %v212
  %237 = vmatprep.subr.mxu0 0.0
  %238 = vmatpush1.msra.mxu0 0.0
  %239 = vmatprep.subr.mxu0 0.0
  %240 = vmatpush1.msra.mxu0 0.0
  %241 = vmatprep.subr.mxu0 0.0
  %242 = vmatpush1.msra.mxu0 0.0
  %243 = vmatprep.subr.mxu0 0.0
  %244 = vmatpush1.msra.mxu0 0.0
  %245 = vmatprep.subr.mxu0 0.0
  %246 = vmatpush1.msra.mxu0 0.0
  %247 = vmatprep.subr.mxu0 0.0
  %248 = vmatpush1.msra.mxu0 0.0
  %249 = vmatprep.subr.mxu0 0.0
  %250 = vmatpush1.msra.mxu0 0.0
  %251 = vmatprep.subr.mxu0 0.0
  %252 = vmatpush1.msra.mxu0 0.0
  %253 = vmatprep.subr.mxu0 0.0
  %254 = vmatpush1.msra.mxu0 0.0
  %255 = vmatprep.subr.mxu0 0.0
  %256 = vmatpush1.msra.mxu0 0.0
  %257 = vmatprep.subr.mxu0 0.0
  %258 = vmatpush1.msra.mxu0 0.0
  %259 = vmatprep.subr.mxu0 0.0
  %260 = vmatpush1.msra.mxu0 0.0
  %261 = vmatprep.subr.mxu0 0.0
  %262 = vmatpush1.msra.mxu0 0.0
  %263 = vmatprep.subr.mxu0 0.0
  %264 = vmatpush1.msra.mxu0 0.0
  %265 = vmatprep.subr.mxu0 0.0
  %266 = vmatpush1.msra.mxu0 0.0
  %267 = vmatprep.subr.mxu0 0.0
  %268 = vmatpush1.msra.mxu0 0.0
  %269 = vmatprep.subr.mxu0 0.0
  %270 = vmatpush1.msra.mxu0 0.0
  %271 = vmatprep.subr.mxu0 0.0
  %272 = vmatpush1.msra.mxu0 0.0
  %273 = vmatprep.subr.mxu0 0.0
  %274 = vmatpush1.msra.mxu0 0.0
  %275 = vmatprep.subr.mxu0 0.0
  %276 = vmatpush1.msra.mxu0 0.0
  %277 = vmatprep.subr.mxu0 0.0
  %278 = vmatpush1.msra.mxu0 0.0
  %279 = vmatprep.subr.mxu0 0.0
  %280 = vmatpush1.msra.mxu0 0.0
  %281 = vmatprep.subr.mxu0 0.0
  %282 = vmatpush1.msra.mxu0 0.0
  %283 = vmatprep.subr.mxu0 0.0
  %284 = vmatpush1.msra.mxu0 0.0
  %285 = vmatprep.subr.mxu0 0.0
  %286 = vmatpush1.msra.mxu0 0.0
  %287 = vmatprep.subr.mxu0 0.0
  %288 = vmatpush1.msra.mxu0 0.0
  %289 = vmatprep.subr.mxu0 0.0
  %290 = vmatpush1.msra.mxu0 0.0
  %291 = vmatprep.subr.mxu0 0.0
  %292 = vmatpush1.msra.mxu0 0.0
  %293 = vmatprep.subr.mxu0 0.0
  %294 = vmatpush1.msra.mxu0 0.0
  %295 = vmatprep.subr.mxu0 0.0
  %296 = vmatpush1.msra.mxu0 0.0
  %297 = vmatprep.mubr.f32.mxu0 0.0
  %298 = vmatmul.mubr.f32.gmra.mrb[0].mxu0 %v228
  %v299 = vpop.f32.mrb[0].mxu0
  %v300 = vadd.f32 %v220, %v299
  %v301 = vpop.f32.mrb[0].mxu0
  %302 = vmatprep.mubr.f32.mxu0 0.0
  %303 = vmatmul.mubr.f32.gmra.mrb[0].mxu0 %v231
  %v304 = vpop.f32.mrb[0].mxu0
  %v305 = vadd.f32 %v225, %v304
  %v306 = vpop.f32.mrb[0].mxu0
  %307 = vdwg.mxu0
  %v308 = vld [vmem:[%s6] sm:$0xff]
  %v309 = vld [vmem:[%s6 + $0x8] sm:$0xff]
  %v310 = vadd.f32 %v300, %v308
  %v311 = vadd.f32 %v305, %v309
  %312 = vst.msk [vmem:[%s7] sm:$0xff] %vm155, %v310
  %313 = vst.msk [vmem:[%s7 + $0x8] sm:$0xff] %vm155, %v311
  // Predicated region
  $region30: #{_lambda_.13} parent=0 // pred_check
    _
  $region31: #{_lambda_.13} parent=0 // pred_check_branch
    %315 = sbr.rel (0) target = $region33
  $region32: #{_lambda_.13} parent=0 // pred_region
    _
  $region33: #{_lambda_.13} parent=0 // pred_fallthru
    _
  // Predicated region
  $region34: #{_lambda_.13} parent=0 // pred_check
    _
  $region35: #{_lambda_.13} parent=0 // pred_check_branch
    %317 = sbr.rel (0) target = $region37
  $region36: #{_lambda_.13} parent=0 // pred_region
    _
  $region37: #{_lambda_.13} parent=0 // pred_fallthru
    _

// kernel: _lambda_.11
$region0: #{_lambda_.11}
  #allocation0 [shape = 'u32[]', space=smem, size = 0x4, offset = 0x4, fixed_abs, tag = 'smem constant byte address 0x4 - core index']
  #allocation1 [shape = 'u32[144,128]{1,0:T(1,128)}', space=vmem, size = 0x12000, scoped, tag = 'internal scratch']
  %s0 = inlined_call_operand.vmem [shape: bf16[144,32], index: 0, kind: input, shape index: {}]
  %s1 = inlined_call_operand.vmem [shape: bf16[16,144], index: 1, kind: input, shape index: {}]
  %s2 = inlined_call_operand.vmem [shape: f32[16,1], index: 2, kind: input, shape index: {}]
  %s3 = inlined_call_operand.vmem [shape: f32[16,1], index: 3, kind: input, shape index: {}]
  %s4 = inlined_call_operand.vmem [shape: f32[16,16], index: 4, kind: input, shape index: {}]
  %s5 = inlined_call_operand.vmem [shape: f32[16,32], index: 5, kind: input, shape index: {}]
  %s6 = inlined_call_operand.vmem [shape: f32[16,1], index: 6, kind: input, shape index: {}]
  %s7 = inlined_call_operand.vmem [shape: f32[16,1], index: 7, kind: input, shape index: {}]
  %s8 = inlined_call_operand.vmem [shape: f32[16,32], index: 8, kind: output, shape index: {}]
  %s9 = sld [smem:[#allocation0]]
  $region42: #{_lambda_.11} parent=0
    _
  %s11 = ssub.s32 1, %s9
  %s12 = scalar_select 0, %s11, %s9
  // Predicated region
  $region2: #{_lambda_.11} parent=0 // pred_check
    _
  $region3: #{_lambda_.11} parent=0 // pred_check_branch
    %14 = sbr.rel (0) target = $region5
  $region4: #{_lambda_.11} parent=0 // pred_region
    _
  $region5: #{_lambda_.11} parent=0 // pred_fallthru
    _
  // Predicated region
  $region6: #{_lambda_.11} parent=0 // pred_check
    _
  $region7: #{_lambda_.11} parent=0 // pred_check_branch
    %16 = sbr.rel (0) target = $region9
  $region8: #{_lambda_.11} parent=0 // pred_region
    _
  $region9: #{_lambda_.11} parent=0 // pred_fallthru
    _
  // Predicated region
  $region10: #{_lambda_.11} parent=0 // pred_check
    _
  $region11: #{_lambda_.11} parent=0 // pred_check_branch
    %18 = sbr.rel (0) target = $region13
  $region12: #{_lambda_.11} parent=0 // pred_region
    _
  $region13: #{_lambda_.11} parent=0 // pred_fallthru
    _
  // Predicated region
  $region14: #{_lambda_.11} parent=0 // pred_check
    _
  $region15: #{_lambda_.11} parent=0 // pred_check_branch
    %20 = sbr.rel (0) target = $region17
  $region16: #{_lambda_.11} parent=0 // pred_region
    _
  $region17: #{_lambda_.11} parent=0 // pred_fallthru
    _
  // Predicated region
  $region18: #{_lambda_.11} parent=0 // pred_check
    _
  $region19: #{_lambda_.11} parent=0 // pred_check_branch
    %22 = sbr.rel (0) target = $region21
  $region20: #{_lambda_.11} parent=0 // pred_region
    _
  $region21: #{_lambda_.11} parent=0 // pred_fallthru
    _
  // Predicated region
  $region22: #{_lambda_.11} parent=0 // pred_check
    _
  $region23: #{_lambda_.11} parent=0 // pred_check_branch
    %24 = sbr.rel (0) target = $region25
  $region24: #{_lambda_.11} parent=0 // pred_region
    _
  $region25: #{_lambda_.11} parent=0 // pred_fallthru
    _
  // Predicated region
  $region26: #{_lambda_.11} parent=0 // pred_check
    _
  $region27: #{_lambda_.11} parent=0 // pred_check_branch
    %26 = sbr.rel (0) target = $region29
  $region28: #{_lambda_.11} parent=0 // pred_region
    _
  $region29: #{_lambda_.11} parent=0 // pred_fallthru
    _
  // Predicated region
  $region30: #{_lambda_.11} parent=0 // pred_check
    _
  $region31: #{_lambda_.11} parent=0 // pred_check_branch
    %28 = sbr.rel (0) target = $region33
  $region32: #{_lambda_.11} parent=0 // pred_region
    _
  $region33: #{_lambda_.11} parent=0 // pred_fallthru
    _
  %v30 = vld [vmem:[%s1] sm:$0xff]
  %v31 = vld [vmem:[%s1 + $0x8] sm:$0xff]
  %v32 = vld [vmem:[%s0] sm:$0xf]
  %v33 = vld [vmem:[%s0 + $0x4] sm:$0xf]
  %v34 = vld [vmem:[%s0 + $0x8] sm:$0xf]
  %v35 = vld [vmem:[%s0 + $0xc] sm:$0xf]
  %v36 = vld [vmem:[%s0 + $0x10] sm:$0xf]
  %v37 = vld [vmem:[%s0 + $0x14] sm:$0xf]
  %v38 = vld [vmem:[%s0 + $0x18] sm:$0xf]
  %v39 = vld [vmem:[%s0 + $0x1c] sm:$0xf]
  %v40 = vld [vmem:[%s0 + $0x20] sm:$0xf]
  %v41 = vld [vmem:[%s0 + $0x24] sm:$0xf]
  %v42 = vld [vmem:[%s0 + $0x28] sm:$0xf]
  %v43 = vld [vmem:[%s0 + $0x2c] sm:$0xf]
  %v44 = vld [vmem:[%s0 + $0x30] sm:$0xf]
  %v45 = vld [vmem:[%s0 + $0x34] sm:$0xf]
  %v46 = vld [vmem:[%s0 + $0x38] sm:$0xf]
  %v47 = vld [vmem:[%s0 + $0x3c] sm:$0xf]
  %v48 = vld [vmem:[%s0 + $0x40] sm:$0xf]
  %v49 = vld [vmem:[%s0 + $0x44] sm:$0xf]
  %v52 = vunpack.c.l.b16 %v30
  %v53 = vunpack.c.h.b16 %v30
  %v54 = vunpack.c.l.b16 %v31
  %v55 = vunpack.c.h.b16 %v31
  %v56 = vpack.c.b16 %v54, %v52
  %v57 = vpack.c.b16 %v55, %v53
  %v77 = vunpack.c.l.b16 %v32
  %v78 = vunpack.c.l.b16 %v33
  %v79 = vunpack.c.l.b16 %v34
  %v80 = vunpack.c.l.b16 %v35
  %v81 = vunpack.c.l.b16 %v36
  %v82 = vunpack.c.l.b16 %v37
  %v83 = vunpack.c.l.b16 %v38
  %v84 = vunpack.c.l.b16 %v39
  %v85 = vunpack.c.l.b16 %v40
  %v86 = vunpack.c.l.b16 %v41
  %v87 = vunpack.c.l.b16 %v42
  %v88 = vunpack.c.l.b16 %v43
  %v89 = vunpack.c.l.b16 %v44
  %v90 = vunpack.c.l.b16 %v45
  %v91 = vunpack.c.l.b16 %v46
  %v92 = vunpack.c.l.b16 %v47
  %v93 = vunpack.c.l.b16 %v48
  %v94 = vunpack.c.l.b16 %v49
  %v95 = vpack.c.b16 %v78, %v77
  %v96 = vpack.c.b16 %v80, %v79
  %v97 = vpack.c.b16 %v82, %v81
  %v98 = vpack.c.b16 %v84, %v83
  %v99 = vpack.c.b16 %v86, %v85
  %v100 = vpack.c.b16 %v88, %v87
  %v101 = vpack.c.b16 %v90, %v89
  %v102 = vpack.c.b16 %v92, %v91
  %v103 = vpack.c.b16 %v94, %v93
  %vm113 = vcmask 130048
  %v115 = vsel %vm113, %v57, 0
  %117 = vmatprep.subr.bf16.mxu0 0
  %118 = vmatpush1.bf16.msra.mxu0 %v95
  %119 = vmatprep.subr.bf16.mxu0 0
  %120 = vmatpush1.bf16.msra.mxu0 %v96
  %121 = vmatprep.subr.bf16.mxu0 0
  %122 = vmatpush1.bf16.msra.mxu0 %v97
  %123 = vmatprep.subr.bf16.mxu0 0
  %124 = vmatpush1.bf16.msra.mxu0 %v98
  %125 = vmatprep.subr.bf16.mxu0 0
  %126 = vmatpush1.bf16.msra.mxu0 %v99
  %127 = vmatprep.subr.bf16.mxu0 0
  %128 = vmatpush1.bf16.msra.mxu0 %v100
  %129 = vmatprep.subr.bf16.mxu0 0
  %130 = vmatpush1.bf16.msra.mxu0 %v101
  %131 = vmatprep.subr.bf16.mxu0 0
  %132 = vmatpush1.bf16.msra.mxu0 %v102
  %133 = vmatprep.subr.bf16.mxu0 0
  %134 = vmatpush1.bf16.msra.mxu0 %v103
  %135 = vmatprep.subr.bf16.mxu0 0
  %136 = vmatpush1.bf16.msra.mxu0 0
  %137 = vmatprep.subr.bf16.mxu0 0
  %138 = vmatpush1.bf16.msra.mxu0 0
  %139 = vmatprep.subr.bf16.mxu0 0
  %140 = vmatpush1.bf16.msra.mxu0 0
  %141 = vmatprep.subr.bf16.mxu0 0
  %142 = vmatpush1.bf16.msra.mxu0 0
  %143 = vmatprep.subr.bf16.mxu0 0
  %144 = vmatpush1.bf16.msra.mxu0 0
  %145 = vmatprep.subr.bf16.mxu0 0
  %146 = vmatpush1.bf16.msra.mxu0 0
  %147 = vmatprep.subr.bf16.mxu0 0
  %148 = vmatpush1.bf16.msra.mxu0 0
  %149 = vmatprep.mubr.bf16.mxu0 %v115
  %150 = vmatmul.mubr.bf16.gmra.mrb[0].mxu0 %v56
  %v151 = vpop.f32.mrb[0].mxu0
  %v152 = vadd.f32 0.0, %v151
  %v153 = vpop.f32.mrb[0].mxu0
  %v154 = vpop.f32.mrb[0].mxu0
  %v155 = vadd.f32 0.0, %v154
  %v156 = vpop.f32.mrb[0].mxu0
  %157 = vdwg.mxu0
  %vm158 = vcmask 261120
  %v159 = vsel %vm158, %v152, 0.0
  %160 = vadd.xlane.f32.xlu0 %v159
  %v161 = vpop.xlane.xlu0 %160
  %v162 = vsel %vm158, %v155, 0.0
  %163 = vadd.xlane.f32.xlu0 %v162
  %v164 = vpop.xlane.xlu0 %163
  %v165 = vrcp.pop 32.0
  %v166 = vmul.f32 %v161, %v165
  %v167 = vmul.f32 %v164, %v165
  %v168 = vsub.f32 %v152, %v166
  %v169 = vsub.f32 %v155, %v167
  %v170 = vmul.f32 %v168, %v168
  %v171 = vmul.f32 %v169, %v169
  %v172 = vsel %vm158, %v170, 0.0
  %173 = vadd.xlane.f32.xlu0 %v172
  %v174 = vpop.xlane.xlu0 %173
  %v175 = vsel %vm158, %v171, 0.0
  %176 = vadd.xlane.f32.xlu0 %v175
  %v177 = vpop.xlane.xlu0 %176
  %v178 = vmul.f32 %v174, %v165
  %v179 = vmul.f32 %v177, %v165
  %v180 = vadd.f32 %v178, 1e-05
  %v181 = vadd.f32 %v179, 1e-05
  %v182 = vrsqrt.pop %v180
  %v183 = vrsqrt.pop %v181
  %v184 = vmul.f32 %v168, %v182
  %v185 = vmul.f32 %v169, %v183
  %v186 = vld [vmem:[%s2] sm:$0xff]
  %v187 = vld [vmem:[%s2 + $0x8] sm:$0xff]
  %189 = vset.pattern.permute.xlu0 0
  %190 = vperm.xlu0 %189, %v186
  %v191 = vpop.permute.xlu0 %190
  %194 = vset.pattern.permute.xlu0 0
  %195 = vperm.xlu0 %194, %v187
  %v196 = vpop.permute.xlu0 %195
  %v198 = vmul.f32 %v184, %v191
  %v199 = vmul.f32 %v185, %v196
  %v200 = vld [vmem:[%s3] sm:$0xff]
  %v201 = vld [vmem:[%s3 + $0x8] sm:$0xff]
  %203 = vset.pattern.permute.xlu0 0
  %204 = vperm.xlu0 %203, %v200
  %v205 = vpop.permute.xlu0 %204
  %208 = vset.pattern.permute.xlu0 0
  %209 = vperm.xlu0 %208, %v201
  %v210 = vpop.permute.xlu0 %209
  %v212 = vadd.f32 %v198, %v205
  %v213 = vadd.f32 %v199, %v210
  %v214 = vmax.f32 %v212, 0.0
  %v215 = vmax.f32 %v213, 0.0
  %v216 = vld [vmem:[%s4] sm:$0xff]
  %v217 = vld [vmem:[%s4 + $0x8] sm:$0xff]
  %v218 = vld [vmem:[%s5] sm:$0xff]
  %v219 = vld [vmem:[%s5 + $0x8] sm:$0xff]
  %v221 = vsel %vm113, %v216, 0
  %v224 = vsel %vm113, %v217, 0
  %226 = vmatprep.subr.mxu0 0.0
  %227 = vmatpush1.msra.mxu0 %v214
  %228 = vmatprep.subr.mxu0 0.0
  %229 = vmatpush1.msra.mxu0 %v215
  %230 = vmatprep.subr.mxu0 0.0
  %231 = vmatpush1.msra.mxu0 0.0
  %232 = vmatprep.subr.mxu0 0.0
  %233 = vmatpush1.msra.mxu0 0.0
  %234 = vmatprep.subr.mxu0 0.0
  %235 = vmatpush1.msra.mxu0 0.0
  %236 = vmatprep.subr.mxu0 0.0
  %237 = vmatpush1.msra.mxu0 0.0
  %238 = vmatprep.subr.mxu0 0.0
  %239 = vmatpush1.msra.mxu0 0.0
  %240 = vmatprep.subr.mxu0 0.0
  %241 = vmatpush1.msra.mxu0 0.0
  %242 = vmatprep.subr.mxu0 0.0
  %243 = vmatpush1.msra.mxu0 0.0
  %244 = vmatprep.subr.mxu0 0.0
  %245 = vmatpush1.msra.mxu0 0.0
  %246 = vmatprep.subr.mxu0 0.0
  %247 = vmatpush1.msra.mxu0 0.0
  %248 = vmatprep.subr.mxu0 0.0
  %249 = vmatpush1.msra.mxu0 0.0
  %250 = vmatprep.subr.mxu0 0.0
  %251 = vmatpush1.msra.mxu0 0.0
  %252 = vmatprep.subr.mxu0 0.0
  %253 = vmatpush1.msra.mxu0 0.0
  %254 = vmatprep.subr.mxu0 0.0
  %255 = vmatpush1.msra.mxu0 0.0
  %256 = vmatprep.subr.mxu0 0.0
  %257 = vmatpush1.msra.mxu0 0.0
  %258 = vmatprep.subr.mxu0 0.0
  %259 = vmatpush1.msra.mxu0 0.0
  %260 = vmatprep.subr.mxu0 0.0
  %261 = vmatpush1.msra.mxu0 0.0
  %262 = vmatprep.subr.mxu0 0.0
  %263 = vmatpush1.msra.mxu0 0.0
  %264 = vmatprep.subr.mxu0 0.0
  %265 = vmatpush1.msra.mxu0 0.0
  %266 = vmatprep.subr.mxu0 0.0
  %267 = vmatpush1.msra.mxu0 0.0
  %268 = vmatprep.subr.mxu0 0.0
  %269 = vmatpush1.msra.mxu0 0.0
  %270 = vmatprep.subr.mxu0 0.0
  %271 = vmatpush1.msra.mxu0 0.0
  %272 = vmatprep.subr.mxu0 0.0
  %273 = vmatpush1.msra.mxu0 0.0
  %274 = vmatprep.subr.mxu0 0.0
  %275 = vmatpush1.msra.mxu0 0.0
  %276 = vmatprep.subr.mxu0 0.0
  %277 = vmatpush1.msra.mxu0 0.0
  %278 = vmatprep.subr.mxu0 0.0
  %279 = vmatpush1.msra.mxu0 0.0
  %280 = vmatprep.subr.mxu0 0.0
  %281 = vmatpush1.msra.mxu0 0.0
  %282 = vmatprep.subr.mxu0 0.0
  %283 = vmatpush1.msra.mxu0 0.0
  %284 = vmatprep.subr.mxu0 0.0
  %285 = vmatpush1.msra.mxu0 0.0
  %286 = vmatprep.subr.mxu0 0.0
  %287 = vmatpush1.msra.mxu0 0.0
  %288 = vmatprep.subr.mxu0 0.0
  %289 = vmatpush1.msra.mxu0 0.0
  %290 = vmatprep.mubr.f32.mxu0 0.0
  %291 = vmatmul.mubr.f32.gmra.mrb[0].mxu0 %v221
  %v292 = vpop.f32.mrb[0].mxu0
  %v293 = vadd.f32 %v218, %v292
  %v294 = vpop.f32.mrb[0].mxu0
  %295 = vmatprep.mubr.f32.mxu0 0.0
  %296 = vmatmul.mubr.f32.gmra.mrb[0].mxu0 %v224
  %v297 = vpop.f32.mrb[0].mxu0
  %v298 = vadd.f32 %v219, %v297
  %v299 = vpop.f32.mrb[0].mxu0
  %300 = vdwg.mxu0
  %v301 = vsel %vm158, %v293, 0.0
  %302 = vadd.xlane.f32.xlu0 %v301
  %v303 = vpop.xlane.xlu0 %302
  %v304 = vsel %vm158, %v298, 0.0
  %305 = vadd.xlane.f32.xlu0 %v304
  %v306 = vpop.xlane.xlu0 %305
  %v307 = vmul.f32 %v303, %v165
  %v308 = vmul.f32 %v306, %v165
  %v309 = vsub.f32 %v293, %v307
  %v310 = vsub.f32 %v298, %v308
  %v311 = vmul.f32 %v309, %v309
  %v312 = vmul.f32 %v310, %v310
  %v313 = vsel %vm158, %v311, 0.0
  %314 = vadd.xlane.f32.xlu0 %v313
  %v315 = vpop.xlane.xlu0 %314
  %v316 = vsel %vm158, %v312, 0.0
  %317 = vadd.xlane.f32.xlu0 %v316
  %v318 = vpop.xlane.xlu0 %317
  %v319 = vmul.f32 %v315, %v165
  %v320 = vmul.f32 %v318, %v165
  %v321 = vadd.f32 %v319, 1e-05
  %v322 = vadd.f32 %v320, 1e-05
  %v323 = vrsqrt.pop %v321
  %v324 = vrsqrt.pop %v322
  %v325 = vmul.f32 %v309, %v323
  %v326 = vmul.f32 %v310, %v324
  %v327 = vld [vmem:[%s6] sm:$0xff]
  %v328 = vld [vmem:[%s6 + $0x8] sm:$0xff]
  %330 = vset.pattern.permute.xlu0 0
  %331 = vperm.xlu0 %330, %v327
  %v332 = vpop.permute.xlu0 %331
  %335 = vset.pattern.permute.xlu0 0
  %336 = vperm.xlu0 %335, %v328
  %v337 = vpop.permute.xlu0 %336
  %v339 = vmul.f32 %v325, %v332
  %v340 = vmul.f32 %v326, %v337
  %v341 = vld [vmem:[%s7] sm:$0xff]
  %v342 = vld [vmem:[%s7 + $0x8] sm:$0xff]
  %344 = vset.pattern.permute.xlu0 0
  %345 = vperm.xlu0 %344, %v341
  %v346 = vpop.permute.xlu0 %345
  %349 = vset.pattern.permute.xlu0 0
  %350 = vperm.xlu0 %349, %v342
  %v351 = vpop.permute.xlu0 %350
  %v353 = vadd.f32 %v339, %v346
  %v354 = vadd.f32 %v340, %v351
  %v355 = vsel %vm158, %v353, -inf
  %v356 = vsel %vm158, %v354, -inf
  %v357 = vmax.f32 %v355, %v356
  %358 = vmax.xlane.f32.xlu0 %v357
  %v359 = vpop.xlane.xlu0 %358
  %v360 = vrot.slane %v359, 4
  %v361 = vmax.f32 %v359, %v360
  %v362 = vrot.slane %v361, 2
  %v363 = vmax.f32 %v361, %v362
  %v364 = vrot.slane %v363, 1
  %v365 = vmax.f32 %v363, %v364
  %s366 = vtos %v365
  %v367 = vsel %vm158, %v353, inf
  %v368 = vsel %vm158, %v354, inf
  %v369 = vmin.f32 %v367, %v368
  %370 = vmin.xlane.f32.xlu0 %v369
  %v371 = vpop.xlane.xlu0 %370
  %v372 = vrot.slane %v371, 4
  %v373 = vmin.f32 %v371, %v372
  %v374 = vrot.slane %v373, 2
  %v375 = vmin.f32 %v373, %v374
  %v376 = vrot.slane %v375, 1
  %v377 = vmin.f32 %v375, %v376
  %s378 = vtos %v377
  %s379 = ssub.f32 %s366, %s378
  %v380 = vrcp.pop 3.0
  %s381 = vtos %v380
  %s382 = smul.f32 %s379, %s381
  %p383 = scmp.eq.f32.partialorder %s382, 0.0
  %s384 = scalar_select %p383, 1.0, %s382
  %v385 = vstv %s378
  %v386 = vsub.f32 %v353, %v385
  %v387 = vsub.f32 %v354, %v385
  %v388 = vstv %s384
  %v389 = vrcp.pop %v388
  %v390 = vmul.f32 %v386, %v389
  %v391 = vmul.f32 %v387, %v389
  %v392 = vfloor.f32 %v390
  %v393 = vfloor.f32 %v391
  %v394 = vadd.f32 %v392, 0.5
  %v395 = vadd.f32 %v393, 0.5
  %v396 = vmul.f32 %v394, %v388
  %v397 = vmul.f32 %v395, %v388
  %v398 = vadd.f32 %v396, %v385
  %v399 = vadd.f32 %v397, %v385
  %v400 = vstv %s384
  %v401 = vrcp.pop %v400
  %s402 = vtos %v401
  %s403 = smul.f32 1.0986123, %s402
  %v404 = vsub.f32 %v353, %v398
  %v405 = vsub.f32 %v354, %v399
  %v406 = vstv %s403
  %v407 = vmul.f32 %v404, %v406
  %v408 = vmul.f32 %v405, %v406
  %v409 = vtanh.pop %v407
  %v410 = vtanh.pop %v408
  %v411 = vmul.f32 %v409, 2.0
  %v412 = vmul.f32 %v410, 2.0
  %v413 = vsel %vm158, %v411, -inf
  %v414 = vsel %vm158, %v412, -inf
  %v415 = vmax.f32 %v413, %v414
  %416 = vmax.xlane.f32.xlu0 %v415
  %v417 = vpop.xlane.xlu0 %416
  %v418 = vrot.slane %v417, 4
  %v419 = vmax.f32 %v417, %v418
  %v420 = vrot.slane %v419, 2
  %v421 = vmax.f32 %v419, %v420
  %v422 = vrot.slane %v421, 1
  %v423 = vmax.f32 %v421, %v422
  %s424 = vtos %v423
  %v425 = vsel %vm158, %v411, inf
  %v426 = vsel %vm158, %v412, inf
  %v427 = vmin.f32 %v425, %v426
  %428 = vmin.xlane.f32.xlu0 %v427
  %v429 = vpop.xlane.xlu0 %428
  %v430 = vrot.slane %v429, 4
  %v431 = vmin.f32 %v429, %v430
  %v432 = vrot.slane %v431, 2
  %v433 = vmin.f32 %v431, %v432
  %v434 = vrot.slane %v433, 1
  %v435 = vmin.f32 %v433, %v434
  %s436 = vtos %v435
  %s437 = ssub.f32 %s424, %s436
  %p438 = scmp.eq.f32.partialorder %s437, 0.0
  %s439 = scalar_select %p438, 1.0, %s437
  %v440 = vstv %s439
  %v441 = vrcp.pop %v440
  %v442 = vmul.f32 %v411, %v441
  %v443 = vmul.f32 %v412, %v441
  %v444 = vadd.f32 %v442, 0.5
  %v445 = vadd.f32 %v443, 0.5
  %v446 = vround.ne.pseudo %v444
  %v447 = vround.ne.pseudo %v445
  %v448 = vmul.f32 %v446, 2.0
  %v449 = vmul.f32 %v447, 2.0
  %v450 = vsub.f32 %v448, 1.0
  %v451 = vsub.f32 %v449, 1.0
  %v452 = vadd.f32 %v450, 1.0
  %v453 = vadd.f32 %v451, 1.0
  %v454 = vrcp.pop 2.0
  %v455 = vmul.f32 %v452, %v454
  %v456 = vmul.f32 %v453, %v454
  %v457 = vadd.f32 %v455, %v392
  %v458 = vadd.f32 %v456, %v393
  %v459 = vmul.f32 %v457, %v388
  %v460 = vmul.f32 %v458, %v388
  %v461 = vadd.f32 %v459, %v385
  %v462 = vadd.f32 %v460, %v385
  %463 = vst.msk [vmem:[%s8] sm:$0xff] %vm158, %v461
  %464 = vst.msk [vmem:[%s8 + $0x8] sm:$0xff] %vm158, %v462
  // Predicated region
  $region34: #{_lambda_.11} parent=0 // pred_check
    _
  $region35: #{_lambda_.11} parent=0 // pred_check_branch
    %466 = sbr.rel (0) target = $region37
  $region36: #{_lambda_.11} parent=0 // pred_region
    _
  $region37: #{_lambda_.11} parent=0 // pred_fallthru
    _
  // Predicated region
  $region38: #{_lambda_.11} parent=0 // pred_check
    _
  $region39: #{_lambda_.11} parent=0 // pred_check_branch
    %468 = sbr.rel (0) target = $region41
  $region40: #{_lambda_.11} parent=0 // pred_region
    _
  $region41: #{_lambda_.11} parent=0 // pred_fallthru
    _

// kernel: _lambda_.14
$region0: #{_lambda_.14}
  #allocation0 [shape = 'u32[]', space=smem, size = 0x4, offset = 0x4, fixed_abs, tag = 'smem constant byte address 0x4 - core index']
  #allocation1 [shape = 'u32[144,128]{1,0:T(1,128)}', space=vmem, size = 0x12000, scoped, tag = 'internal scratch']
  %s0 = inlined_call_operand.vmem [shape: bf16[4,128,32], index: 0, kind: input, shape index: {}]
  %s1 = inlined_call_operand.vmem [shape: bf16[4,16,128], index: 1, kind: input, shape index: {}]
  %s2 = inlined_call_operand.vmem [shape: f32[16,1], index: 2, kind: input, shape index: {}]
  %s3 = inlined_call_operand.vmem [shape: f32[16,1], index: 3, kind: input, shape index: {}]
  %s4 = inlined_call_operand.vmem [shape: f32[4,16,32], index: 4, kind: output, shape index: {}]
  %s5 = sld [smem:[#allocation0]]
  $region26: #{_lambda_.14} parent=0
    _
  %s7 = ssub.s32 1, %s5
  %s8 = scalar_select 0, %s7, %s5
  // Predicated region
  $region2: #{_lambda_.14} parent=0 // pred_check
    _
  $region3: #{_lambda_.14} parent=0 // pred_check_branch
    %10 = sbr.rel (0) target = $region5
  $region4: #{_lambda_.14} parent=0 // pred_region
    _
  $region5: #{_lambda_.14} parent=0 // pred_fallthru
    _
  // Predicated region
  $region6: #{_lambda_.14} parent=0 // pred_check
    _
  $region7: #{_lambda_.14} parent=0 // pred_check_branch
    %12 = sbr.rel (0) target = $region9
  $region8: #{_lambda_.14} parent=0 // pred_region
    _
  $region9: #{_lambda_.14} parent=0 // pred_fallthru
    _
  // Predicated region
  $region10: #{_lambda_.14} parent=0 // pred_check
    _
  $region11: #{_lambda_.14} parent=0 // pred_check_branch
    %14 = sbr.rel (0) target = $region13
  $region12: #{_lambda_.14} parent=0 // pred_region
    _
  $region13: #{_lambda_.14} parent=0 // pred_fallthru
    _
  // Predicated region
  $region14: #{_lambda_.14} parent=0 // pred_check
    _
  $region15: #{_lambda_.14} parent=0 // pred_check_branch
    %16 = sbr.rel (0) target = $region17
  $region16: #{_lambda_.14} parent=0 // pred_region
    _
  $region17: #{_lambda_.14} parent=0 // pred_fallthru
    _
  %v18 = vld [vmem:[%s1] sm:$0xf]
  %v19 = vld [vmem:[%s1 + $0x4] sm:$0xf]
  %v20 = vld [vmem:[%s0] sm:$0xf]
  %v21 = vld [vmem:[%s0 + $0x4] sm:$0xf]
  %v22 = vld [vmem:[%s0 + $0x8] sm:$0xf]
  %v23 = vld [vmem:[%s0 + $0xc] sm:$0xf]
  %v24 = vld [vmem:[%s0 + $0x10] sm:$0xf]
  %v25 = vld [vmem:[%s0 + $0x14] sm:$0xf]
  %v26 = vld [vmem:[%s0 + $0x18] sm:$0xf]
  %v27 = vld [vmem:[%s0 + $0x1c] sm:$0xf]
  %v28 = vld [vmem:[%s0 + $0x20] sm:$0xf]
  %v29 = vld [vmem:[%s0 + $0x24] sm:$0xf]
  %v30 = vld [vmem:[%s0 + $0x28] sm:$0xf]
  %v31 = vld [vmem:[%s0 + $0x2c] sm:$0xf]
  %v32 = vld [vmem:[%s0 + $0x30] sm:$0xf]
  %v33 = vld [vmem:[%s0 + $0x34] sm:$0xf]
  %v34 = vld [vmem:[%s0 + $0x38] sm:$0xf]
  %v35 = vld [vmem:[%s0 + $0x3c] sm:$0xf]
  %v38 = vunpack.c.l.b16 %v18
  %v39 = vunpack.c.l.b16 %v19
  %v40 = vpack.c.b16 %v39, %v38
  %v58 = vunpack.c.l.b16 %v20
  %v59 = vunpack.c.l.b16 %v21
  %v60 = vunpack.c.l.b16 %v22
  %v61 = vunpack.c.l.b16 %v23
  %v62 = vunpack.c.l.b16 %v24
  %v63 = vunpack.c.l.b16 %v25
  %v64 = vunpack.c.l.b16 %v26
  %v65 = vunpack.c.l.b16 %v27
  %v66 = vunpack.c.l.b16 %v28
  %v67 = vunpack.c.l.b16 %v29
  %v68 = vunpack.c.l.b16 %v30
  %v69 = vunpack.c.l.b16 %v31
  %v70 = vunpack.c.l.b16 %v32
  %v71 = vunpack.c.l.b16 %v33
  %v72 = vunpack.c.l.b16 %v34
  %v73 = vunpack.c.l.b16 %v35
  %v74 = vpack.c.b16 %v59, %v58
  %v75 = vpack.c.b16 %v61, %v60
  %v76 = vpack.c.b16 %v63, %v62
  %v77 = vpack.c.b16 %v65, %v64
  %v78 = vpack.c.b16 %v67, %v66
  %v79 = vpack.c.b16 %v69, %v68
  %v80 = vpack.c.b16 %v71, %v70
  %v81 = vpack.c.b16 %v73, %v72
  %90 = vmatprep.subr.bf16.mxu0 0
  %91 = vmatpush1.bf16.msra.mxu0 %v74
  %92 = vmatprep.subr.bf16.mxu0 0
  %93 = vmatpush1.bf16.msra.mxu0 %v75
  %94 = vmatprep.subr.bf16.mxu0 0
  %95 = vmatpush1.bf16.msra.mxu0 %v76
  %96 = vmatprep.subr.bf16.mxu0 0
  %97 = vmatpush1.bf16.msra.mxu0 %v77
  %98 = vmatprep.subr.bf16.mxu0 0
  %99 = vmatpush1.bf16.msra.mxu0 %v78
  %100 = vmatprep.subr.bf16.mxu0 0
  %101 = vmatpush1.bf16.msra.mxu0 %v79
  %102 = vmatprep.subr.bf16.mxu0 0
  %103 = vmatpush1.bf16.msra.mxu0 %v80
  %104 = vmatprep.subr.bf16.mxu0 0
  %105 = vmatpush1.bf16.msra.mxu0 %v81
  %106 = vmatprep.subr.bf16.mxu0 0
  %107 = vmatpush1.bf16.msra.mxu0 0
  %108 = vmatprep.subr.bf16.mxu0 0
  %109 = vmatpush1.bf16.msra.mxu0 0
  %110 = vmatprep.subr.bf16.mxu0 0
  %111 = vmatpush1.bf16.msra.mxu0 0
  %112 = vmatprep.subr.bf16.mxu0 0
  %113 = vmatpush1.bf16.msra.mxu0 0
  %114 = vmatprep.subr.bf16.mxu0 0
  %115 = vmatpush1.bf16.msra.mxu0 0
  %116 = vmatprep.subr.bf16.mxu0 0
  %117 = vmatpush1.bf16.msra.mxu0 0
  %118 = vmatprep.subr.bf16.mxu0 0
  %119 = vmatpush1.bf16.msra.mxu0 0
  %120 = vmatprep.subr.bf16.mxu0 0
  %121 = vmatpush1.bf16.msra.mxu0 0
  %122 = vmatprep.mubr.bf16.mxu0 0
  %123 = vmatmul.mubr.bf16.gmra.mrb[0].mxu0 %v40
  %v124 = vpop.f32.mrb[0].mxu0
  %v125 = vadd.f32 0.0, %v124
  %v126 = vpop.f32.mrb[0].mxu0
  %v127 = vpop.f32.mrb[0].mxu0
  %v128 = vadd.f32 0.0, %v127
  %v129 = vpop.f32.mrb[0].mxu0
  %130 = vdwg.mxu0
  %s131 = scalar_lea.vmem %s1, 8
  %v132 = vld [vmem:[%s131] sm:$0xf]
  %v133 = vld [vmem:[%s131 + $0x4] sm:$0xf]
  %s134 = scalar_lea.vmem %s0, 64
  %v135 = vld [vmem:[%s134] sm:$0xf]
  %v136 = vld [vmem:[%s134 + $0x4] sm:$0xf]
  %v137 = vld [vmem:[%s134 + $0x8] sm:$0xf]
  %v138 = vld [vmem:[%s134 + $0xc] sm:$0xf]
  %v139 = vld [vmem:[%s134 + $0x10] sm:$0xf]
  %v140 = vld [vmem:[%s134 + $0x14] sm:$0xf]
  %v141 = vld [vmem:[%s134 + $0x18] sm:$0xf]
  %v142 = vld [vmem:[%s134 + $0x1c] sm:$0xf]
  %v143 = vld [vmem:[%s134 + $0x20] sm:$0xf]
  %v144 = vld [vmem:[%s134 + $0x24] sm:$0xf]
  %v145 = vld [vmem:[%s134 + $0x28] sm:$0xf]
  %v146 = vld [vmem:[%s134 + $0x2c] sm:$0xf]
  %v147 = vld [vmem:[%s134 + $0x30] sm:$0xf]
  %v148 = vld [vmem:[%s134 + $0x34] sm:$0xf]
  %v149 = vld [vmem:[%s134 + $0x38] sm:$0xf]
  %v150 = vld [vmem:[%s134 + $0x3c] sm:$0xf]
  %v153 = vunpack.c.l.b16 %v132
  %v154 = vunpack.c.l.b16 %v133
  %v155 = vpack.c.b16 %v154, %v153
  %v173 = vunpack.c.l.b16 %v135
  %v174 = vunpack.c.l.b16 %v136
  %v175 = vunpack.c.l.b16 %v137
  %v176 = vunpack.c.l.b16 %v138
  %v177 = vunpack.c.l.b16 %v139
  %v178 = vunpack.c.l.b16 %v140
  %v179 = vunpack.c.l.b16 %v141
  %v180 = vunpack.c.l.b16 %v142
  %v181 = vunpack.c.l.b16 %v143
  %v182 = vunpack.c.l.b16 %v144
  %v183 = vunpack.c.l.b16 %v145
  %v184 = vunpack.c.l.b16 %v146
  %v185 = vunpack.c.l.b16 %v147
  %v186 = vunpack.c.l.b16 %v148
  %v187 = vunpack.c.l.b16 %v149
  %v188 = vunpack.c.l.b16 %v150
  %v189 = vpack.c.b16 %v174, %v173
  %v190 = vpack.c.b16 %v176, %v175
  %v191 = vpack.c.b16 %v178, %v177
  %v192 = vpack.c.b16 %v180, %v179
  %v193 = vpack.c.b16 %v182, %v181
  %v194 = vpack.c.b16 %v184, %v183
  %v195 = vpack.c.b16 %v186, %v185
  %v196 = vpack.c.b16 %v188, %v187
  %205 = vmatprep.subr.bf16.mxu0 0
  %206 = vmatpush1.bf16.msra.mxu0 %v189
  %207 = vmatprep.subr.bf16.mxu0 0
  %208 = vmatpush1.bf16.msra.mxu0 %v190
  %209 = vmatprep.subr.bf16.mxu0 0
  %210 = vmatpush1.bf16.msra.mxu0 %v191
  %211 = vmatprep.subr.bf16.mxu0 0
  %212 = vmatpush1.bf16.msra.mxu0 %v192
  %213 = vmatprep.subr.bf16.mxu0 0
  %214 = vmatpush1.bf16.msra.mxu0 %v193
  %215 = vmatprep.subr.bf16.mxu0 0
  %216 = vmatpush1.bf16.msra.mxu0 %v194
  %217 = vmatprep.subr.bf16.mxu0 0
  %218 = vmatpush1.bf16.msra.mxu0 %v195
  %219 = vmatprep.subr.bf16.mxu0 0
  %220 = vmatpush1.bf16.msra.mxu0 %v196
  %221 = vmatprep.subr.bf16.mxu0 0
  %222 = vmatpush1.bf16.msra.mxu0 0
  %223 = vmatprep.subr.bf16.mxu0 0
  %224 = vmatpush1.bf16.msra.mxu0 0
  %225 = vmatprep.subr.bf16.mxu0 0
  %226 = vmatpush1.bf16.msra.mxu0 0
  %227 = vmatprep.subr.bf16.mxu0 0
  %228 = vmatpush1.bf16.msra.mxu0 0
  %229 = vmatprep.subr.bf16.mxu0 0
  %230 = vmatpush1.bf16.msra.mxu0 0
  %231 = vmatprep.subr.bf16.mxu0 0
  %232 = vmatpush1.bf16.msra.mxu0 0
  %233 = vmatprep.subr.bf16.mxu0 0
  %234 = vmatpush1.bf16.msra.mxu0 0
  %235 = vmatprep.subr.bf16.mxu0 0
  %236 = vmatpush1.bf16.msra.mxu0 0
  %237 = vmatprep.mubr.bf16.mxu0 0
  %238 = vmatmul.mubr.bf16.gmra.mrb[0].mxu0 %v155
  %v239 = vpop.f32.mrb[0].mxu0
  %v240 = vadd.f32 0.0, %v239
  %v241 = vpop.f32.mrb[0].mxu0
  %v242 = vpop.f32.mrb[0].mxu0
  %v243 = vadd.f32 0.0, %v242
  %v244 = vpop.f32.mrb[0].mxu0
  %245 = vdwg.mxu0
  %s246 = scalar_lea.vmem %s1, 16
  %v247 = vld [vmem:[%s246] sm:$0xf]
  %v248 = vld [vmem:[%s246 + $0x4] sm:$0xf]
  %s249 = scalar_lea.vmem %s0, 128
  %v250 = vld [vmem:[%s249] sm:$0xf]
  %v251 = vld [vmem:[%s249 + $0x4] sm:$0xf]
  %v252 = vld [vmem:[%s249 + $0x8] sm:$0xf]
  %v253 = vld [vmem:[%s249 + $0xc] sm:$0xf]
  %v254 = vld [vmem:[%s249 + $0x10] sm:$0xf]
  %v255 = vld [vmem:[%s249 + $0x14] sm:$0xf]
  %v256 = vld [vmem:[%s249 + $0x18] sm:$0xf]
  %v257 = vld [vmem:[%s249 + $0x1c] sm:$0xf]
  %v258 = vld [vmem:[%s249 + $0x20] sm:$0xf]
  %v259 = vld [vmem:[%s249 + $0x24] sm:$0xf]
  %v260 = vld [vmem:[%s249 + $0x28] sm:$0xf]
  %v261 = vld [vmem:[%s249 + $0x2c] sm:$0xf]
  %v262 = vld [vmem:[%s249 + $0x30] sm:$0xf]
  %v263 = vld [vmem:[%s249 + $0x34] sm:$0xf]
  %v264 = vld [vmem:[%s249 + $0x38] sm:$0xf]
  %v265 = vld [vmem:[%s249 + $0x3c] sm:$0xf]
  %v268 = vunpack.c.l.b16 %v247
  %v269 = vunpack.c.l.b16 %v248
  %v270 = vpack.c.b16 %v269, %v268
  %v288 = vunpack.c.l.b16 %v250
  %v289 = vunpack.c.l.b16 %v251
  %v290 = vunpack.c.l.b16 %v252
  %v291 = vunpack.c.l.b16 %v253
  %v292 = vunpack.c.l.b16 %v254
  %v293 = vunpack.c.l.b16 %v255
  %v294 = vunpack.c.l.b16 %v256
  %v295 = vunpack.c.l.b16 %v257
  %v296 = vunpack.c.l.b16 %v258
  %v297 = vunpack.c.l.b16 %v259
  %v298 = vunpack.c.l.b16 %v260
  %v299 = vunpack.c.l.b16 %v261
  %v300 = vunpack.c.l.b16 %v262
  %v301 = vunpack.c.l.b16 %v263
  %v302 = vunpack.c.l.b16 %v264
  %v303 = vunpack.c.l.b16 %v265
  %v304 = vpack.c.b16 %v289, %v288
  %v305 = vpack.c.b16 %v291, %v290
  %v306 = vpack.c.b16 %v293, %v292
  %v307 = vpack.c.b16 %v295, %v294
  %v308 = vpack.c.b16 %v297, %v296
  %v309 = vpack.c.b16 %v299, %v298
  %v310 = vpack.c.b16 %v301, %v300
  %v311 = vpack.c.b16 %v303, %v302
  %320 = vmatprep.subr.bf16.mxu0 0
  %321 = vmatpush1.bf16.msra.mxu0 %v304
  %322 = vmatprep.subr.bf16.mxu0 0
  %323 = vmatpush1.bf16.msra.mxu0 %v305
  %324 = vmatprep.subr.bf16.mxu0 0
  %325 = vmatpush1.bf16.msra.mxu0 %v306
  %326 = vmatprep.subr.bf16.mxu0 0
  %327 = vmatpush1.bf16.msra.mxu0 %v307
  %328 = vmatprep.subr.bf16.mxu0 0
  %329 = vmatpush1.bf16.msra.mxu0 %v308
  %330 = vmatprep.subr.bf16.mxu0 0
  %331 = vmatpush1.bf16.msra.mxu0 %v309
  %332 = vmatprep.subr.bf16.mxu0 0
  %333 = vmatpush1.bf16.msra.mxu0 %v310
  %334 = vmatprep.subr.bf16.mxu0 0
  %335 = vmatpush1.bf16.msra.mxu0 %v311
  %336 = vmatprep.subr.bf16.mxu0 0
  %337 = vmatpush1.bf16.msra.mxu0 0
  %338 = vmatprep.subr.bf16.mxu0 0
  %339 = vmatpush1.bf16.msra.mxu0 0
  %340 = vmatprep.subr.bf16.mxu0 0
  %341 = vmatpush1.bf16.msra.mxu0 0
  %342 = vmatprep.subr.bf16.mxu0 0
  %343 = vmatpush1.bf16.msra.mxu0 0
  %344 = vmatprep.subr.bf16.mxu0 0
  %345 = vmatpush1.bf16.msra.mxu0 0
  %346 = vmatprep.subr.bf16.mxu0 0
  %347 = vmatpush1.bf16.msra.mxu0 0
  %348 = vmatprep.subr.bf16.mxu0 0
  %349 = vmatpush1.bf16.msra.mxu0 0
  %350 = vmatprep.subr.bf16.mxu0 0
  %351 = vmatpush1.bf16.msra.mxu0 0
  %352 = vmatprep.mubr.bf16.mxu0 0
  %353 = vmatmul.mubr.bf16.gmra.mrb[0].mxu0 %v270
  %v354 = vpop.f32.mrb[0].mxu0
  %v355 = vadd.f32 0.0, %v354
  %v356 = vpop.f32.mrb[0].mxu0
  %v357 = vpop.f32.mrb[0].mxu0
  %v358 = vadd.f32 0.0, %v357
  %v359 = vpop.f32.mrb[0].mxu0
  %360 = vdwg.mxu0
  %s361 = scalar_lea.vmem %s1, 24
  %v362 = vld [vmem:[%s361] sm:$0xf]
  %v363 = vld [vmem:[%s361 + $0x4] sm:$0xf]
  %s364 = scalar_lea.vmem %s0, 192
  %v365 = vld [vmem:[%s364] sm:$0xf]
  %v366 = vld [vmem:[%s364 + $0x4] sm:$0xf]
  %v367 = vld [vmem:[%s364 + $0x8] sm:$0xf]
  %v368 = vld [vmem:[%s364 + $0xc] sm:$0xf]
  %v369 = vld [vmem:[%s364 + $0x10] sm:$0xf]
  %v370 = vld [vmem:[%s364 + $0x14] sm:$0xf]
  %v371 = vld [vmem:[%s364 + $0x18] sm:$0xf]
  %v372 = vld [vmem:[%s364 + $0x1c] sm:$0xf]
  %v373 = vld [vmem:[%s364 + $0x20] sm:$0xf]
  %v374 = vld [vmem:[%s364 + $0x24] sm:$0xf]
  %v375 = vld [vmem:[%s364 + $0x28] sm:$0xf]
  %v376 = vld [vmem:[%s364 + $0x2c] sm:$0xf]
  %v377 = vld [vmem:[%s364 + $0x30] sm:$0xf]
  %v378 = vld [vmem:[%s364 + $0x34] sm:$0xf]
  %v379 = vld [vmem:[%s364 + $0x38] sm:$0xf]
  %v380 = vld [vmem:[%s364 + $0x3c] sm:$0xf]
  %v383 = vunpack.c.l.b16 %v362
  %v384 = vunpack.c.l.b16 %v363
  %v385 = vpack.c.b16 %v384, %v383
  %v403 = vunpack.c.l.b16 %v365
  %v404 = vunpack.c.l.b16 %v366
  %v405 = vunpack.c.l.b16 %v367
  %v406 = vunpack.c.l.b16 %v368
  %v407 = vunpack.c.l.b16 %v369
  %v408 = vunpack.c.l.b16 %v370
  %v409 = vunpack.c.l.b16 %v371
  %v410 = vunpack.c.l.b16 %v372
  %v411 = vunpack.c.l.b16 %v373
  %v412 = vunpack.c.l.b16 %v374
  %v413 = vunpack.c.l.b16 %v375
  %v414 = vunpack.c.l.b16 %v376
  %v415 = vunpack.c.l.b16 %v377
  %v416 = vunpack.c.l.b16 %v378
  %v417 = vunpack.c.l.b16 %v379
  %v418 = vunpack.c.l.b16 %v380
  %v419 = vpack.c.b16 %v404, %v403
  %v420 = vpack.c.b16 %v406, %v405
  %v421 = vpack.c.b16 %v408, %v407
  %v422 = vpack.c.b16 %v410, %v409
  %v423 = vpack.c.b16 %v412, %v411
  %v424 = vpack.c.b16 %v414, %v413
  %v425 = vpack.c.b16 %v416, %v415
  %v426 = vpack.c.b16 %v418, %v417
  %435 = vmatprep.subr.bf16.mxu0 0
  %436 = vmatpush1.bf16.msra.mxu0 %v419
  %437 = vmatprep.subr.bf16.mxu0 0
  %438 = vmatpush1.bf16.msra.mxu0 %v420
  %439 = vmatprep.subr.bf16.mxu0 0
  %440 = vmatpush1.bf16.msra.mxu0 %v421
  %441 = vmatprep.subr.bf16.mxu0 0
  %442 = vmatpush1.bf16.msra.mxu0 %v422
  %443 = vmatprep.subr.bf16.mxu0 0
  %444 = vmatpush1.bf16.msra.mxu0 %v423
  %445 = vmatprep.subr.bf16.mxu0 0
  %446 = vmatpush1.bf16.msra.mxu0 %v424
  %447 = vmatprep.subr.bf16.mxu0 0
  %448 = vmatpush1.bf16.msra.mxu0 %v425
  %449 = vmatprep.subr.bf16.mxu0 0
  %450 = vmatpush1.bf16.msra.mxu0 %v426
  %451 = vmatprep.subr.bf16.mxu0 0
  %452 = vmatpush1.bf16.msra.mxu0 0
  %453 = vmatprep.subr.bf16.mxu0 0
  %454 = vmatpush1.bf16.msra.mxu0 0
  %455 = vmatprep.subr.bf16.mxu0 0
  %456 = vmatpush1.bf16.msra.mxu0 0
  %457 = vmatprep.subr.bf16.mxu0 0
  %458 = vmatpush1.bf16.msra.mxu0 0
  %459 = vmatprep.subr.bf16.mxu0 0
  %460 = vmatpush1.bf16.msra.mxu0 0
  %461 = vmatprep.subr.bf16.mxu0 0
  %462 = vmatpush1.bf16.msra.mxu0 0
  %463 = vmatprep.subr.bf16.mxu0 0
  %464 = vmatpush1.bf16.msra.mxu0 0
  %465 = vmatprep.subr.bf16.mxu0 0
  %466 = vmatpush1.bf16.msra.mxu0 0
  %467 = vmatprep.mubr.bf16.mxu0 0
  %468 = vmatmul.mubr.bf16.gmra.mrb[0].mxu0 %v385
  %v469 = vpop.f32.mrb[0].mxu0
  %v470 = vadd.f32 0.0, %v469
  %v471 = vpop.f32.mrb[0].mxu0
  %v472 = vpop.f32.mrb[0].mxu0
  %v473 = vadd.f32 0.0, %v472
  %v474 = vpop.f32.mrb[0].mxu0
  %475 = vdwg.mxu0
  %vm476 = vcmask 261120
  %v477 = vsel %vm476, %v125, 0.0
  %478 = vadd.xlane.f32.xlu0 %v477
  %v479 = vpop.xlane.xlu0 %478
  %v480 = vsel %vm476, %v128, 0.0
  %481 = vadd.xlane.f32.xlu0 %v480
  %v482 = vpop.xlane.xlu0 %481
  %v483 = vadd.f32 %v479, 0.0
  %v484 = vadd.f32 %v482, 0.0
  %v485 = vsel %vm476, %v240, 0.0
  %486 = vadd.xlane.f32.xlu0 %v485
  %v487 = vpop.xlane.xlu0 %486
  %v488 = vsel %vm476, %v243, 0.0
  %489 = vadd.xlane.f32.xlu0 %v488
  %v490 = vpop.xlane.xlu0 %489
  %v491 = vadd.f32 %v483, %v487
  %v492 = vadd.f32 %v484, %v490
  %v493 = vsel %vm476, %v355, 0.0
  %494 = vadd.xlane.f32.xlu0 %v493
  %v495 = vpop.xlane.xlu0 %494
  %v496 = vsel %vm476, %v358, 0.0
  %497 = vadd.xlane.f32.xlu0 %v496
  %v498 = vpop.xlane.xlu0 %497
  %v499 = vadd.f32 %v491, %v495
  %v500 = vadd.f32 %v492, %v498
  %v501 = vsel %vm476, %v470, 0.0
  %502 = vadd.xlane.f32.xlu0 %v501
  %v503 = vpop.xlane.xlu0 %502
  %v504 = vsel %vm476, %v473, 0.0
  %505 = vadd.xlane.f32.xlu0 %v504
  %v506 = vpop.xlane.xlu0 %505
  %v507 = vadd.f32 %v499, %v503
  %v508 = vadd.f32 %v500, %v506
  %v509 = vmul.f32 %v507, 0.0078125
  %v510 = vmul.f32 %v508, 0.0078125
  %v511 = vsub.f32 %v125, %v509
  %v512 = vsub.f32 %v128, %v510
  %v513 = vmul.f32 %v511, %v511
  %v514 = vmul.f32 %v512, %v512
  %v515 = vsel %vm476, %v513, 0.0
  %516 = vadd.xlane.f32.xlu0 %v515
  %v517 = vpop.xlane.xlu0 %516
  %v518 = vsel %vm476, %v514, 0.0
  %519 = vadd.xlane.f32.xlu0 %v518
  %v520 = vpop.xlane.xlu0 %519
  %v521 = vadd.f32 %v517, 0.0
  %v522 = vadd.f32 %v520, 0.0
  %v523 = vsub.f32 %v240, %v509
  %v524 = vsub.f32 %v243, %v510
  %v525 = vmul.f32 %v523, %v523
  %v526 = vmul.f32 %v524, %v524
  %v527 = vsel %vm476, %v525, 0.0
  %528 = vadd.xlane.f32.xlu0 %v527
  %v529 = vpop.xlane.xlu0 %528
  %v530 = vsel %vm476, %v526, 0.0
  %531 = vadd.xlane.f32.xlu0 %v530
  %v532 = vpop.xlane.xlu0 %531
  %v533 = vadd.f32 %v521, %v529
  %v534 = vadd.f32 %v522, %v532
  %v535 = vsub.f32 %v355, %v509
  %v536 = vsub.f32 %v358, %v510
  %v537 = vmul.f32 %v535, %v535
  %v538 = vmul.f32 %v536, %v536
  %v539 = vsel %vm476, %v537, 0.0
  %540 = vadd.xlane.f32.xlu0 %v539
  %v541 = vpop.xlane.xlu0 %540
  %v542 = vsel %vm476, %v538, 0.0
  %543 = vadd.xlane.f32.xlu0 %v542
  %v544 = vpop.xlane.xlu0 %543
  %v545 = vadd.f32 %v533, %v541
  %v546 = vadd.f32 %v534, %v544
  %v547 = vsub.f32 %v470, %v509
  %v548 = vsub.f32 %v473, %v510
  %v549 = vmul.f32 %v547, %v547
  %v550 = vmul.f32 %v548, %v548
  %v551 = vsel %vm476, %v549, 0.0
  %552 = vadd.xlane.f32.xlu0 %v551
  %v553 = vpop.xlane.xlu0 %552
  %v554 = vsel %vm476, %v550, 0.0
  %555 = vadd.xlane.f32.xlu0 %v554
  %v556 = vpop.xlane.xlu0 %555
  %v557 = vadd.f32 %v545, %v553
  %v558 = vadd.f32 %v546, %v556
  %v559 = vmul.f32 %v557, 0.0078125
  %v560 = vmul.f32 %v558, 0.0078125
  %v561 = vld [vmem:[%s2] sm:$0xff]
  %v562 = vld [vmem:[%s2 + $0x8] sm:$0xff]
  %v563 = vadd.f32 %v559, 1e-05
  %v564 = vadd.f32 %v560, 1e-05
  %v565 = vrsqrt.pop %v563
  %v566 = vrsqrt.pop %v564
  %v567 = vmul.f32 %v561, %v565
  %v568 = vmul.f32 %v562, %v566
  %v569 = vld [vmem:[%s3] sm:$0xff]
  %v570 = vld [vmem:[%s3 + $0x8] sm:$0xff]
  %v571 = vmul.f32 %v509, %v567
  %v572 = vmul.f32 %v510, %v568
  %v573 = vsub.f32 %v569, %v571
  %v574 = vsub.f32 %v570, %v572
  %576 = vset.pattern.permute.xlu0 0
  %577 = vperm.xlu0 %576, %v567
  %v578 = vpop.permute.xlu0 %577
  %581 = vset.pattern.permute.xlu0 0
  %582 = vperm.xlu0 %581, %v568
  %v583 = vpop.permute.xlu0 %582
  %v585 = vmul.f32 %v125, %v578
  %v586 = vmul.f32 %v128, %v583
  %588 = vset.pattern.permute.xlu0 0
  %589 = vperm.xlu0 %588, %v573
  %v590 = vpop.permute.xlu0 %589
  %593 = vset.pattern.permute.xlu0 0
  %594 = vperm.xlu0 %593, %v574
  %v595 = vpop.permute.xlu0 %594
  %v597 = vadd.f32 %v585, %v590
  %v598 = vadd.f32 %v586, %v595
  %v599 = vmul.f32 %v240, %v578
  %v600 = vmul.f32 %v243, %v583
  %v601 = vadd.f32 %v599, %v590
  %v602 = vadd.f32 %v600, %v595
  %v603 = vmul.f32 %v355, %v578
  %v604 = vmul.f32 %v358, %v583
  %v605 = vadd.f32 %v603, %v590
  %v606 = vadd.f32 %v604, %v595
  %v607 = vmul.f32 %v470, %v578
  %v608 = vmul.f32 %v473, %v583
  %v609 = vadd.f32 %v607, %v590
  %v610 = vadd.f32 %v608, %v595
  %v611 = vmax.f32 %v597, 0.0
  %v612 = vmax.f32 %v598, 0.0
  %v613 = vmax.f32 %v601, 0.0
  %v614 = vmax.f32 %v602, 0.0
  %v615 = vmax.f32 %v605, 0.0
  %v616 = vmax.f32 %v606, 0.0
  %v617 = vmax.f32 %v609, 0.0
  %v618 = vmax.f32 %v610, 0.0
  %619 = vst.msk [vmem:[%s4] sm:$0xff] %vm476, %v611
  %620 = vst.msk [vmem:[%s4 + $0x8] sm:$0xff] %vm476, %v612
  %s621 = scalar_lea.vmem %s4, 16
  %622 = vst.msk [vmem:[%s621] sm:$0xff] %vm476, %v613
  %623 = vst.msk [vmem:[%s621 + $0x8] sm:$0xff] %vm476, %v614
  %s624 = scalar_lea.vmem %s4, 32
  %625 = vst.msk [vmem:[%s624] sm:$0xff] %vm476, %v615
  %626 = vst.msk [vmem:[%s624 + $0x8] sm:$0xff] %vm476, %v616
  %s627 = scalar_lea.vmem %s4, 48
  %628 = vst.msk [vmem:[%s627] sm:$0xff] %vm476, %v617
  %629 = vst.msk [vmem:[%s627 + $0x8] sm:$0xff] %vm476, %v618
  // Predicated region
  $region18: #{_lambda_.14} parent=0 // pred_check
    _
  $region19: #{_lambda_.14} parent=0 // pred_check_branch
    %631 = sbr.rel (0) target = $region21
  $region20: #{_lambda_.14} parent=0 // pred_region
    _
  $region21: #{_lambda_.14} parent=0 // pred_fallthru
    _
  // Predicated region
  $region22: #{_lambda_.14} parent=0 // pred_check
    _
  $region23: #{_lambda_.14} parent=0 // pred_check_branch
    %633 = sbr.rel (0) target = $region25
  $region24: #{_lambda_.14} parent=0 // pred_region
    _
  $region25: #{_lambda_.14} parent=0 // pred_fallthru
    _

// kernel: _lambda_.15
$region0: #{_lambda_.15}
  #allocation0 [shape = 'u32[]', space=smem, size = 0x4, offset = 0x4, fixed_abs, tag = 'smem constant byte address 0x4 - core index']
  #allocation1 [shape = 'u32[144,128]{1,0:T(1,128)}', space=vmem, size = 0x12000, scoped, tag = 'internal scratch']
  %s0 = inlined_call_operand.vmem [shape: bf16[4,64,128], index: 0, kind: input, shape index: {}]
  %s1 = inlined_call_operand.vmem [shape: bf16[4,3,64], index: 1, kind: input, shape index: {}]
  %s2 = inlined_call_operand.vmem [shape: f32[4,3,128], index: 2, kind: output, shape index: {}]
  %s3 = sld [smem:[#allocation0]]
  $region18: #{_lambda_.15} parent=0
    _
  %s5 = ssub.s32 1, %s3
  %s6 = scalar_select 0, %s5, %s3
  // Predicated region
  $region2: #{_lambda_.15} parent=0 // pred_check
    _
  $region3: #{_lambda_.15} parent=0 // pred_check_branch
    %8 = sbr.rel (0) target = $region5
  $region4: #{_lambda_.15} parent=0 // pred_region
    _
  $region5: #{_lambda_.15} parent=0 // pred_fallthru
    _
  // Predicated region
  $region6: #{_lambda_.15} parent=0 // pred_check
    _
  $region7: #{_lambda_.15} parent=0 // pred_check_branch
    %10 = sbr.rel (0) target = $region9
  $region8: #{_lambda_.15} parent=0 // pred_region
    _
  $region9: #{_lambda_.15} parent=0 // pred_fallthru
    _
  %v12 = vld [vmem:[%s1] sm:$0x3]
  %v13 = vld [vmem:[%s0] sm:$0xf]
  %v14 = vld [vmem:[%s0 + $0x4] sm:$0xf]
  %v15 = vld [vmem:[%s0 + $0x8] sm:$0xf]
  %v16 = vld [vmem:[%s0 + $0xc] sm:$0xf]
  %v17 = vld [vmem:[%s0 + $0x10] sm:$0xf]
  %v18 = vld [vmem:[%s0 + $0x14] sm:$0xf]
  %v19 = vld [vmem:[%s0 + $0x18] sm:$0xf]
  %v20 = vld [vmem:[%s0 + $0x1c] sm:$0xf]
  %v29 = vunpack.c.l.b16 %v13
  %v30 = vunpack.c.l.b16 %v14
  %v31 = vunpack.c.l.b16 %v15
  %v32 = vunpack.c.l.b16 %v16
  %v33 = vunpack.c.l.b16 %v17
  %v34 = vunpack.c.l.b16 %v18
  %v35 = vunpack.c.l.b16 %v19
  %v36 = vunpack.c.l.b16 %v20
  %v37 = vpack.c.b16 %v30, %v29
  %v38 = vpack.c.b16 %v32, %v31
  %v39 = vpack.c.b16 %v34, %v33
  %v40 = vpack.c.b16 %v36, %v35
  %vm45 = vcmask 523264
  %v47 = vsel %vm45, %v12, 0
  %49 = vmatprep.subr.bf16.mxu0 0
  %50 = vmatpush1.bf16.msra.mxu0 %v37
  %51 = vmatprep.subr.bf16.mxu0 0
  %52 = vmatpush1.bf16.msra.mxu0 %v38
  %53 = vmatprep.subr.bf16.mxu0 0
  %54 = vmatpush1.bf16.msra.mxu0 %v39
  %55 = vmatprep.subr.bf16.mxu0 0
  %56 = vmatpush1.bf16.msra.mxu0 %v40
  %57 = vmatprep.subr.bf16.mxu0 0
  %58 = vmatpush1.bf16.msra.mxu0 0
  %59 = vmatprep.subr.bf16.mxu0 0
  %60 = vmatpush1.bf16.msra.mxu0 0
  %61 = vmatprep.subr.bf16.mxu0 0
  %62 = vmatpush1.bf16.msra.mxu0 0
  %63 = vmatprep.subr.bf16.mxu0 0
  %64 = vmatpush1.bf16.msra.mxu0 0
  %65 = vmatprep.subr.bf16.mxu0 0
  %66 = vmatpush1.bf16.msra.mxu0 0
  %67 = vmatprep.subr.bf16.mxu0 0
  %68 = vmatpush1.bf16.msra.mxu0 0
  %69 = vmatprep.subr.bf16.mxu0 0
  %70 = vmatpush1.bf16.msra.mxu0 0
  %71 = vmatprep.subr.bf16.mxu0 0
  %72 = vmatpush1.bf16.msra.mxu0 0
  %73 = vmatprep.subr.bf16.mxu0 0
  %74 = vmatpush1.bf16.msra.mxu0 0
  %75 = vmatprep.subr.bf16.mxu0 0
  %76 = vmatpush1.bf16.msra.mxu0 0
  %77 = vmatprep.subr.bf16.mxu0 0
  %78 = vmatpush1.bf16.msra.mxu0 0
  %79 = vmatprep.subr.bf16.mxu0 0
  %80 = vmatpush1.bf16.msra.mxu0 0
  %81 = vmatprep.mubr.bf16.mxu0 0
  %82 = vmatmul.mubr.bf16.gmra.mrb[0].mxu0 %v47
  %v83 = vpop.f32.mrb[0].mxu0
  %v84 = vadd.f32 0.0, %v83
  %v85 = vpop.f32.mrb[0].mxu0
  %v86 = vpop.f32.mrb[0].mxu0
  %v87 = vpop.f32.mrb[0].mxu0
  %88 = vdwg.mxu0
  %s89 = scalar_lea.vmem %s1, 2
  %v90 = vld [vmem:[%s89] sm:$0x3]
  %s91 = scalar_lea.vmem %s0, 32
  %v92 = vld [vmem:[%s91] sm:$0xf]
  %v93 = vld [vmem:[%s91 + $0x4] sm:$0xf]
  %v94 = vld [vmem:[%s91 + $0x8] sm:$0xf]
  %v95 = vld [vmem:[%s91 + $0xc] sm:$0xf]
  %v96 = vld [vmem:[%s91 + $0x10] sm:$0xf]
  %v97 = vld [vmem:[%s91 + $0x14] sm:$0xf]
  %v98 = vld [vmem:[%s91 + $0x18] sm:$0xf]
  %v99 = vld [vmem:[%s91 + $0x1c] sm:$0xf]
  %v108 = vunpack.c.l.b16 %v92
  %v109 = vunpack.c.l.b16 %v93
  %v110 = vunpack.c.l.b16 %v94
  %v111 = vunpack.c.l.b16 %v95
  %v112 = vunpack.c.l.b16 %v96
  %v113 = vunpack.c.l.b16 %v97
  %v114 = vunpack.c.l.b16 %v98
  %v115 = vunpack.c.l.b16 %v99
  %v116 = vpack.c.b16 %v109, %v108
  %v117 = vpack.c.b16 %v111, %v110
  %v118 = vpack.c.b16 %v113, %v112
  %v119 = vpack.c.b16 %v115, %v114
  %v125 = vsel %vm45, %v90, 0
  %127 = vmatprep.subr.bf16.mxu0 0
  %128 = vmatpush1.bf16.msra.mxu0 %v116
  %129 = vmatprep.subr.bf16.mxu0 0
  %130 = vmatpush1.bf16.msra.mxu0 %v117
  %131 = vmatprep.subr.bf16.mxu0 0
  %132 = vmatpush1.bf16.msra.mxu0 %v118
  %133 = vmatprep.subr.bf16.mxu0 0
  %134 = vmatpush1.bf16.msra.mxu0 %v119
  %135 = vmatprep.subr.bf16.mxu0 0
  %136 = vmatpush1.bf16.msra.mxu0 0
  %137 = vmatprep.subr.bf16.mxu0 0
  %138 = vmatpush1.bf16.msra.mxu0 0
  %139 = vmatprep.subr.bf16.mxu0 0
  %140 = vmatpush1.bf16.msra.mxu0 0
  %141 = vmatprep.subr.bf16.mxu0 0
  %142 = vmatpush1.bf16.msra.mxu0 0
  %143 = vmatprep.subr.bf16.mxu0 0
  %144 = vmatpush1.bf16.msra.mxu0 0
  %145 = vmatprep.subr.bf16.mxu0 0
  %146 = vmatpush1.bf16.msra.mxu0 0
  %147 = vmatprep.subr.bf16.mxu0 0
  %148 = vmatpush1.bf16.msra.mxu0 0
  %149 = vmatprep.subr.bf16.mxu0 0
  %150 = vmatpush1.bf16.msra.mxu0 0
  %151 = vmatprep.subr.bf16.mxu0 0
  %152 = vmatpush1.bf16.msra.mxu0 0
  %153 = vmatprep.subr.bf16.mxu0 0
  %154 = vmatpush1.bf16.msra.mxu0 0
  %155 = vmatprep.subr.bf16.mxu0 0
  %156 = vmatpush1.bf16.msra.mxu0 0
  %157 = vmatprep.subr.bf16.mxu0 0
  %158 = vmatpush1.bf16.msra.mxu0 0
  %159 = vmatprep.mubr.bf16.mxu0 0
  %160 = vmatmul.mubr.bf16.gmra.mrb[0].mxu0 %v125
  %v161 = vpop.f32.mrb[0].mxu0
  %v162 = vadd.f32 0.0, %v161
  %v163 = vpop.f32.mrb[0].mxu0
  %v164 = vpop.f32.mrb[0].mxu0
  %v165 = vpop.f32.mrb[0].mxu0
  %166 = vdwg.mxu0
  %s167 = scalar_lea.vmem %s1, 4
  %v168 = vld [vmem:[%s167] sm:$0x3]
  %s169 = scalar_lea.vmem %s0, 64
  %v170 = vld [vmem:[%s169] sm:$0xf]
  %v171 = vld [vmem:[%s169 + $0x4] sm:$0xf]
  %v172 = vld [vmem:[%s169 + $0x8] sm:$0xf]
  %v173 = vld [vmem:[%s169 + $0xc] sm:$0xf]
  %v174 = vld [vmem:[%s169 + $0x10] sm:$0xf]
  %v175 = vld [vmem:[%s169 + $0x14] sm:$0xf]
  %v176 = vld [vmem:[%s169 + $0x18] sm:$0xf]
  %v177 = vld [vmem:[%s169 + $0x1c] sm:$0xf]
  %v186 = vunpack.c.l.b16 %v170
  %v187 = vunpack.c.l.b16 %v171
  %v188 = vunpack.c.l.b16 %v172
  %v189 = vunpack.c.l.b16 %v173
  %v190 = vunpack.c.l.b16 %v174
  %v191 = vunpack.c.l.b16 %v175
  %v192 = vunpack.c.l.b16 %v176
  %v193 = vunpack.c.l.b16 %v177
  %v194 = vpack.c.b16 %v187, %v186
  %v195 = vpack.c.b16 %v189, %v188
  %v196 = vpack.c.b16 %v191, %v190
  %v197 = vpack.c.b16 %v193, %v192
  %v203 = vsel %vm45, %v168, 0
  %205 = vmatprep.subr.bf16.mxu0 0
  %206 = vmatpush1.bf16.msra.mxu0 %v194
  %207 = vmatprep.subr.bf16.mxu0 0
  %208 = vmatpush1.bf16.msra.mxu0 %v195
  %209 = vmatprep.subr.bf16.mxu0 0
  %210 = vmatpush1.bf16.msra.mxu0 %v196
  %211 = vmatprep.subr.bf16.mxu0 0
  %212 = vmatpush1.bf16.msra.mxu0 %v197
  %213 = vmatprep.subr.bf16.mxu0 0
  %214 = vmatpush1.bf16.msra.mxu0 0
  %215 = vmatprep.subr.bf16.mxu0 0
  %216 = vmatpush1.bf16.msra.mxu0 0
  %217 = vmatprep.subr.bf16.mxu0 0
  %218 = vmatpush1.bf16.msra.mxu0 0
  %219 = vmatprep.subr.bf16.mxu0 0
  %220 = vmatpush1.bf16.msra.mxu0 0
  %221 = vmatprep.subr.bf16.mxu0 0
  %222 = vmatpush1.bf16.msra.mxu0 0
  %223 = vmatprep.subr.bf16.mxu0 0
  %224 = vmatpush1.bf16.msra.mxu0 0
  %225 = vmatprep.subr.bf16.mxu0 0
  %226 = vmatpush1.bf16.msra.mxu0 0
  %227 = vmatprep.subr.bf16.mxu0 0
  %228 = vmatpush1.bf16.msra.mxu0 0
  %229 = vmatprep.subr.bf16.mxu0 0
  %230 = vmatpush1.bf16.msra.mxu0 0
  %231 = vmatprep.subr.bf16.mxu0 0
  %232 = vmatpush1.bf16.msra.mxu0 0
  %233 = vmatprep.subr.bf16.mxu0 0
  %234 = vmatpush1.bf16.msra.mxu0 0
  %235 = vmatprep.subr.bf16.mxu0 0
  %236 = vmatpush1.bf16.msra.mxu0 0
  %237 = vmatprep.mubr.bf16.mxu0 0
  %238 = vmatmul.mubr.bf16.gmra.mrb[0].mxu0 %v203
  %v239 = vpop.f32.mrb[0].mxu0
  %v240 = vadd.f32 0.0, %v239
  %v241 = vpop.f32.mrb[0].mxu0
  %v242 = vpop.f32.mrb[0].mxu0
  %v243 = vpop.f32.mrb[0].mxu0
  %244 = vdwg.mxu0
  %s245 = scalar_lea.vmem %s1, 6
  %v246 = vld [vmem:[%s245] sm:$0x3]
  %s247 = scalar_lea.vmem %s0, 96
  %v248 = vld [vmem:[%s247] sm:$0xf]
  %v249 = vld [vmem:[%s247 + $0x4] sm:$0xf]
  %v250 = vld [vmem:[%s247 + $0x8] sm:$0xf]
  %v251 = vld [vmem:[%s247 + $0xc] sm:$0xf]
  %v252 = vld [vmem:[%s247 + $0x10] sm:$0xf]
  %v253 = vld [vmem:[%s247 + $0x14] sm:$0xf]
  %v254 = vld [vmem:[%s247 + $0x18] sm:$0xf]
  %v255 = vld [vmem:[%s247 + $0x1c] sm:$0xf]
  %v264 = vunpack.c.l.b16 %v248
  %v265 = vunpack.c.l.b16 %v249
  %v266 = vunpack.c.l.b16 %v250
  %v267 = vunpack.c.l.b16 %v251
  %v268 = vunpack.c.l.b16 %v252
  %v269 = vunpack.c.l.b16 %v253
  %v270 = vunpack.c.l.b16 %v254
  %v271 = vunpack.c.l.b16 %v255
  %v272 = vpack.c.b16 %v265, %v264
  %v273 = vpack.c.b16 %v267, %v266
  %v274 = vpack.c.b16 %v269, %v268
  %v275 = vpack.c.b16 %v271, %v270
  %v281 = vsel %vm45, %v246, 0
  %283 = vmatprep.subr.bf16.mxu0 0
  %284 = vmatpush1.bf16.msra.mxu0 %v272
  %285 = vmatprep.subr.bf16.mxu0 0
  %286 = vmatpush1.bf16.msra.mxu0 %v273
  %287 = vmatprep.subr.bf16.mxu0 0
  %288 = vmatpush1.bf16.msra.mxu0 %v274
  %289 = vmatprep.subr.bf16.mxu0 0
  %290 = vmatpush1.bf16.msra.mxu0 %v275
  %291 = vmatprep.subr.bf16.mxu0 0
  %292 = vmatpush1.bf16.msra.mxu0 0
  %293 = vmatprep.subr.bf16.mxu0 0
  %294 = vmatpush1.bf16.msra.mxu0 0
  %295 = vmatprep.subr.bf16.mxu0 0
  %296 = vmatpush1.bf16.msra.mxu0 0
  %297 = vmatprep.subr.bf16.mxu0 0
  %298 = vmatpush1.bf16.msra.mxu0 0
  %299 = vmatprep.subr.bf16.mxu0 0
  %300 = vmatpush1.bf16.msra.mxu0 0
  %301 = vmatprep.subr.bf16.mxu0 0
  %302 = vmatpush1.bf16.msra.mxu0 0
  %303 = vmatprep.subr.bf16.mxu0 0
  %304 = vmatpush1.bf16.msra.mxu0 0
  %305 = vmatprep.subr.bf16.mxu0 0
  %306 = vmatpush1.bf16.msra.mxu0 0
  %307 = vmatprep.subr.bf16.mxu0 0
  %308 = vmatpush1.bf16.msra.mxu0 0
  %309 = vmatprep.subr.bf16.mxu0 0
  %310 = vmatpush1.bf16.msra.mxu0 0
  %311 = vmatprep.subr.bf16.mxu0 0
  %312 = vmatpush1.bf16.msra.mxu0 0
  %313 = vmatprep.subr.bf16.mxu0 0
  %314 = vmatpush1.bf16.msra.mxu0 0
  %315 = vmatprep.mubr.bf16.mxu0 0
  %316 = vmatmul.mubr.bf16.gmra.mrb[0].mxu0 %v281
  %v317 = vpop.f32.mrb[0].mxu0
  %v318 = vadd.f32 0.0, %v317
  %v319 = vpop.f32.mrb[0].mxu0
  %v320 = vpop.f32.mrb[0].mxu0
  %v321 = vpop.f32.mrb[0].mxu0
  %322 = vdwg.mxu0
  %323 = vst [vmem:[%s2] sm:$0x7] %v84
  %s324 = scalar_lea.vmem %s2, 4
  %325 = vst [vmem:[%s324] sm:$0x7] %v162
  %s326 = scalar_lea.vmem %s2, 8
  %327 = vst [vmem:[%s326] sm:$0x7] %v240
  %s328 = scalar_lea.vmem %s2, 12
  %329 = vst [vmem:[%s328] sm:$0x7] %v318
  // Predicated region
  $region10: #{_lambda_.15} parent=0 // pred_check
    _
  $region11: #{_lambda_.15} parent=0 // pred_check_branch
    %331 = sbr.rel (0) target = $region13
  $region12: #{_lambda_.15} parent=0 // pred_region
    _
  $region13: #{_lambda_.15} parent=0 // pred_fallthru
    _
  // Predicated region
  $region14: #{_lambda_.15} parent=0 // pred_check
    _
  $region15: #{_lambda_.15} parent=0 // pred_check_branch
    %333 = sbr.rel (0) target = $region17
  $region16: #{_lambda_.15} parent=0 // pred_region
    _
  $region17: #{_lambda_.15} parent=0 // pred_fallthru
    _

</llo_original>
